<compile_context>
chip_gen: v7x
topology: tpu7x:2x2x1
jax: 0.10.0
libtpu: 0.0.40
codegen_flags: <defaults>
</compile_context>

<pallas_src>
import functools
import math

import jax
import jax.numpy as jnp
from jax.experimental import pallas as pl
from jax.experimental.pallas import tpu as pltpu


# ---------------------------------------------------------------------------
# Kernel 1: Tucker core contraction + bn0/bn1 folds, blocked over W's k axis.
# ---------------------------------------------------------------------------
def _tucker_kernel(lhs_ref, bn0s_ref, bn0b_ref, bn1s_ref, bn1b_ref,
                   relt_ref, w_ref, xq_ref, acc_ref):
    kk = pl.program_id(0)
    nk = pl.num_programs(0)
    tk = w_ref.shape[0]

    @pl.when(kk == 0)
    def _init():
        acc_ref[...] = jnp.zeros_like(acc_ref)

    # bn0 fold (running stats); input_dropout is identity in eval mode.
    h = (lhs_ref[...] * bn0s_ref[...] + bn0b_ref[...]).astype(jnp.bfloat16)  # (B, d)

    # acc[b, j] += sum_c rel_t[b, k0 + c] * (h @ W[k0 + c])[b, j]
    # One (B, d) x (d, d) bf16 MXU matmul per c; per-row rel_t scaling in f32
    # on the VPU.  relt_ref[c] is a (B, 1) column -> plain lane broadcast.
    acc = acc_ref[...]
    for c in range(tk):                                     # static unroll
        hw = jnp.dot(h, w_ref[c], preferred_element_type=jnp.float32)  # (B, d)
        acc = acc + relt_ref[c] * hw
    acc_ref[...] = acc

    @pl.when(kk == nk - 1)
    def _finalize():
        # bn1 fold; hidden_dropout1/2 identity in eval mode.  bf16 output so the
        # score kernel consumes it directly (no per-grid-step cast).
        xq_ref[...] = (acc_ref[...] * bn1s_ref[...]
                       + bn1b_ref[...]).astype(jnp.bfloat16)


# ---------------------------------------------------------------------------
# Kernel 2: pred = x_q @ E^T, wide lane-dense tiles over the entity dimension.
# ---------------------------------------------------------------------------
def _score_kernel(xq_ref, et_ref, pred_ref):
    # x_q and the E^T tile are both bf16 already; f32 accumulation on the MXU.
    pred_ref[...] = jnp.dot(xq_ref[...], et_ref[...],
                            preferred_element_type=jnp.float32)


# ---------------------------------------------------------------------------
# One-time preprocessing (hoisted out of the per-call forward, per the review):
# E^T transposed, zero-padded to a multiple of tile_n and cast to bf16; W bf16.
# ---------------------------------------------------------------------------
def prepare_tables(params, tile_n=2048):
    E = params["E"]
    W = params["W"]
    n_ent, d = E.shape
    n_pad = pl.cdiv(n_ent, tile_n) * tile_n
    e_t = jnp.zeros((d, n_pad), jnp.bfloat16).at[:, :n_ent].set(
        E.T.astype(jnp.bfloat16))
    return {"e_t": e_t, "w_bf16": W.astype(jnp.bfloat16)}


# ---------------------------------------------------------------------------
# Forward wrapper
# ---------------------------------------------------------------------------
@functools.partial(jax.jit, static_argnames=("tile_n", "tk"))
def tuckertnt_forward(x_idx, params, e_t, w_bf16, *, tile_n=2048, tk=32):
    E, R, T, R_noT = params["E"], params["R"], params["T"], params["R_noT"]
    bn0, bn1 = params["bn0"], params["bn1"]
    eps = 1e-5

    B = x_idx.shape[0]
    n_ent, d = E.shape
    assert d % 128 == 0 and d % tk == 0, "rank must be a multiple of 128 and tk"
    nk = d // tk
    n_pad = e_t.shape[1]
    assert n_pad % tile_n == 0 and n_pad >= n_ent

    # Embedding lookups (data-dependent gathers stay in XLA).
    lhs = E[x_idx[:, 0]]
    rel = R[x_idx[:, 1]]
    rel_nt = R_noT[x_idx[:, 1]]
    rhs = E[x_idx[:, 2]]
    tim = T[x_idx[:, 3]]

    rel_time = rel * tim
    rel_t = rel_time + rel_nt                               # (B, d)
    # (d, B, 1) layout: the kernel grabs per-k (B, 1) scale columns straight
    # from the blocked ref -> no sub-128 lane slicing anywhere.
    rel_t_kb = jnp.transpose(rel_t)[:, :, None]             # (d, B, 1)

    def fold_bn(bn):
        scale = bn["gamma"] / jnp.sqrt(bn["var"] + eps)
        shift = bn["beta"] - bn["mean"] * scale
        return scale.reshape(1, d), shift.reshape(1, d)

    bn0_scale, bn0_shift = fold_bn(bn0)
    bn1_scale, bn1_shift = fold_bn(bn1)

    # ---- kernel 1: Tucker contraction, reduction grid over W's k axis ------
    x_q = pl.pallas_call(
        _tucker_kernel,
        out_shape=jax.ShapeDtypeStruct((B, d), jnp.bfloat16),
        grid=(nk,),
        in_specs=[
            pl.BlockSpec((B, d), lambda k: (0, 0)),          # lhs (resident)
            pl.BlockSpec((1, d), lambda k: (0, 0)),          # bn0 scale
            pl.BlockSpec((1, d), lambda k: (0, 0)),          # bn0 shift
            pl.BlockSpec((1, d), lambda k: (0, 0)),          # bn1 scale
            pl.BlockSpec((1, d), lambda k: (0, 0)),          # bn1 shift
            pl.BlockSpec((tk, B, 1), lambda k: (k, 0, 0)),   # rel_t columns
            pl.BlockSpec((tk, d, d), lambda k: (k, 0, 0)),   # W slab (bf16)
        ],
        out_specs=pl.BlockSpec((B, d), lambda k: (0, 0)),
        scratch_shapes=[pltpu.VMEM((B, d), jnp.float32)],
        compiler_params=pltpu.CompilerParams(
            dimension_semantics=("arbitrary",)),
        cost_estimate=pl.CostEstimate(
            flops=2 * B * d * d * d, transcendentals=0,
            bytes_accessed=d * d * d * 2 + 8 * B * d * 4),
    )(lhs, bn0_scale, bn0_shift, bn1_scale, bn1_shift, rel_t_kb, w_bf16)

    # ---- kernel 2: pred = x_q @ E^T, wide entity tiles ----------------------
    grid_n = n_pad // tile_n
    pred_pad = pl.pallas_call(
        _score_kernel,
        out_shape=jax.ShapeDtypeStruct((B, n_pad), jnp.float32),
        grid=(grid_n,),
        in_specs=[
            pl.BlockSpec((B, d), lambda i: (0, 0)),          # x_q (bf16, resident)
            pl.BlockSpec((d, tile_n), lambda i: (0, i)),     # E^T tile (bf16)
        ],
        out_specs=pl.BlockSpec((B, tile_n), lambda i: (0, i)),
        compiler_params=pltpu.CompilerParams(
            dimension_semantics=("parallel",),
            vmem_limit_bytes=32 * 1024 * 1024),
        cost_estimate=pl.CostEstimate(
            flops=2 * B * d * n_pad, transcendentals=0,
            bytes_accessed=d * n_pad * 2 + B * n_pad * 4 + B * d * 2),
    )(x_q, e_t)
    pred = pred_pad[:, :n_ent]

    # ---- p=4 regularizer (O(B*d) reductions, left to XLA) ------------------
    h_reg = lhs * bn0_scale + bn0_shift      # bn0(lhs), same fold as kernel 1
    def p4(v):
        v2 = v * v
        return jnp.sum(v2 * v2) ** 0.25
    sqrt2 = math.sqrt(2.0)
    regularizer = (sqrt2 * p4(h_reg), p4(rel_time), p4(rel_nt), sqrt2 * p4(rhs))

    return pred, regularizer, T


# ---------------------------------------------------------------------------
# Pure-JAX reference of the same (eval-mode) math, for verification.
# ---------------------------------------------------------------------------
def reference_forward(x_idx, params):
    E, R, T, R_noT, W = (params["E"], params["R"], params["T"],
                         params["R_noT"], params["W"])
    bn0, bn1 = params["bn0"], params["bn1"]
    eps = 1e-5
    d = E.shape[1]

    lhs = E[x_idx[:, 0]]
    rel = R[x_idx[:, 1]]
    rel_nt = R_noT[x_idx[:, 1]]
    rhs = E[x_idx[:, 2]]
    tim = T[x_idx[:, 3]]

    rel_t = rel * tim + rel_nt
    h = (lhs - bn0["mean"]) / jnp.sqrt(bn0["var"] + eps) * bn0["gamma"] + bn0["beta"]

    W_mat = (rel_t @ W.reshape(d, d * d)).reshape(-1, d, d)
    x = jnp.einsum('bi,bij->bj', h, W_mat)
    x = (x - bn1["mean"]) / jnp.sqrt(bn1["var"] + eps) * bn1["gamma"] + bn1["beta"]
    pred = x @ E.T

    p4 = lambda v: jnp.sum(v ** 4) ** 0.25
    reg = (math.sqrt(2.0) * p4(h), p4(rel * tim), p4(rel_nt), math.sqrt(2.0) * p4(rhs))
    return pred, reg, T


def make_params(key, sizes, rank):
    n_ent, n_rel, _, n_time = sizes
    ks = jax.random.split(key, 12)

    def emb(k, n):
        w = 0.1 * jax.random.normal(k, (n, rank), jnp.float32)
        return w.at[0].set(0.0)  # padding_idx=0

    return {
        "E": emb(ks[0], n_ent),
        "R": emb(ks[1], n_rel),
        "T": emb(ks[2], n_time),
        "R_noT": emb(ks[3], n_rel),
        "W": jax.random.uniform(ks[4], (rank, rank, rank), jnp.float32, -1.0, 1.0),
        "bn0": {
            "gamma": 1.0 + 0.1 * jax.random.normal(ks[5], (rank,), jnp.float32),
            "beta": 0.1 * jax.random.normal(ks[6], (rank,), jnp.float32),
            "mean": 0.1 * jax.random.normal(ks[7], (rank,), jnp.float32),
            "var": jax.random.uniform(ks[8], (rank,), jnp.float32, 0.5, 1.5),
        },
        "bn1": {
            "gamma": 1.0 + 0.1 * jax.random.normal(ks[9], (rank,), jnp.float32),
            "beta": 0.1 * jax.random.normal(ks[10], (rank,), jnp.float32),
            "mean": 0.1 * jax.random.normal(ks[11], (rank,), jnp.float32),
            "var": jnp.linspace(0.7, 1.3, rank, dtype=jnp.float32),
        },
    }


if __name__ == "__main__":
    # sizes = (n_entities, n_relations, n_entities, n_timestamps), rank = d
    sizes = (8192, 16, 8192, 32)
    rank = 128      # lane-aligned rank; production configs use multiples of 128
    B = 8
    TILE_N = 1024   # demo: 8 entity tiles; production: sweep 2048-8192
    TK = 32         # W slab depth: bf16 slab = TK*d*d*2 bytes resident per step

    key = jax.random.PRNGKey(0)
    kp, kq = jax.random.split(key)
    params = make_params(kp, sizes, rank)
    tables = prepare_tables(params, tile_n=TILE_N)   # one-time, hoisted

    kq0, kq1, kq2, kq3 = jax.random.split(kq, 4)
    x = jnp.stack([
        jax.random.randint(kq0, (B,), 0, sizes[0]),
        jax.random.randint(kq1, (B,), 0, sizes[1]),
        jax.random.randint(kq2, (B,), 0, sizes[2]),
        jax.random.randint(kq3, (B,), 0, sizes[3]),
    ], axis=1).astype(jnp.int32)                     # (B, 4) quadruples

    pred, reg, t_weight = tuckertnt_forward(
        x, params, tables["e_t"], tables["w_bf16"], tile_n=TILE_N, tk=TK)
    jax.block_until_ready(pred)
    jax.block_until_ready(reg)

    pred_ref, reg_ref, _ = reference_forward(x, params)

    assert pred.shape == (B, sizes[0])
    assert t_weight.shape == (sizes[3], rank)
    # W / h / x_q / E are streamed through bf16 -> loose tolerance on scores.
    assert jnp.allclose(pred, pred_ref, rtol=5e-2, atol=5e-2), (
        "pred mismatch: max abs err %e"
        % float(jnp.max(jnp.abs(pred - pred_ref))))
    for a, b in zip(reg, reg_ref):
        assert jnp.allclose(a, b, rtol=1e-3, atol=1e-3), "regularizer mismatch"

    print("KERNEL_OK")
</pallas_src>

<mosaic_0001>
module attributes {stable_mosaic.version = 11 : i64} {
  func.func @_score_kernel(%arg0: i32, %arg1: memref<8x128xbf16, #tpu.memory_space<vmem>>, %arg2: memref<128x1024xbf16, #tpu.memory_space<vmem>>, %arg3: memref<8x1024xf32, #tpu.memory_space<vmem>>) attributes {dimension_semantics = [#tpu.dimension_semantics<parallel>], iteration_bounds = array<i64: 8>, scalar_prefetch = 0 : i64, scratch_operands = 0 : i64, tpu.core_type = #tpu.core_type<tc>, window_params = [{pipeline_mode = #tpu.pipeline_mode<synchronous>, transform_indices = @transform_0, window_bounds = array<i64: 8, 128>}, {transform_indices = @transform_1, window_bounds = array<i64: 128, 1024>}, {transform_indices = @transform_2, window_bounds = array<i64: 8, 1024>}]} {
    %c0 = arith.constant 0 : index
    %c0_0 = arith.constant 0 : index
    %0 = vector.load %arg1[%c0, %c0_0] : memref<8x128xbf16, #tpu.memory_space<vmem>>, vector<8x128xbf16>
    %c0_1 = arith.constant 0 : index
    %c0_2 = arith.constant 0 : index
    %1 = vector.load %arg2[%c0_1, %c0_2] : memref<128x1024xbf16, #tpu.memory_space<vmem>>, vector<128x1024xbf16>
    %cst = arith.constant dense<0.000000e+00> : vector<8x1024xf32>
    %2 = tpu.matmul %0, %1, %cst {dimension_numbers = #tpu.dot_dimension_numbers<[1], [0], [0], [1], [0, 0, 1, 1], [], []>} : vector<8x128xbf16>, vector<128x1024xbf16>, vector<8x1024xf32> -> vector<8x1024xf32>
    %c0_3 = arith.constant 0 : index
    %c0_4 = arith.constant 0 : index
    %3 = vector.load %arg3[%c0_3, %c0_4] : memref<8x1024xf32, #tpu.memory_space<vmem>>, vector<8x1024xf32>
    tpu.vector_store %arg3[%c0_3, %c0_4], %2 {strides = array<i32>} : memref<8x1024xf32, #tpu.memory_space<vmem>>, vector<8x1024xf32>,
    return
  }
  func.func @transform_0(%arg0: i32) -> (i32, i32) {
    %c0_i32 = arith.constant 0 : i32
    %c0_i32_0 = arith.constant 0 : i32
    %c0_i32_1 = arith.constant 0 : i32
    return %c0_i32, %c0_i32_0 : i32, i32
  }
  func.func @transform_1(%arg0: i32) -> (i32, i32) {
    %c0_i32 = arith.constant 0 : i32
    %c0_i32_0 = arith.constant 0 : i32
    return %c0_i32, %arg0 : i32, i32
  }
  func.func @transform_2(%arg0: i32) -> (i32, i32) {
    %c0_i32 = arith.constant 0 : i32
    %c0_i32_0 = arith.constant 0 : i32
    return %c0_i32, %arg0 : i32, i32
  }
}

module attributes {stable_mosaic.version = 11 : i64} {
  func.func @_tucker_kernel(%arg0: i32, %arg1: memref<8x128xf32, #tpu.memory_space<vmem>>, %arg2: memref<1x128xf32, #tpu.memory_space<vmem>>, %arg3: memref<1x128xf32, #tpu.memory_space<vmem>>, %arg4: memref<1x128xf32, #tpu.memory_space<vmem>>, %arg5: memref<1x128xf32, #tpu.memory_space<vmem>>, %arg6: memref<32x8x1xf32, #tpu.memory_space<vmem>>, %arg7: memref<32x128x128xbf16, #tpu.memory_space<vmem>>, %arg8: memref<8x128xbf16, #tpu.memory_space<vmem>>, %arg9: memref<8x128xf32, #tpu.memory_space<vmem>>) attributes {dimension_semantics = [#tpu.dimension_semantics<arbitrary>], iteration_bounds = array<i64: 4>, scalar_prefetch = 0 : i64, scratch_operands = 1 : i64, tpu.core_type = #tpu.core_type<tc>, window_params = [{pipeline_mode = #tpu.pipeline_mode<synchronous>, transform_indices = @transform_0, window_bounds = array<i64: 8, 128>}, {pipeline_mode = #tpu.pipeline_mode<synchronous>, transform_indices = @transform_1, window_bounds = array<i64: 1, 128>}, {pipeline_mode = #tpu.pipeline_mode<synchronous>, transform_indices = @transform_2, window_bounds = array<i64: 1, 128>}, {pipeline_mode = #tpu.pipeline_mode<synchronous>, transform_indices = @transform_3, window_bounds = array<i64: 1, 128>}, {pipeline_mode = #tpu.pipeline_mode<synchronous>, transform_indices = @transform_4, window_bounds = array<i64: 1, 128>}, {transform_indices = @transform_5, window_bounds = array<i64: 32, 8, 1>}, {transform_indices = @transform_6, window_bounds = array<i64: 32, 128, 128>}, {pipeline_mode = #tpu.pipeline_mode<synchronous>, transform_indices = @transform_7, window_bounds = array<i64: 8, 128>}]} {
    %c0_i32 = arith.constant 0 : i32
    %0 = arith.cmpi eq, %arg0, %c0_i32 : i32
    %1 = arith.extui %0 : i1 to i32
    %c0_i32_0 = arith.constant 0 : i32
    %2 = arith.cmpi ne, %1, %c0_i32_0 : i32
    scf.if %2 {
      %cst_203 = arith.constant 0.000000e+00 : f32
      %272 = vector.broadcast %cst_203 : f32 to vector<8x128xf32>
      %c0_204 = arith.constant 0 : index
      %c0_205 = arith.constant 0 : index
      %273 = vector.load %arg9[%c0_204, %c0_205] : memref<8x128xf32, #tpu.memory_space<vmem>>, vector<8x128xf32>
      tpu.vector_store %arg9[%c0_204, %c0_205], %272 {strides = array<i32>} : memref<8x128xf32, #tpu.memory_space<vmem>>, vector<8x128xf32>,
    } else {
    }
    %c0 = arith.constant 0 : index
    %c0_1 = arith.constant 0 : index
    %3 = vector.load %arg1[%c0, %c0_1] : memref<8x128xf32, #tpu.memory_space<vmem>>, vector<8x128xf32>
    %c0_2 = arith.constant 0 : index
    %c0_3 = arith.constant 0 : index
    %4 = vector.load %arg2[%c0_2, %c0_3] : memref<1x128xf32, #tpu.memory_space<vmem>>, vector<1x128xf32>
    %5 = vector.broadcast %4 : vector<1x128xf32> to vector<8x128xf32>
    %6 = arith.mulf %3, %5 : vector<8x128xf32>
    %c0_4 = arith.constant 0 : index
    %c0_5 = arith.constant 0 : index
    %7 = vector.load %arg3[%c0_4, %c0_5] : memref<1x128xf32, #tpu.memory_space<vmem>>, vector<1x128xf32>
    %8 = vector.broadcast %7 : vector<1x128xf32> to vector<8x128xf32>
    %9 = arith.addf %6, %8 : vector<8x128xf32>
    %10 = arith.truncf %9 : vector<8x128xf32> to vector<8x128xbf16>
    %c0_6 = arith.constant 0 : index
    %c0_7 = arith.constant 0 : index
    %11 = vector.load %arg9[%c0_6, %c0_7] : memref<8x128xf32, #tpu.memory_space<vmem>>, vector<8x128xf32>
    %c0_8 = arith.constant 0 : index
    %c0_9 = arith.constant 0 : index
    %c0_10 = arith.constant 0 : index
    %12 = vector.load %arg7[%c0_8, %c0_9, %c0_10] : memref<32x128x128xbf16, #tpu.memory_space<vmem>>, vector<1x128x128xbf16>
    %13 = vector.shape_cast %12 : vector<1x128x128xbf16> to vector<128x128xbf16>
    %cst = arith.constant dense<0.000000e+00> : vector<8x128xf32>
    %14 = tpu.matmul %10, %13, %cst {dimension_numbers = #tpu.dot_dimension_numbers<[1], [0], [0], [1], [0, 0, 1, 1], [], []>} : vector<8x128xbf16>, vector<128x128xbf16>, vector<8x128xf32> -> vector<8x128xf32>
    %c0_11 = arith.constant 0 : index
    %c0_12 = arith.constant 0 : index
    %c0_13 = arith.constant 0 : index
    %15 = vector.load %arg6[%c0_11, %c0_12, %c0_13] : memref<32x8x1xf32, #tpu.memory_space<vmem>>, vector<1x8x1xf32>
    %16 = vector.shape_cast %15 : vector<1x8x1xf32> to vector<8x1xf32>
    %17 = vector.broadcast %16 : vector<8x1xf32> to vector<8x128xf32>
    %18 = arith.mulf %17, %14 : vector<8x128xf32>
    %19 = arith.addf %11, %18 : vector<8x128xf32>
    %c1 = arith.constant 1 : index
    %c0_14 = arith.constant 0 : index
    %c0_15 = arith.constant 0 : index
    %20 = vector.load %arg7[%c1, %c0_14, %c0_15] : memref<32x128x128xbf16, #tpu.memory_space<vmem>>, vector<1x128x128xbf16>
    %21 = vector.shape_cast %20 : vector<1x128x128xbf16> to vector<128x128xbf16>
    %cst_16 = arith.constant dense<0.000000e+00> : vector<8x128xf32>
    %22 = tpu.matmul %10, %21, %cst_16 {dimension_numbers = #tpu.dot_dimension_numbers<[1], [0], [0], [1], [0, 0, 1, 1], [], []>} : vector<8x128xbf16>, vector<128x128xbf16>, vector<8x128xf32> -> vector<8x128xf32>
    %c1_17 = arith.constant 1 : index
    %c0_18 = arith.constant 0 : index
    %c0_19 = arith.constant 0 : index
    %23 = vector.load %arg6[%c1_17, %c0_18, %c0_19] : memref<32x8x1xf32, #tpu.memory_space<vmem>>, vector<1x8x1xf32>
    %24 = vector.shape_cast %23 : vector<1x8x1xf32> to vector<8x1xf32>
    %25 = vector.broadcast %24 : vector<8x1xf32> to vector<8x128xf32>
    %26 = arith.mulf %25, %22 : vector<8x128xf32>
    %27 = arith.addf %19, %26 : vector<8x128xf32>
    %c2 = arith.constant 2 : index
    %c0_20 = arith.constant 0 : index
    %c0_21 = arith.constant 0 : index
    %28 = vector.load %arg7[%c2, %c0_20, %c0_21] : memref<32x128x128xbf16, #tpu.memory_space<vmem>>, vector<1x128x128xbf16>
    %29 = vector.shape_cast %28 : vector<1x128x128xbf16> to vector<128x128xbf16>
    %cst_22 = arith.constant dense<0.000000e+00> : vector<8x128xf32>
    %30 = tpu.matmul %10, %29, %cst_22 {dimension_numbers = #tpu.dot_dimension_numbers<[1], [0], [0], [1], [0, 0, 1, 1], [], []>} : vector<8x128xbf16>, vector<128x128xbf16>, vector<8x128xf32> -> vector<8x128xf32>
    %c2_23 = arith.constant 2 : index
    %c0_24 = arith.constant 0 : index
    %c0_25 = arith.constant 0 : index
    %31 = vector.load %arg6[%c2_23, %c0_24, %c0_25] : memref<32x8x1xf32, #tpu.memory_space<vmem>>, vector<1x8x1xf32>
    %32 = vector.shape_cast %31 : vector<1x8x1xf32> to vector<8x1xf32>
    %33 = vector.broadcast %32 : vector<8x1xf32> to vector<8x128xf32>
    %34 = arith.mulf %33, %30 : vector<8x128xf32>
    %35 = arith.addf %27, %34 : vector<8x128xf32>
    %c3 = arith.constant 3 : index
    %c0_26 = arith.constant 0 : index
    %c0_27 = arith.constant 0 : index
    %36 = vector.load %arg7[%c3, %c0_26, %c0_27] : memref<32x128x128xbf16, #tpu.memory_space<vmem>>, vector<1x128x128xbf16>
    %37 = vector.shape_cast %36 : vector<1x128x128xbf16> to vector<128x128xbf16>
    %cst_28 = arith.constant dense<0.000000e+00> : vector<8x128xf32>
    %38 = tpu.matmul %10, %37, %cst_28 {dimension_numbers = #tpu.dot_dimension_numbers<[1], [0], [0], [1], [0, 0, 1, 1], [], []>} : vector<8x128xbf16>, vector<128x128xbf16>, vector<8x128xf32> -> vector<8x128xf32>
    %c3_29 = arith.constant 3 : index
    %c0_30 = arith.constant 0 : index
    %c0_31 = arith.constant 0 : index
    %39 = vector.load %arg6[%c3_29, %c0_30, %c0_31] : memref<32x8x1xf32, #tpu.memory_space<vmem>>, vector<1x8x1xf32>
    %40 = vector.shape_cast %39 : vector<1x8x1xf32> to vector<8x1xf32>
    %41 = vector.broadcast %40 : vector<8x1xf32> to vector<8x128xf32>
    %42 = arith.mulf %41, %38 : vector<8x128xf32>
    %43 = arith.addf %35, %42 : vector<8x128xf32>
    %c4 = arith.constant 4 : index
    %c0_32 = arith.constant 0 : index
    %c0_33 = arith.constant 0 : index
    %44 = vector.load %arg7[%c4, %c0_32, %c0_33] : memref<32x128x128xbf16, #tpu.memory_space<vmem>>, vector<1x128x128xbf16>
    %45 = vector.shape_cast %44 : vector<1x128x128xbf16> to vector<128x128xbf16>
    %cst_34 = arith.constant dense<0.000000e+00> : vector<8x128xf32>
    %46 = tpu.matmul %10, %45, %cst_34 {dimension_numbers = #tpu.dot_dimension_numbers<[1], [0], [0], [1], [0, 0, 1, 1], [], []>} : vector<8x128xbf16>, vector<128x128xbf16>, vector<8x128xf32> -> vector<8x128xf32>
    %c4_35 = arith.constant 4 : index
    %c0_36 = arith.constant 0 : index
    %c0_37 = arith.constant 0 : index
    %47 = vector.load %arg6[%c4_35, %c0_36, %c0_37] : memref<32x8x1xf32, #tpu.memory_space<vmem>>, vector<1x8x1xf32>
    %48 = vector.shape_cast %47 : vector<1x8x1xf32> to vector<8x1xf32>
    %49 = vector.broadcast %48 : vector<8x1xf32> to vector<8x128xf32>
    %50 = arith.mulf %49, %46 : vector<8x128xf32>
    %51 = arith.addf %43, %50 : vector<8x128xf32>
    %c5 = arith.constant 5 : index
    %c0_38 = arith.constant 0 : index
    %c0_39 = arith.constant 0 : index
    %52 = vector.load %arg7[%c5, %c0_38, %c0_39] : memref<32x128x128xbf16, #tpu.memory_space<vmem>>, vector<1x128x128xbf16>
    %53 = vector.shape_cast %52 : vector<1x128x128xbf16> to vector<128x128xbf16>
    %cst_40 = arith.constant dense<0.000000e+00> : vector<8x128xf32>
    %54 = tpu.matmul %10, %53, %cst_40 {dimension_numbers = #tpu.dot_dimension_numbers<[1], [0], [0], [1], [0, 0, 1, 1], [], []>} : vector<8x128xbf16>, vector<128x128xbf16>, vector<8x128xf32> -> vector<8x128xf32>
    %c5_41 = arith.constant 5 : index
    %c0_42 = arith.constant 0 : index
    %c0_43 = arith.constant 0 : index
    %55 = vector.load %arg6[%c5_41, %c0_42, %c0_43] : memref<32x8x1xf32, #tpu.memory_space<vmem>>, vector<1x8x1xf32>
    %56 = vector.shape_cast %55 : vector<1x8x1xf32> to vector<8x1xf32>
    %57 = vector.broadcast %56 : vector<8x1xf32> to vector<8x128xf32>
    %58 = arith.mulf %57, %54 : vector<8x128xf32>
    %59 = arith.addf %51, %58 : vector<8x128xf32>
    %c6 = arith.constant 6 : index
    %c0_44 = arith.constant 0 : index
    %c0_45 = arith.constant 0 : index
    %60 = vector.load %arg7[%c6, %c0_44, %c0_45] : memref<32x128x128xbf16, #tpu.memory_space<vmem>>, vector<1x128x128xbf16>
    %61 = vector.shape_cast %60 : vector<1x128x128xbf16> to vector<128x128xbf16>
    %cst_46 = arith.constant dense<0.000000e+00> : vector<8x128xf32>
    %62 = tpu.matmul %10, %61, %cst_46 {dimension_numbers = #tpu.dot_dimension_numbers<[1], [0], [0], [1], [0, 0, 1, 1], [], []>} : vector<8x128xbf16>, vector<128x128xbf16>, vector<8x128xf32> -> vector<8x128xf32>
    %c6_47 = arith.constant 6 : index
    %c0_48 = arith.constant 0 : index
    %c0_49 = arith.constant 0 : index
    %63 = vector.load %arg6[%c6_47, %c0_48, %c0_49] : memref<32x8x1xf32, #tpu.memory_space<vmem>>, vector<1x8x1xf32>
    %64 = vector.shape_cast %63 : vector<1x8x1xf32> to vector<8x1xf32>
    %65 = vector.broadcast %64 : vector<8x1xf32> to vector<8x128xf32>
    %66 = arith.mulf %65, %62 : vector<8x128xf32>
    %67 = arith.addf %59, %66 : vector<8x128xf32>
    %c7 = arith.constant 7 : index
    %c0_50 = arith.constant 0 : index
    %c0_51 = arith.constant 0 : index
    %68 = vector.load %arg7[%c7, %c0_50, %c0_51] : memref<32x128x128xbf16, #tpu.memory_space<vmem>>, vector<1x128x128xbf16>
    %69 = vector.shape_cast %68 : vector<1x128x128xbf16> to vector<128x128xbf16>
    %cst_52 = arith.constant dense<0.000000e+00> : vector<8x128xf32>
    %70 = tpu.matmul %10, %69, %cst_52 {dimension_numbers = #tpu.dot_dimension_numbers<[1], [0], [0], [1], [0, 0, 1, 1], [], []>} : vector<8x128xbf16>, vector<128x128xbf16>, vector<8x128xf32> -> vector<8x128xf32>
    %c7_53 = arith.constant 7 : index
    %c0_54 = arith.constant 0 : index
    %c0_55 = arith.constant 0 : index
    %71 = vector.load %arg6[%c7_53, %c0_54, %c0_55] : memref<32x8x1xf32, #tpu.memory_space<vmem>>, vector<1x8x1xf32>
    %72 = vector.shape_cast %71 : vector<1x8x1xf32> to vector<8x1xf32>
    %73 = vector.broadcast %72 : vector<8x1xf32> to vector<8x128xf32>
    %74 = arith.mulf %73, %70 : vector<8x128xf32>
    %75 = arith.addf %67, %74 : vector<8x128xf32>
    %c8 = arith.constant 8 : index
    %c0_56 = arith.constant 0 : index
    %c0_57 = arith.constant 0 : index
    %76 = vector.load %arg7[%c8, %c0_56, %c0_57] : memref<32x128x128xbf16, #tpu.memory_space<vmem>>, vector<1x128x128xbf16>
    %77 = vector.shape_cast %76 : vector<1x128x128xbf16> to vector<128x128xbf16>
    %cst_58 = arith.constant dense<0.000000e+00> : vector<8x128xf32>
    %78 = tpu.matmul %10, %77, %cst_58 {dimension_numbers = #tpu.dot_dimension_numbers<[1], [0], [0], [1], [0, 0, 1, 1], [], []>} : vector<8x128xbf16>, vector<128x128xbf16>, vector<8x128xf32> -> vector<8x128xf32>
    %c8_59 = arith.constant 8 : index
    %c0_60 = arith.constant 0 : index
    %c0_61 = arith.constant 0 : index
    %79 = vector.load %arg6[%c8_59, %c0_60, %c0_61] : memref<32x8x1xf32, #tpu.memory_space<vmem>>, vector<1x8x1xf32>
    %80 = vector.shape_cast %79 : vector<1x8x1xf32> to vector<8x1xf32>
    %81 = vector.broadcast %80 : vector<8x1xf32> to vector<8x128xf32>
    %82 = arith.mulf %81, %78 : vector<8x128xf32>
    %83 = arith.addf %75, %82 : vector<8x128xf32>
    %c9 = arith.constant 9 : index
    %c0_62 = arith.constant 0 : index
    %c0_63 = arith.constant 0 : index
    %84 = vector.load %arg7[%c9, %c0_62, %c0_63] : memref<32x128x128xbf16, #tpu.memory_space<vmem>>, vector<1x128x128xbf16>
    %85 = vector.shape_cast %84 : vector<1x128x128xbf16> to vector<128x128xbf16>
    %cst_64 = arith.constant dense<0.000000e+00> : vector<8x128xf32>
    %86 = tpu.matmul %10, %85, %cst_64 {dimension_numbers = #tpu.dot_dimension_numbers<[1], [0], [0], [1], [0, 0, 1, 1], [], []>} : vector<8x128xbf16>, vector<128x128xbf16>, vector<8x128xf32> -> vector<8x128xf32>
    %c9_65 = arith.constant 9 : index
    %c0_66 = arith.constant 0 : index
    %c0_67 = arith.constant 0 : index
    %87 = vector.load %arg6[%c9_65, %c0_66, %c0_67] : memref<32x8x1xf32, #tpu.memory_space<vmem>>, vector<1x8x1xf32>
    %88 = vector.shape_cast %87 : vector<1x8x1xf32> to vector<8x1xf32>
    %89 = vector.broadcast %88 : vector<8x1xf32> to vector<8x128xf32>
    %90 = arith.mulf %89, %86 : vector<8x128xf32>
    %91 = arith.addf %83, %90 : vector<8x128xf32>
    %c10 = arith.constant 10 : index
    %c0_68 = arith.constant 0 : index
    %c0_69 = arith.constant 0 : index
    %92 = vector.load %arg7[%c10, %c0_68, %c0_69] : memref<32x128x128xbf16, #tpu.memory_space<vmem>>, vector<1x128x128xbf16>
    %93 = vector.shape_cast %92 : vector<1x128x128xbf16> to vector<128x128xbf16>
    %cst_70 = arith.constant dense<0.000000e+00> : vector<8x128xf32>
    %94 = tpu.matmul %10, %93, %cst_70 {dimension_numbers = #tpu.dot_dimension_numbers<[1], [0], [0], [1], [0, 0, 1, 1], [], []>} : vector<8x128xbf16>, vector<128x128xbf16>, vector<8x128xf32> -> vector<8x128xf32>
    %c10_71 = arith.constant 10 : index
    %c0_72 = arith.constant 0 : index
    %c0_73 = arith.constant 0 : index
    %95 = vector.load %arg6[%c10_71, %c0_72, %c0_73] : memref<32x8x1xf32, #tpu.memory_space<vmem>>, vector<1x8x1xf32>
    %96 = vector.shape_cast %95 : vector<1x8x1xf32> to vector<8x1xf32>
    %97 = vector.broadcast %96 : vector<8x1xf32> to vector<8x128xf32>
    %98 = arith.mulf %97, %94 : vector<8x128xf32>
    %99 = arith.addf %91, %98 : vector<8x128xf32>
    %c11 = arith.constant 11 : index
    %c0_74 = arith.constant 0 : index
    %c0_75 = arith.constant 0 : index
    %100 = vector.load %arg7[%c11, %c0_74, %c0_75] : memref<32x128x128xbf16, #tpu.memory_space<vmem>>, vector<1x128x128xbf16>
    %101 = vector.shape_cast %100 : vector<1x128x128xbf16> to vector<128x128xbf16>
    %cst_76 = arith.constant dense<0.000000e+00> : vector<8x128xf32>
    %102 = tpu.matmul %10, %101, %cst_76 {dimension_numbers = #tpu.dot_dimension_numbers<[1], [0], [0], [1], [0, 0, 1, 1], [], []>} : vector<8x128xbf16>, vector<128x128xbf16>, vector<8x128xf32> -> vector<8x128xf32>
    %c11_77 = arith.constant 11 : index
    %c0_78 = arith.constant 0 : index
    %c0_79 = arith.constant 0 : index
    %103 = vector.load %arg6[%c11_77, %c0_78, %c0_79] : memref<32x8x1xf32, #tpu.memory_space<vmem>>, vector<1x8x1xf32>
    %104 = vector.shape_cast %103 : vector<1x8x1xf32> to vector<8x1xf32>
    %105 = vector.broadcast %104 : vector<8x1xf32> to vector<8x128xf32>
    %106 = arith.mulf %105, %102 : vector<8x128xf32>
    %107 = arith.addf %99, %106 : vector<8x128xf32>
    %c12 = arith.constant 12 : index
    %c0_80 = arith.constant 0 : index
    %c0_81 = arith.constant 0 : index
    %108 = vector.load %arg7[%c12, %c0_80, %c0_81] : memref<32x128x128xbf16, #tpu.memory_space<vmem>>, vector<1x128x128xbf16>
    %109 = vector.shape_cast %108 : vector<1x128x128xbf16> to vector<128x128xbf16>
    %cst_82 = arith.constant dense<0.000000e+00> : vector<8x128xf32>
    %110 = tpu.matmul %10, %109, %cst_82 {dimension_numbers = #tpu.dot_dimension_numbers<[1], [0], [0], [1], [0, 0, 1, 1], [], []>} : vector<8x128xbf16>, vector<128x128xbf16>, vector<8x128xf32> -> vector<8x128xf32>
    %c12_83 = arith.constant 12 : index
    %c0_84 = arith.constant 0 : index
    %c0_85 = arith.constant 0 : index
    %111 = vector.load %arg6[%c12_83, %c0_84, %c0_85] : memref<32x8x1xf32, #tpu.memory_space<vmem>>, vector<1x8x1xf32>
    %112 = vector.shape_cast %111 : vector<1x8x1xf32> to vector<8x1xf32>
    %113 = vector.broadcast %112 : vector<8x1xf32> to vector<8x128xf32>
    %114 = arith.mulf %113, %110 : vector<8x128xf32>
    %115 = arith.addf %107, %114 : vector<8x128xf32>
    %c13 = arith.constant 13 : index
    %c0_86 = arith.constant 0 : index
    %c0_87 = arith.constant 0 : index
    %116 = vector.load %arg7[%c13, %c0_86, %c0_87] : memref<32x128x128xbf16, #tpu.memory_space<vmem>>, vector<1x128x128xbf16>
    %117 = vector.shape_cast %116 : vector<1x128x128xbf16> to vector<128x128xbf16>
    %cst_88 = arith.constant dense<0.000000e+00> : vector<8x128xf32>
    %118 = tpu.matmul %10, %117, %cst_88 {dimension_numbers = #tpu.dot_dimension_numbers<[1], [0], [0], [1], [0, 0, 1, 1], [], []>} : vector<8x128xbf16>, vector<128x128xbf16>, vector<8x128xf32> -> vector<8x128xf32>
    %c13_89 = arith.constant 13 : index
    %c0_90 = arith.constant 0 : index
    %c0_91 = arith.constant 0 : index
    %119 = vector.load %arg6[%c13_89, %c0_90, %c0_91] : memref<32x8x1xf32, #tpu.memory_space<vmem>>, vector<1x8x1xf32>
    %120 = vector.shape_cast %119 : vector<1x8x1xf32> to vector<8x1xf32>
    %121 = vector.broadcast %120 : vector<8x1xf32> to vector<8x128xf32>
    %122 = arith.mulf %121, %118 : vector<8x128xf32>
    %123 = arith.addf %115, %122 : vector<8x128xf32>
    %c14 = arith.constant 14 : index
    %c0_92 = arith.constant 0 : index
    %c0_93 = arith.constant 0 : index
    %124 = vector.load %arg7[%c14, %c0_92, %c0_93] : memref<32x128x128xbf16, #tpu.memory_space<vmem>>, vector<1x128x128xbf16>
    %125 = vector.shape_cast %124 : vector<1x128x128xbf16> to vector<128x128xbf16>
    %cst_94 = arith.constant dense<0.000000e+00> : vector<8x128xf32>
    %126 = tpu.matmul %10, %125, %cst_94 {dimension_numbers = #tpu.dot_dimension_numbers<[1], [0], [0], [1], [0, 0, 1, 1], [], []>} : vector<8x128xbf16>, vector<128x128xbf16>, vector<8x128xf32> -> vector<8x128xf32>
    %c14_95 = arith.constant 14 : index
    %c0_96 = arith.constant 0 : index
    %c0_97 = arith.constant 0 : index
    %127 = vector.load %arg6[%c14_95, %c0_96, %c0_97] : memref<32x8x1xf32, #tpu.memory_space<vmem>>, vector<1x8x1xf32>
    %128 = vector.shape_cast %127 : vector<1x8x1xf32> to vector<8x1xf32>
    %129 = vector.broadcast %128 : vector<8x1xf32> to vector<8x128xf32>
    %130 = arith.mulf %129, %126 : vector<8x128xf32>
    %131 = arith.addf %123, %130 : vector<8x128xf32>
    %c15 = arith.constant 15 : index
    %c0_98 = arith.constant 0 : index
    %c0_99 = arith.constant 0 : index
    %132 = vector.load %arg7[%c15, %c0_98, %c0_99] : memref<32x128x128xbf16, #tpu.memory_space<vmem>>, vector<1x128x128xbf16>
    %133 = vector.shape_cast %132 : vector<1x128x128xbf16> to vector<128x128xbf16>
    %cst_100 = arith.constant dense<0.000000e+00> : vector<8x128xf32>
    %134 = tpu.matmul %10, %133, %cst_100 {dimension_numbers = #tpu.dot_dimension_numbers<[1], [0], [0], [1], [0, 0, 1, 1], [], []>} : vector<8x128xbf16>, vector<128x128xbf16>, vector<8x128xf32> -> vector<8x128xf32>
    %c15_101 = arith.constant 15 : index
    %c0_102 = arith.constant 0 : index
    %c0_103 = arith.constant 0 : index
    %135 = vector.load %arg6[%c15_101, %c0_102, %c0_103] : memref<32x8x1xf32, #tpu.memory_space<vmem>>, vector<1x8x1xf32>
    %136 = vector.shape_cast %135 : vector<1x8x1xf32> to vector<8x1xf32>
    %137 = vector.broadcast %136 : vector<8x1xf32> to vector<8x128xf32>
    %138 = arith.mulf %137, %134 : vector<8x128xf32>
    %139 = arith.addf %131, %138 : vector<8x128xf32>
    %c16 = arith.constant 16 : index
    %c0_104 = arith.constant 0 : index
    %c0_105 = arith.constant 0 : index
    %140 = vector.load %arg7[%c16, %c0_104, %c0_105] : memref<32x128x128xbf16, #tpu.memory_space<vmem>>, vector<1x128x128xbf16>
    %141 = vector.shape_cast %140 : vector<1x128x128xbf16> to vector<128x128xbf16>
    %cst_106 = arith.constant dense<0.000000e+00> : vector<8x128xf32>
    %142 = tpu.matmul %10, %141, %cst_106 {dimension_numbers = #tpu.dot_dimension_numbers<[1], [0], [0], [1], [0, 0, 1, 1], [], []>} : vector<8x128xbf16>, vector<128x128xbf16>, vector<8x128xf32> -> vector<8x128xf32>
    %c16_107 = arith.constant 16 : index
    %c0_108 = arith.constant 0 : index
    %c0_109 = arith.constant 0 : index
    %143 = vector.load %arg6[%c16_107, %c0_108, %c0_109] : memref<32x8x1xf32, #tpu.memory_space<vmem>>, vector<1x8x1xf32>
    %144 = vector.shape_cast %143 : vector<1x8x1xf32> to vector<8x1xf32>
    %145 = vector.broadcast %144 : vector<8x1xf32> to vector<8x128xf32>
    %146 = arith.mulf %145, %142 : vector<8x128xf32>
    %147 = arith.addf %139, %146 : vector<8x128xf32>
    %c17 = arith.constant 17 : index
    %c0_110 = arith.constant 0 : index
    %c0_111 = arith.constant 0 : index
    %148 = vector.load %arg7[%c17, %c0_110, %c0_111] : memref<32x128x128xbf16, #tpu.memory_space<vmem>>, vector<1x128x128xbf16>
    %149 = vector.shape_cast %148 : vector<1x128x128xbf16> to vector<128x128xbf16>
    %cst_112 = arith.constant dense<0.000000e+00> : vector<8x128xf32>
    %150 = tpu.matmul %10, %149, %cst_112 {dimension_numbers = #tpu.dot_dimension_numbers<[1], [0], [0], [1], [0, 0, 1, 1], [], []>} : vector<8x128xbf16>, vector<128x128xbf16>, vector<8x128xf32> -> vector<8x128xf32>
    %c17_113 = arith.constant 17 : index
    %c0_114 = arith.constant 0 : index
    %c0_115 = arith.constant 0 : index
    %151 = vector.load %arg6[%c17_113, %c0_114, %c0_115] : memref<32x8x1xf32, #tpu.memory_space<vmem>>, vector<1x8x1xf32>
    %152 = vector.shape_cast %151 : vector<1x8x1xf32> to vector<8x1xf32>
    %153 = vector.broadcast %152 : vector<8x1xf32> to vector<8x128xf32>
    %154 = arith.mulf %153, %150 : vector<8x128xf32>
    %155 = arith.addf %147, %154 : vector<8x128xf32>
    %c18 = arith.constant 18 : index
    %c0_116 = arith.constant 0 : index
    %c0_117 = arith.constant 0 : index
    %156 = vector.load %arg7[%c18, %c0_116, %c0_117] : memref<32x128x128xbf16, #tpu.memory_space<vmem>>, vector<1x128x128xbf16>
    %157 = vector.shape_cast %156 : vector<1x128x128xbf16> to vector<128x128xbf16>
    %cst_118 = arith.constant dense<0.000000e+00> : vector<8x128xf32>
    %158 = tpu.matmul %10, %157, %cst_118 {dimension_numbers = #tpu.dot_dimension_numbers<[1], [0], [0], [1], [0, 0, 1, 1], [], []>} : vector<8x128xbf16>, vector<128x128xbf16>, vector<8x128xf32> -> vector<8x128xf32>
    %c18_119 = arith.constant 18 : index
    %c0_120 = arith.constant 0 : index
    %c0_121 = arith.constant 0 : index
    %159 = vector.load %arg6[%c18_119, %c0_120, %c0_121] : memref<32x8x1xf32, #tpu.memory_space<vmem>>, vector<1x8x1xf32>
    %160 = vector.shape_cast %159 : vector<1x8x1xf32> to vector<8x1xf32>
    %161 = vector.broadcast %160 : vector<8x1xf32> to vector<8x128xf32>
    %162 = arith.mulf %161, %158 : vector<8x128xf32>
    %163 = arith.addf %155, %162 : vector<8x128xf32>
    %c19 = arith.constant 19 : index
    %c0_122 = arith.constant 0 : index
    %c0_123 = arith.constant 0 : index
    %164 = vector.load %arg7[%c19, %c0_122, %c0_123] : memref<32x128x128xbf16, #tpu.memory_space<vmem>>, vector<1x128x128xbf16>
    %165 = vector.shape_cast %164 : vector<1x128x128xbf16> to vector<128x128xbf16>
    %cst_124 = arith.constant dense<0.000000e+00> : vector<8x128xf32>
    %166 = tpu.matmul %10, %165, %cst_124 {dimension_numbers = #tpu.dot_dimension_numbers<[1], [0], [0], [1], [0, 0, 1, 1], [], []>} : vector<8x128xbf16>, vector<128x128xbf16>, vector<8x128xf32> -> vector<8x128xf32>
    %c19_125 = arith.constant 19 : index
    %c0_126 = arith.constant 0 : index
    %c0_127 = arith.constant 0 : index
    %167 = vector.load %arg6[%c19_125, %c0_126, %c0_127] : memref<32x8x1xf32, #tpu.memory_space<vmem>>, vector<1x8x1xf32>
    %168 = vector.shape_cast %167 : vector<1x8x1xf32> to vector<8x1xf32>
    %169 = vector.broadcast %168 : vector<8x1xf32> to vector<8x128xf32>
    %170 = arith.mulf %169, %166 : vector<8x128xf32>
    %171 = arith.addf %163, %170 : vector<8x128xf32>
    %c20 = arith.constant 20 : index
    %c0_128 = arith.constant 0 : index
    %c0_129 = arith.constant 0 : index
    %172 = vector.load %arg7[%c20, %c0_128, %c0_129] : memref<32x128x128xbf16, #tpu.memory_space<vmem>>, vector<1x128x128xbf16>
    %173 = vector.shape_cast %172 : vector<1x128x128xbf16> to vector<128x128xbf16>
    %cst_130 = arith.constant dense<0.000000e+00> : vector<8x128xf32>
    %174 = tpu.matmul %10, %173, %cst_130 {dimension_numbers = #tpu.dot_dimension_numbers<[1], [0], [0], [1], [0, 0, 1, 1], [], []>} : vector<8x128xbf16>, vector<128x128xbf16>, vector<8x128xf32> -> vector<8x128xf32>
    %c20_131 = arith.constant 20 : index
    %c0_132 = arith.constant 0 : index
    %c0_133 = arith.constant 0 : index
    %175 = vector.load %arg6[%c20_131, %c0_132, %c0_133] : memref<32x8x1xf32, #tpu.memory_space<vmem>>, vector<1x8x1xf32>
    %176 = vector.shape_cast %175 : vector<1x8x1xf32> to vector<8x1xf32>
    %177 = vector.broadcast %176 : vector<8x1xf32> to vector<8x128xf32>
    %178 = arith.mulf %177, %174 : vector<8x128xf32>
    %179 = arith.addf %171, %178 : vector<8x128xf32>
    %c21 = arith.constant 21 : index
    %c0_134 = arith.constant 0 : index
    %c0_135 = arith.constant 0 : index
    %180 = vector.load %arg7[%c21, %c0_134, %c0_135] : memref<32x128x128xbf16, #tpu.memory_space<vmem>>, vector<1x128x128xbf16>
    %181 = vector.shape_cast %180 : vector<1x128x128xbf16> to vector<128x128xbf16>
    %cst_136 = arith.constant dense<0.000000e+00> : vector<8x128xf32>
    %182 = tpu.matmul %10, %181, %cst_136 {dimension_numbers = #tpu.dot_dimension_numbers<[1], [0], [0], [1], [0, 0, 1, 1], [], []>} : vector<8x128xbf16>, vector<128x128xbf16>, vector<8x128xf32> -> vector<8x128xf32>
    %c21_137 = arith.constant 21 : index
    %c0_138 = arith.constant 0 : index
    %c0_139 = arith.constant 0 : index
    %183 = vector.load %arg6[%c21_137, %c0_138, %c0_139] : memref<32x8x1xf32, #tpu.memory_space<vmem>>, vector<1x8x1xf32>
    %184 = vector.shape_cast %183 : vector<1x8x1xf32> to vector<8x1xf32>
    %185 = vector.broadcast %184 : vector<8x1xf32> to vector<8x128xf32>
    %186 = arith.mulf %185, %182 : vector<8x128xf32>
    %187 = arith.addf %179, %186 : vector<8x128xf32>
    %c22 = arith.constant 22 : index
    %c0_140 = arith.constant 0 : index
    %c0_141 = arith.constant 0 : index
    %188 = vector.load %arg7[%c22, %c0_140, %c0_141] : memref<32x128x128xbf16, #tpu.memory_space<vmem>>, vector<1x128x128xbf16>
    %189 = vector.shape_cast %188 : vector<1x128x128xbf16> to vector<128x128xbf16>
    %cst_142 = arith.constant dense<0.000000e+00> : vector<8x128xf32>
    %190 = tpu.matmul %10, %189, %cst_142 {dimension_numbers = #tpu.dot_dimension_numbers<[1], [0], [0], [1], [0, 0, 1, 1], [], []>} : vector<8x128xbf16>, vector<128x128xbf16>, vector<8x128xf32> -> vector<8x128xf32>
    %c22_143 = arith.constant 22 : index
    %c0_144 = arith.constant 0 : index
    %c0_145 = arith.constant 0 : index
    %191 = vector.load %arg6[%c22_143, %c0_144, %c0_145] : memref<32x8x1xf32, #tpu.memory_space<vmem>>, vector<1x8x1xf32>
    %192 = vector.shape_cast %191 : vector<1x8x1xf32> to vector<8x1xf32>
    %193 = vector.broadcast %192 : vector<8x1xf32> to vector<8x128xf32>
    %194 = arith.mulf %193, %190 : vector<8x128xf32>
    %195 = arith.addf %187, %194 : vector<8x128xf32>
    %c23 = arith.constant 23 : index
    %c0_146 = arith.constant 0 : index
    %c0_147 = arith.constant 0 : index
    %196 = vector.load %arg7[%c23, %c0_146, %c0_147] : memref<32x128x128xbf16, #tpu.memory_space<vmem>>, vector<1x128x128xbf16>
    %197 = vector.shape_cast %196 : vector<1x128x128xbf16> to vector<128x128xbf16>
    %cst_148 = arith.constant dense<0.000000e+00> : vector<8x128xf32>
    %198 = tpu.matmul %10, %197, %cst_148 {dimension_numbers = #tpu.dot_dimension_numbers<[1], [0], [0], [1], [0, 0, 1, 1], [], []>} : vector<8x128xbf16>, vector<128x128xbf16>, vector<8x128xf32> -> vector<8x128xf32>
    %c23_149 = arith.constant 23 : index
    %c0_150 = arith.constant 0 : index
    %c0_151 = arith.constant 0 : index
    %199 = vector.load %arg6[%c23_149, %c0_150, %c0_151] : memref<32x8x1xf32, #tpu.memory_space<vmem>>, vector<1x8x1xf32>
    %200 = vector.shape_cast %199 : vector<1x8x1xf32> to vector<8x1xf32>
    %201 = vector.broadcast %200 : vector<8x1xf32> to vector<8x128xf32>
    %202 = arith.mulf %201, %198 : vector<8x128xf32>
    %203 = arith.addf %195, %202 : vector<8x128xf32>
    %c24 = arith.constant 24 : index
    %c0_152 = arith.constant 0 : index
    %c0_153 = arith.constant 0 : index
    %204 = vector.load %arg7[%c24, %c0_152, %c0_153] : memref<32x128x128xbf16, #tpu.memory_space<vmem>>, vector<1x128x128xbf16>
    %205 = vector.shape_cast %204 : vector<1x128x128xbf16> to vector<128x128xbf16>
    %cst_154 = arith.constant dense<0.000000e+00> : vector<8x128xf32>
    %206 = tpu.matmul %10, %205, %cst_154 {dimension_numbers = #tpu.dot_dimension_numbers<[1], [0], [0], [1], [0, 0, 1, 1], [], []>} : vector<8x128xbf16>, vector<128x128xbf16>, vector<8x128xf32> -> vector<8x128xf32>
    %c24_155 = arith.constant 24 : index
    %c0_156 = arith.constant 0 : index
    %c0_157 = arith.constant 0 : index
    %207 = vector.load %arg6[%c24_155, %c0_156, %c0_157] : memref<32x8x1xf32, #tpu.memory_space<vmem>>, vector<1x8x1xf32>
    %208 = vector.shape_cast %207 : vector<1x8x1xf32> to vector<8x1xf32>
    %209 = vector.broadcast %208 : vector<8x1xf32> to vector<8x128xf32>
    %210 = arith.mulf %209, %206 : vector<8x128xf32>
    %211 = arith.addf %203, %210 : vector<8x128xf32>
    %c25 = arith.constant 25 : index
    %c0_158 = arith.constant 0 : index
    %c0_159 = arith.constant 0 : index
    %212 = vector.load %arg7[%c25, %c0_158, %c0_159] : memref<32x128x128xbf16, #tpu.memory_space<vmem>>, vector<1x128x128xbf16>
    %213 = vector.shape_cast %212 : vector<1x128x128xbf16> to vector<128x128xbf16>
    %cst_160 = arith.constant dense<0.000000e+00> : vector<8x128xf32>
    %214 = tpu.matmul %10, %213, %cst_160 {dimension_numbers = #tpu.dot_dimension_numbers<[1], [0], [0], [1], [0, 0, 1, 1], [], []>} : vector<8x128xbf16>, vector<128x128xbf16>, vector<8x128xf32> -> vector<8x128xf32>
    %c25_161 = arith.constant 25 : index
    %c0_162 = arith.constant 0 : index
    %c0_163 = arith.constant 0 : index
    %215 = vector.load %arg6[%c25_161, %c0_162, %c0_163] : memref<32x8x1xf32, #tpu.memory_space<vmem>>, vector<1x8x1xf32>
    %216 = vector.shape_cast %215 : vector<1x8x1xf32> to vector<8x1xf32>
    %217 = vector.broadcast %216 : vector<8x1xf32> to vector<8x128xf32>
    %218 = arith.mulf %217, %214 : vector<8x128xf32>
    %219 = arith.addf %211, %218 : vector<8x128xf32>
    %c26 = arith.constant 26 : index
    %c0_164 = arith.constant 0 : index
    %c0_165 = arith.constant 0 : index
    %220 = vector.load %arg7[%c26, %c0_164, %c0_165] : memref<32x128x128xbf16, #tpu.memory_space<vmem>>, vector<1x128x128xbf16>
    %221 = vector.shape_cast %220 : vector<1x128x128xbf16> to vector<128x128xbf16>
    %cst_166 = arith.constant dense<0.000000e+00> : vector<8x128xf32>
    %222 = tpu.matmul %10, %221, %cst_166 {dimension_numbers = #tpu.dot_dimension_numbers<[1], [0], [0], [1], [0, 0, 1, 1], [], []>} : vector<8x128xbf16>, vector<128x128xbf16>, vector<8x128xf32> -> vector<8x128xf32>
    %c26_167 = arith.constant 26 : index
    %c0_168 = arith.constant 0 : index
    %c0_169 = arith.constant 0 : index
    %223 = vector.load %arg6[%c26_167, %c0_168, %c0_169] : memref<32x8x1xf32, #tpu.memory_space<vmem>>, vector<1x8x1xf32>
    %224 = vector.shape_cast %223 : vector<1x8x1xf32> to vector<8x1xf32>
    %225 = vector.broadcast %224 : vector<8x1xf32> to vector<8x128xf32>
    %226 = arith.mulf %225, %222 : vector<8x128xf32>
    %227 = arith.addf %219, %226 : vector<8x128xf32>
    %c27 = arith.constant 27 : index
    %c0_170 = arith.constant 0 : index
    %c0_171 = arith.constant 0 : index
    %228 = vector.load %arg7[%c27, %c0_170, %c0_171] : memref<32x128x128xbf16, #tpu.memory_space<vmem>>, vector<1x128x128xbf16>
    %229 = vector.shape_cast %228 : vector<1x128x128xbf16> to vector<128x128xbf16>
    %cst_172 = arith.constant dense<0.000000e+00> : vector<8x128xf32>
    %230 = tpu.matmul %10, %229, %cst_172 {dimension_numbers = #tpu.dot_dimension_numbers<[1], [0], [0], [1], [0, 0, 1, 1], [], []>} : vector<8x128xbf16>, vector<128x128xbf16>, vector<8x128xf32> -> vector<8x128xf32>
    %c27_173 = arith.constant 27 : index
    %c0_174 = arith.constant 0 : index
    %c0_175 = arith.constant 0 : index
    %231 = vector.load %arg6[%c27_173, %c0_174, %c0_175] : memref<32x8x1xf32, #tpu.memory_space<vmem>>, vector<1x8x1xf32>
    %232 = vector.shape_cast %231 : vector<1x8x1xf32> to vector<8x1xf32>
    %233 = vector.broadcast %232 : vector<8x1xf32> to vector<8x128xf32>
    %234 = arith.mulf %233, %230 : vector<8x128xf32>
    %235 = arith.addf %227, %234 : vector<8x128xf32>
    %c28 = arith.constant 28 : index
    %c0_176 = arith.constant 0 : index
    %c0_177 = arith.constant 0 : index
    %236 = vector.load %arg7[%c28, %c0_176, %c0_177] : memref<32x128x128xbf16, #tpu.memory_space<vmem>>, vector<1x128x128xbf16>
    %237 = vector.shape_cast %236 : vector<1x128x128xbf16> to vector<128x128xbf16>
    %cst_178 = arith.constant dense<0.000000e+00> : vector<8x128xf32>
    %238 = tpu.matmul %10, %237, %cst_178 {dimension_numbers = #tpu.dot_dimension_numbers<[1], [0], [0], [1], [0, 0, 1, 1], [], []>} : vector<8x128xbf16>, vector<128x128xbf16>, vector<8x128xf32> -> vector<8x128xf32>
    %c28_179 = arith.constant 28 : index
    %c0_180 = arith.constant 0 : index
    %c0_181 = arith.constant 0 : index
    %239 = vector.load %arg6[%c28_179, %c0_180, %c0_181] : memref<32x8x1xf32, #tpu.memory_space<vmem>>, vector<1x8x1xf32>
    %240 = vector.shape_cast %239 : vector<1x8x1xf32> to vector<8x1xf32>
    %241 = vector.broadcast %240 : vector<8x1xf32> to vector<8x128xf32>
    %242 = arith.mulf %241, %238 : vector<8x128xf32>
    %243 = arith.addf %235, %242 : vector<8x128xf32>
    %c29 = arith.constant 29 : index
    %c0_182 = arith.constant 0 : index
    %c0_183 = arith.constant 0 : index
    %244 = vector.load %arg7[%c29, %c0_182, %c0_183] : memref<32x128x128xbf16, #tpu.memory_space<vmem>>, vector<1x128x128xbf16>
    %245 = vector.shape_cast %244 : vector<1x128x128xbf16> to vector<128x128xbf16>
    %cst_184 = arith.constant dense<0.000000e+00> : vector<8x128xf32>
    %246 = tpu.matmul %10, %245, %cst_184 {dimension_numbers = #tpu.dot_dimension_numbers<[1], [0], [0], [1], [0, 0, 1, 1], [], []>} : vector<8x128xbf16>, vector<128x128xbf16>, vector<8x128xf32> -> vector<8x128xf32>
    %c29_185 = arith.constant 29 : index
    %c0_186 = arith.constant 0 : index
    %c0_187 = arith.constant 0 : index
    %247 = vector.load %arg6[%c29_185, %c0_186, %c0_187] : memref<32x8x1xf32, #tpu.memory_space<vmem>>, vector<1x8x1xf32>
    %248 = vector.shape_cast %247 : vector<1x8x1xf32> to vector<8x1xf32>
    %249 = vector.broadcast %248 : vector<8x1xf32> to vector<8x128xf32>
    %250 = arith.mulf %249, %246 : vector<8x128xf32>
    %251 = arith.addf %243, %250 : vector<8x128xf32>
    %c30 = arith.constant 30 : index
    %c0_188 = arith.constant 0 : index
    %c0_189 = arith.constant 0 : index
    %252 = vector.load %arg7[%c30, %c0_188, %c0_189] : memref<32x128x128xbf16, #tpu.memory_space<vmem>>, vector<1x128x128xbf16>
    %253 = vector.shape_cast %252 : vector<1x128x128xbf16> to vector<128x128xbf16>
    %cst_190 = arith.constant dense<0.000000e+00> : vector<8x128xf32>
    %254 = tpu.matmul %10, %253, %cst_190 {dimension_numbers = #tpu.dot_dimension_numbers<[1], [0], [0], [1], [0, 0, 1, 1], [], []>} : vector<8x128xbf16>, vector<128x128xbf16>, vector<8x128xf32> -> vector<8x128xf32>
    %c30_191 = arith.constant 30 : index
    %c0_192 = arith.constant 0 : index
    %c0_193 = arith.constant 0 : index
    %255 = vector.load %arg6[%c30_191, %c0_192, %c0_193] : memref<32x8x1xf32, #tpu.memory_space<vmem>>, vector<1x8x1xf32>
    %256 = vector.shape_cast %255 : vector<1x8x1xf32> to vector<8x1xf32>
    %257 = vector.broadcast %256 : vector<8x1xf32> to vector<8x128xf32>
    %258 = arith.mulf %257, %254 : vector<8x128xf32>
    %259 = arith.addf %251, %258 : vector<8x128xf32>
    %c31 = arith.constant 31 : index
    %c0_194 = arith.constant 0 : index
    %c0_195 = arith.constant 0 : index
    %260 = vector.load %arg7[%c31, %c0_194, %c0_195] : memref<32x128x128xbf16, #tpu.memory_space<vmem>>, vector<1x128x128xbf16>
    %261 = vector.shape_cast %260 : vector<1x128x128xbf16> to vector<128x128xbf16>
    %cst_196 = arith.constant dense<0.000000e+00> : vector<8x128xf32>
    %262 = tpu.matmul %10, %261, %cst_196 {dimension_numbers = #tpu.dot_dimension_numbers<[1], [0], [0], [1], [0, 0, 1, 1], [], []>} : vector<8x128xbf16>, vector<128x128xbf16>, vector<8x128xf32> -> vector<8x128xf32>
    %c31_197 = arith.constant 31 : index
    %c0_198 = arith.constant 0 : index
    %c0_199 = arith.constant 0 : index
    %263 = vector.load %arg6[%c31_197, %c0_198, %c0_199] : memref<32x8x1xf32, #tpu.memory_space<vmem>>, vector<1x8x1xf32>
    %264 = vector.shape_cast %263 : vector<1x8x1xf32> to vector<8x1xf32>
    %265 = vector.broadcast %264 : vector<8x1xf32> to vector<8x128xf32>
    %266 = arith.mulf %265, %262 : vector<8x128xf32>
    %267 = arith.addf %259, %266 : vector<8x128xf32>
    %c0_200 = arith.constant 0 : index
    %c0_201 = arith.constant 0 : index
    %268 = vector.load %arg9[%c0_200, %c0_201] : memref<8x128xf32, #tpu.memory_space<vmem>>, vector<8x128xf32>
    tpu.vector_store %arg9[%c0_200, %c0_201], %267 {strides = array<i32>} : memref<8x128xf32, #tpu.memory_space<vmem>>, vector<8x128xf32>,
    %c3_i32 = arith.constant 3 : i32
    %269 = arith.cmpi eq, %arg0, %c3_i32 : i32
    %270 = arith.extui %269 : i1 to i32
    %c0_i32_202 = arith.constant 0 : i32
    %271 = arith.cmpi ne, %270, %c0_i32_202 : i32
    scf.if %271 {
      %c0_203 = arith.constant 0 : index
      %c0_204 = arith.constant 0 : index
      %272 = vector.load %arg9[%c0_203, %c0_204] : memref<8x128xf32, #tpu.memory_space<vmem>>, vector<8x128xf32>
      %c0_205 = arith.constant 0 : index
      %c0_206 = arith.constant 0 : index
      %273 = vector.load %arg4[%c0_205, %c0_206] : memref<1x128xf32, #tpu.memory_space<vmem>>, vector<1x128xf32>
      %274 = vector.broadcast %273 : vector<1x128xf32> to vector<8x128xf32>
      %275 = arith.mulf %272, %274 : vector<8x128xf32>
      %c0_207 = arith.constant 0 : index
      %c0_208 = arith.constant 0 : index
      %276 = vector.load %arg5[%c0_207, %c0_208] : memref<1x128xf32, #tpu.memory_space<vmem>>, vector<1x128xf32>
      %277 = vector.broadcast %276 : vector<1x128xf32> to vector<8x128xf32>
      %278 = arith.addf %275, %277 : vector<8x128xf32>
      %279 = arith.truncf %278 : vector<8x128xf32> to vector<8x128xbf16>
      %c0_209 = arith.constant 0 : index
      %c0_210 = arith.constant 0 : index
      %280 = vector.load %arg8[%c0_209, %c0_210] : memref<8x128xbf16, #tpu.memory_space<vmem>>, vector<8x128xbf16>
      tpu.vector_store %arg8[%c0_209, %c0_210], %279 {strides = array<i32>} : memref<8x128xbf16, #tpu.memory_space<vmem>>, vector<8x128xbf16>,
    } else {
    }
    return
  }
  func.func @transform_0(%arg0: i32) -> (i32, i32) {
    %c0_i32 = arith.constant 0 : i32
    %c0_i32_0 = arith.constant 0 : i32
    %c0_i32_1 = arith.constant 0 : i32
    return %c0_i32, %c0_i32_0 : i32, i32
  }
  func.func @transform_1(%arg0: i32) -> (i32, i32) {
    %c0_i32 = arith.constant 0 : i32
    %c0_i32_0 = arith.constant 0 : i32
    %c0_i32_1 = arith.constant 0 : i32
    return %c0_i32, %c0_i32_0 : i32, i32
  }
  func.func @transform_2(%arg0: i32) -> (i32, i32) {
    %c0_i32 = arith.constant 0 : i32
    %c0_i32_0 = arith.constant 0 : i32
    %c0_i32_1 = arith.constant 0 : i32
    return %c0_i32, %c0_i32_0 : i32, i32
  }
  func.func @transform_3(%arg0: i32) -> (i32, i32) {
    %c0_i32 = arith.constant 0 : i32
    %c0_i32_0 = arith.constant 0 : i32
    %c0_i32_1 = arith.constant 0 : i32
    return %c0_i32, %c0_i32_0 : i32, i32
  }
  func.func @transform_4(%arg0: i32) -> (i32, i32) {
    %c0_i32 = arith.constant 0 : i32
    %c0_i32_0 = arith.constant 0 : i32
    %c0_i32_1 = arith.constant 0 : i32
    return %c0_i32, %c0_i32_0 : i32, i32
  }
  func.func @transform_5(%arg0: i32) -> (i32, i32, i32) {
    %c0_i32 = arith.constant 0 : i32
    %c0_i32_0 = arith.constant 0 : i32
    %c0_i32_1 = arith.constant 0 : i32
    return %arg0, %c0_i32, %c0_i32_0 : i32, i32, i32
  }
  func.func @transform_6(%arg0: i32) -> (i32, i32, i32) {
    %c0_i32 = arith.constant 0 : i32
    %c0_i32_0 = arith.constant 0 : i32
    %c0_i32_1 = arith.constant 0 : i32
    return %arg0, %c0_i32, %c0_i32_0 : i32, i32, i32
  }
  func.func @transform_7(%arg0: i32) -> (i32, i32) {
    %c0_i32 = arith.constant 0 : i32
    %c0_i32_0 = arith.constant 0 : i32
    %c0_i32_1 = arith.constant 0 : i32
    return %c0_i32, %c0_i32_0 : i32, i32
  }
}

</mosaic_0001>

<llo_original>
// kernel: tuckertnt_forward.3
$region0: #{tuckertnt_forward.3}
  #allocation0 [shape = 'u32[]', space=smem, size = 0x4, offset = 0x4, fixed_abs, tag = 'smem constant byte address 0x4 - core index']
  #allocation1 [shape = 'u32[144,128]{1,0:T(1,128)}', space=vmem, size = 0x12000, scoped, tag = 'internal scratch']
  %s0 = inlined_call_operand.vmem [shape: bf16[8,128], index: 0, kind: input, shape index: {}]
  %s1 = inlined_call_operand.vmem [shape: bf16[128,8192], index: 1, kind: input, shape index: {}]
  %s2 = inlined_call_operand.hbm [shape: f32[8,8192], index: 2, kind: output, shape index: {}]
  %s3 = sld [smem:[#allocation0]]
  $region64: #{tuckertnt_forward.3} parent=0
    _
  %s5 = ssub.s32 1, %s3
  %s6 = scalar_select 0, %s5, %s3
  $region1: #{tuckertnt_forward.3} parent=0
    #allocation2 [shape = 'u8[524288]{0}', space=vmem, size = 0x80000, scoped, tag = 'input window, operand 1']
    #allocation3 [shape = 'u8[65536]{0}', space=vmem, size = 0x10000, scoped, tag = 'output window, operand 0']
    #allocation4 [shape = 's32[2]{0}', space=sflag, size = 0x8, scoped, tag = 'scoped memory for tuckertnt_forward.3']
    %7 = vsyncpa [#allocation4], 0
    %s8 = scalar_lea.sflag [#allocation4], 1
    %9 = vsyncpa %s8, 0
    loop: start=0, step=1, limit=10
    $region2: #{tuckertnt_forward.3} parent=1 // loop_pre_header
      _
    $region3: #{tuckertnt_forward.3} parent=1 // loop_header
      %s11 = sphi 0, %s15
      %p12 = scmp.ge.s32.totalorder %s11, 10
      %s19 = sphi 0, %s19
      %s21 = sphi 0, %s19
      %s22 = sphi 0, %s21
      %s36 = sphi 0, %s22
      %s42 = sphi 0, %s44
      %s45 = sphi 0, %s42
      %s46 = sphi 0, %s45
      %s62 = sphi 0, %s46
      %s68 = sphi 0, %s70
      %s71 = sphi 0, %s68
      %s72 = sphi 0, %s71
      %s88 = sphi 0, %s72
    $region4: #{tuckertnt_forward.3} parent=1 // loop_header_branch
      %14 = sbr.rel (%p12) target = $region8
    $region5: #{tuckertnt_forward.3} parent=1 // loop_body
      %s16 = ssub.s32 %s11, 1
      %s17 = ssub.s32 %s11, 2
      %s18 = sadd.s32 %s11, 1
      %s20 = sadd.s32 %s19, 1
      %p23 = scmp.eq.s32.totalorder %s11, 7
      %p24 = scmp.ne.s32.totalorder %s19, %s21
      %p25 = scmp.eq.s32.totalorder %s11, 0
      %p26 = por %p24, %p25
      %p27 = scmp.ne.s32.totalorder %s19, %s21
      %p28 = scmp.eq.s32.totalorder %s16, 7
      %p29 = por %p27, %p28
      %p30 = scmp.ne.s32.totalorder %s21, %s22
      %p31 = scmp.eq.s32.totalorder %s16, 0
      %p32 = por %p30, %p31
      %p33 = scmp.ne.s32.totalorder %s21, %s22
      %p34 = scmp.eq.s32.totalorder %s17, 7
      %p35 = por %p33, %p34
      %p37 = scmp.ne.s32.totalorder %s22, %s36
      %p38 = scmp.eq.s32.totalorder %s17, 0
      %p39 = por %p37, %p38
      %s40 = ssub.s32 %s11, %s18
      %p41 = scmp.eq.s32.totalorder %s40, 0
      %s43 = sadd.s32 %s42, 1
      %s44 = scalar_select %p41, %s42, %s43
      %p47 = pneg %p41
      %p48 = scmp.eq.s32.totalorder %s11, 7
      %p49 = por %p47, %p48
      %p50 = scmp.ne.s32.totalorder %s42, %s45
      %p51 = scmp.eq.s32.totalorder %s11, 0
      %p52 = por %p50, %p51
      %p53 = scmp.ne.s32.totalorder %s42, %s45
      %p54 = scmp.eq.s32.totalorder %s16, 7
      %p55 = por %p53, %p54
      %p56 = scmp.ne.s32.totalorder %s45, %s46
      %p57 = scmp.eq.s32.totalorder %s16, 0
      %p58 = por %p56, %p57
      %p59 = scmp.ne.s32.totalorder %s45, %s46
      %p60 = scmp.eq.s32.totalorder %s17, 7
      %p61 = por %p59, %p60
      %p63 = scmp.ne.s32.totalorder %s46, %s62
      %p64 = scmp.eq.s32.totalorder %s17, 0
      %p65 = por %p63, %p64
      %s66 = ssub.s32 %s11, %s18
      %p67 = scmp.eq.s32.totalorder %s66, 0
      %s69 = sadd.s32 %s68, 1
      %s70 = scalar_select %p67, %s68, %s69
      %p73 = pneg %p67
      %p74 = scmp.eq.s32.totalorder %s11, 7
      %p75 = por %p73, %p74
      %p76 = scmp.ne.s32.totalorder %s68, %s71
      %p77 = scmp.eq.s32.totalorder %s11, 0
      %p78 = por %p76, %p77
      %p79 = scmp.ne.s32.totalorder %s68, %s71
      %p80 = scmp.eq.s32.totalorder %s16, 7
      %p81 = por %p79, %p80
      %p82 = scmp.ne.s32.totalorder %s71, %s72
      %p83 = scmp.eq.s32.totalorder %s16, 0
      %p84 = por %p82, %p83
      %p85 = scmp.ne.s32.totalorder %s71, %s72
      %p86 = scmp.eq.s32.totalorder %s17, 7
      %p87 = por %p85, %p86
      %p89 = scmp.ne.s32.totalorder %s72, %s88
      %p90 = scmp.eq.s32.totalorder %s17, 0
      %p91 = por %p89, %p90
      %p92 = scmp.le.s32.totalorder 1, %s11
      %p93 = scmp.lt.s32.totalorder %s11, 9
      %p94 = pnand %p92, %p93
      %p95 = pneg %p94
      // Predicated region
      $region9: #{tuckertnt_forward.3} parent=5 // pred_check
        _
      $region10: #{tuckertnt_forward.3} parent=5 // pred_check_branch
        %97 = sbr.rel (%p94) target = $region12
      $region11: #{tuckertnt_forward.3} parent=5 // pred_region
        %s98 = ssub.s32 %s11, 1
        // Predicated region
        $region13: #{tuckertnt_forward.3} parent=11 // pred_check
          %p99 = pneg %p32
        $region14: #{tuckertnt_forward.3} parent=11 // pred_check_branch
          %101 = sbr.rel (%p99) target = $region16
        $region15: #{tuckertnt_forward.3} parent=11 // pred_region
          _
        $region16: #{tuckertnt_forward.3} parent=11 // pred_fallthru
          _
      $region12: #{tuckertnt_forward.3} parent=5 // pred_fallthru
        _
      %p102 = scmp.lt.s32.totalorder %s11, 8
      // Predicated region
      $region17: #{tuckertnt_forward.3} parent=5 // pred_check
        %p103 = pneg %p102
      $region18: #{tuckertnt_forward.3} parent=5 // pred_check_branch
        %105 = sbr.rel (%p103) target = $region20
      $region19: #{tuckertnt_forward.3} parent=5 // pred_region
        // Predicated region
        $region21: #{tuckertnt_forward.3} parent=19 // pred_check
          %p106 = pneg %p52
        $region22: #{tuckertnt_forward.3} parent=19 // pred_check_branch
          %108 = sbr.rel (%p106) target = $region24
        $region23: #{tuckertnt_forward.3} parent=19 // pred_region
          %s109 = sand.u32 %s42, 1
          %s110 = sand.u32 %s42, 1
          %s111 = smul.addr %s110, 512
          %s112 = scalar_lea.vmem [#allocation2], %s111
          %s113 = smul.u32 8, %s11
          %s114 = smul.addr %s113, 4
          %s115 = scalar_lea.vmem %s1, %s114
          // Predicated region
          $region25: #{tuckertnt_forward.3} parent=23 // pred_check
            _
          $region26: #{tuckertnt_forward.3} parent=23 // pred_check_branch
            %117 = sbr.rel (0) target = $region28
          $region27: #{tuckertnt_forward.3} parent=23 // pred_region
            // Predicated region
            $region29: #{tuckertnt_forward.3} parent=27 // pred_check
              _
            $region30: #{tuckertnt_forward.3} parent=27 // pred_check_branch
              %119 = sbr.rel (0) target = $region32
            $region31: #{tuckertnt_forward.3} parent=27 // pred_region
              loop: start=0, step=1, limit=1
              $region33: #{tuckertnt_forward.3} parent=31 // loop_pre_header
                _
              $region34: #{tuckertnt_forward.3} parent=31 // loop_header
                %s121 = sphi 0, %s125
                %p122 = scmp.ge.s32.totalorder %s121, 1
                %s126 = sphi %s115, %s115
                %s127 = sphi %s112, %s112
              $region35: #{tuckertnt_forward.3} parent=31 // loop_header_branch
                %124 = sbr.rel (%p122) target = $region39
              $region36: #{tuckertnt_forward.3} parent=31 // loop_body
                %v128 = vld [vmem:[%s126] sm:$0xff]
                %129 = vst [vmem:[%s127] sm:$0xff] %v128
                %v130 = vld [vmem:[%s126 + $0x8] sm:$0xff]
                %131 = vst [vmem:[%s127 + $0x8] sm:$0xff] %v130
                %v132 = vld [vmem:[%s126 + $0x10] sm:$0xff]
                %133 = vst [vmem:[%s127 + $0x10] sm:$0xff] %v132
                %v134 = vld [vmem:[%s126 + $0x18] sm:$0xff]
                %135 = vst [vmem:[%s127 + $0x18] sm:$0xff] %v134
                %v136 = vld [vmem:[%s126 + $0x100] sm:$0xff]
                %137 = vst [vmem:[%s127 + $0x20] sm:$0xff] %v136
                %v138 = vld [vmem:[%s126 + $0x108] sm:$0xff]
                %139 = vst [vmem:[%s127 + $0x28] sm:$0xff] %v138
                %v140 = vld [vmem:[%s126 + $0x110] sm:$0xff]
                %141 = vst [vmem:[%s127 + $0x30] sm:$0xff] %v140
                %v142 = vld [vmem:[%s126 + $0x118] sm:$0xff]
                %143 = vst [vmem:[%s127 + $0x38] sm:$0xff] %v142
                %v144 = vld [vmem:[%s126 + $0x200] sm:$0xff]
                %145 = vst [vmem:[%s127 + $0x40] sm:$0xff] %v144
                %v146 = vld [vmem:[%s126 + $0x208] sm:$0xff]
                %147 = vst [vmem:[%s127 + $0x48] sm:$0xff] %v146
                %v148 = vld [vmem:[%s126 + $0x210] sm:$0xff]
                %149 = vst [vmem:[%s127 + $0x50] sm:$0xff] %v148
                %v150 = vld [vmem:[%s126 + $0x218] sm:$0xff]
                %151 = vst [vmem:[%s127 + $0x58] sm:$0xff] %v150
                %v152 = vld [vmem:[%s126 + $0x300] sm:$0xff]
                %153 = vst [vmem:[%s127 + $0x60] sm:$0xff] %v152
                %v154 = vld [vmem:[%s126 + $0x308] sm:$0xff]
                %155 = vst [vmem:[%s127 + $0x68] sm:$0xff] %v154
                %v156 = vld [vmem:[%s126 + $0x310] sm:$0xff]
                %157 = vst [vmem:[%s127 + $0x70] sm:$0xff] %v156
                %v158 = vld [vmem:[%s126 + $0x318] sm:$0xff]
                %159 = vst [vmem:[%s127 + $0x78] sm:$0xff] %v158
                %v160 = vld [vmem:[%s126 + $0x400] sm:$0xff]
                %161 = vst [vmem:[%s127 + $0x80] sm:$0xff] %v160
                %v162 = vld [vmem:[%s126 + $0x408] sm:$0xff]
                %163 = vst [vmem:[%s127 + $0x88] sm:$0xff] %v162
                %v164 = vld [vmem:[%s126 + $0x410] sm:$0xff]
                %165 = vst [vmem:[%s127 + $0x90] sm:$0xff] %v164
                %v166 = vld [vmem:[%s126 + $0x418] sm:$0xff]
                %167 = vst [vmem:[%s127 + $0x98] sm:$0xff] %v166
                %v168 = vld [vmem:[%s126 + $0x500] sm:$0xff]
                %169 = vst [vmem:[%s127 + $0xa0] sm:$0xff] %v168
                %v170 = vld [vmem:[%s126 + $0x508] sm:$0xff]
                %171 = vst [vmem:[%s127 + $0xa8] sm:$0xff] %v170
                %v172 = vld [vmem:[%s126 + $0x510] sm:$0xff]
                %173 = vst [vmem:[%s127 + $0xb0] sm:$0xff] %v172
                %v174 = vld [vmem:[%s126 + $0x518] sm:$0xff]
                %175 = vst [vmem:[%s127 + $0xb8] sm:$0xff] %v174
                %v176 = vld [vmem:[%s126 + $0x600] sm:$0xff]
                %177 = vst [vmem:[%s127 + $0xc0] sm:$0xff] %v176
                %v178 = vld [vmem:[%s126 + $0x608] sm:$0xff]
                %179 = vst [vmem:[%s127 + $0xc8] sm:$0xff] %v178
                %v180 = vld [vmem:[%s126 + $0x610] sm:$0xff]
                %181 = vst [vmem:[%s127 + $0xd0] sm:$0xff] %v180
                %v182 = vld [vmem:[%s126 + $0x618] sm:$0xff]
                %183 = vst [vmem:[%s127 + $0xd8] sm:$0xff] %v182
                %v184 = vld [vmem:[%s126 + $0x700] sm:$0xff]
                %185 = vst [vmem:[%s127 + $0xe0] sm:$0xff] %v184
                %v186 = vld [vmem:[%s126 + $0x708] sm:$0xff]
                %187 = vst [vmem:[%s127 + $0xe8] sm:$0xff] %v186
                %v188 = vld [vmem:[%s126 + $0x710] sm:$0xff]
                %189 = vst [vmem:[%s127 + $0xf0] sm:$0xff] %v188
                %v190 = vld [vmem:[%s126 + $0x718] sm:$0xff]
                %191 = vst [vmem:[%s127 + $0xf8] sm:$0xff] %v190
                %v192 = vld [vmem:[%s126 + $0x800] sm:$0xff]
                %193 = vst [vmem:[%s127 + $0x100] sm:$0xff] %v192
                %v194 = vld [vmem:[%s126 + $0x808] sm:$0xff]
                %195 = vst [vmem:[%s127 + $0x108] sm:$0xff] %v194
                %v196 = vld [vmem:[%s126 + $0x810] sm:$0xff]
                %197 = vst [vmem:[%s127 + $0x110] sm:$0xff] %v196
                %v198 = vld [vmem:[%s126 + $0x818] sm:$0xff]
                %199 = vst [vmem:[%s127 + $0x118] sm:$0xff] %v198
                %v200 = vld [vmem:[%s126 + $0x900] sm:$0xff]
                %201 = vst [vmem:[%s127 + $0x120] sm:$0xff] %v200
                %v202 = vld [vmem:[%s126 + $0x908] sm:$0xff]
                %203 = vst [vmem:[%s127 + $0x128] sm:$0xff] %v202
                %v204 = vld [vmem:[%s126 + $0x910] sm:$0xff]
                %205 = vst [vmem:[%s127 + $0x130] sm:$0xff] %v204
                %v206 = vld [vmem:[%s126 + $0x918] sm:$0xff]
                %207 = vst [vmem:[%s127 + $0x138] sm:$0xff] %v206
                %v208 = vld [vmem:[%s126 + $0xa00] sm:$0xff]
                %209 = vst [vmem:[%s127 + $0x140] sm:$0xff] %v208
                %v210 = vld [vmem:[%s126 + $0xa08] sm:$0xff]
                %211 = vst [vmem:[%s127 + $0x148] sm:$0xff] %v210
                %v212 = vld [vmem:[%s126 + $0xa10] sm:$0xff]
                %213 = vst [vmem:[%s127 + $0x150] sm:$0xff] %v212
                %v214 = vld [vmem:[%s126 + $0xa18] sm:$0xff]
                %215 = vst [vmem:[%s127 + $0x158] sm:$0xff] %v214
                %v216 = vld [vmem:[%s126 + $0xb00] sm:$0xff]
                %217 = vst [vmem:[%s127 + $0x160] sm:$0xff] %v216
                %v218 = vld [vmem:[%s126 + $0xb08] sm:$0xff]
                %219 = vst [vmem:[%s127 + $0x168] sm:$0xff] %v218
                %v220 = vld [vmem:[%s126 + $0xb10] sm:$0xff]
                %221 = vst [vmem:[%s127 + $0x170] sm:$0xff] %v220
                %v222 = vld [vmem:[%s126 + $0xb18] sm:$0xff]
                %223 = vst [vmem:[%s127 + $0x178] sm:$0xff] %v222
                %v224 = vld [vmem:[%s126 + $0xc00] sm:$0xff]
                %225 = vst [vmem:[%s127 + $0x180] sm:$0xff] %v224
                %v226 = vld [vmem:[%s126 + $0xc08] sm:$0xff]
                %227 = vst [vmem:[%s127 + $0x188] sm:$0xff] %v226
                %v228 = vld [vmem:[%s126 + $0xc10] sm:$0xff]
                %229 = vst [vmem:[%s127 + $0x190] sm:$0xff] %v228
                %v230 = vld [vmem:[%s126 + $0xc18] sm:$0xff]
                %231 = vst [vmem:[%s127 + $0x198] sm:$0xff] %v230
                %v232 = vld [vmem:[%s126 + $0xd00] sm:$0xff]
                %233 = vst [vmem:[%s127 + $0x1a0] sm:$0xff] %v232
                %v234 = vld [vmem:[%s126 + $0xd08] sm:$0xff]
                %235 = vst [vmem:[%s127 + $0x1a8] sm:$0xff] %v234
                %v236 = vld [vmem:[%s126 + $0xd10] sm:$0xff]
                %237 = vst [vmem:[%s127 + $0x1b0] sm:$0xff] %v236
                %v238 = vld [vmem:[%s126 + $0xd18] sm:$0xff]
                %239 = vst [vmem:[%s127 + $0x1b8] sm:$0xff] %v238
                %v240 = vld [vmem:[%s126 + $0xe00] sm:$0xff]
                %241 = vst [vmem:[%s127 + $0x1c0] sm:$0xff] %v240
                %v242 = vld [vmem:[%s126 + $0xe08] sm:$0xff]
                %243 = vst [vmem:[%s127 + $0x1c8] sm:$0xff] %v242
                %v244 = vld [vmem:[%s126 + $0xe10] sm:$0xff]
                %245 = vst [vmem:[%s127 + $0x1d0] sm:$0xff] %v244
                %v246 = vld [vmem:[%s126 + $0xe18] sm:$0xff]
                %247 = vst [vmem:[%s127 + $0x1d8] sm:$0xff] %v246
                %v248 = vld [vmem:[%s126 + $0xf00] sm:$0xff]
                %249 = vst [vmem:[%s127 + $0x1e0] sm:$0xff] %v248
                %v250 = vld [vmem:[%s126 + $0xf08] sm:$0xff]
                %251 = vst [vmem:[%s127 + $0x1e8] sm:$0xff] %v250
                %v252 = vld [vmem:[%s126 + $0xf10] sm:$0xff]
                %253 = vst [vmem:[%s127 + $0x1f0] sm:$0xff] %v252
                %v254 = vld [vmem:[%s126 + $0xf18] sm:$0xff]
                %255 = vst [vmem:[%s127 + $0x1f8] sm:$0xff] %v254
              $region37: #{tuckertnt_forward.3} parent=31 // loop_footer
                %s125 = sadd.s32 1, %s121
              $region38: #{tuckertnt_forward.3} parent=31 // loop_footer_branch
                %120 = sbr.rel target = $region34
              $region39: #{tuckertnt_forward.3} parent=31 // loop_exit
                _
            $region32: #{tuckertnt_forward.3} parent=27 // pred_fallthru
              _
            // Predicated region
            $region40: #{tuckertnt_forward.3} parent=27 // pred_check
              _
            $region41: #{tuckertnt_forward.3} parent=27 // pred_check_branch
              %257 = sbr.rel target = $region43
            $region42: #{tuckertnt_forward.3} parent=27 // pred_region
              _
            $region43: #{tuckertnt_forward.3} parent=27 // pred_fallthru
              _
          $region28: #{tuckertnt_forward.3} parent=23 // pred_fallthru
            _
          %258 = vnop
        $region24: #{tuckertnt_forward.3} parent=19 // pred_fallthru
          _
      $region20: #{tuckertnt_forward.3} parent=5 // pred_fallthru
        _
      %p259 = scmp.le.s32.totalorder 1, %s11
      %p260 = scmp.lt.s32.totalorder %s11, 9
      %p261 = pnand %p259, %p260
      %p262 = pneg %p261
      // Predicated region
      $region44: #{tuckertnt_forward.3} parent=5 // pred_check
        _
      $region45: #{tuckertnt_forward.3} parent=5 // pred_check_branch
        %264 = sbr.rel (%p261) target = $region47
      $region46: #{tuckertnt_forward.3} parent=5 // pred_region
        %s265 = ssub.s32 %s11, 1
        %s266 = sand.u32 %s45, 1
        %s267 = sand.u32 %s45, 1
        %s268 = smul.addr %s267, 512
        %s269 = scalar_lea.vmem [#allocation2], %s268
        // Predicated region
        $region48: #{tuckertnt_forward.3} parent=46 // pred_check
          %p270 = pneg %p58
        $region49: #{tuckertnt_forward.3} parent=46 // pred_check_branch
          %272 = sbr.rel (%p270) target = $region51
        $region50: #{tuckertnt_forward.3} parent=46 // pred_region
          _
        $region51: #{tuckertnt_forward.3} parent=46 // pred_fallthru
          _
        %p273 = pneg %p32
        %p274 = pneg %p29
        %s275 = sand.u32 %s45, 1
        %s276 = sand.u32 %s45, 1
        %s277 = smul.addr %s276, 512
        %s278 = scalar_lea.vmem [#allocation2], %s277
        %p279 = pneg %p58
        %p280 = pneg %p55
        %p281 = pneg %p84
        %p282 = pneg %p81
        %s283 = sand.u32 %s71, 1
        %s284 = scalar_lea.sflag [#allocation4], %s283
        %s285 = sand.u32 %s71, 1
        %s286 = smul.addr %s285, 64
        %s287 = scalar_lea.vmem [#allocation3], %s286
        %s288 = smul.u32 8, %s16
        %s289 = smul.u32 8, %s16
        %v291 = vld [vmem:[%s0] sm:$0xf]
        %v292 = vld [vmem:[%s269] sm:$0xff]
        %v293 = vld [vmem:[%s269 + $0x8] sm:$0xff]
        %v294 = vld [vmem:[%s269 + $0x10] sm:$0xff]
        %v295 = vld [vmem:[%s269 + $0x18] sm:$0xff]
        %v296 = vld [vmem:[%s269 + $0x20] sm:$0xff]
        %v297 = vld [vmem:[%s269 + $0x28] sm:$0xff]
        %v298 = vld [vmem:[%s269 + $0x30] sm:$0xff]
        %v299 = vld [vmem:[%s269 + $0x38] sm:$0xff]
        %v300 = vld [vmem:[%s269 + $0x40] sm:$0xff]
        %v301 = vld [vmem:[%s269 + $0x48] sm:$0xff]
        %v302 = vld [vmem:[%s269 + $0x50] sm:$0xff]
        %v303 = vld [vmem:[%s269 + $0x58] sm:$0xff]
        %v304 = vld [vmem:[%s269 + $0x60] sm:$0xff]
        %v305 = vld [vmem:[%s269 + $0x68] sm:$0xff]
        %v306 = vld [vmem:[%s269 + $0x70] sm:$0xff]
        %v307 = vld [vmem:[%s269 + $0x78] sm:$0xff]
        %v308 = vld [vmem:[%s269 + $0x80] sm:$0xff]
        %v309 = vld [vmem:[%s269 + $0x88] sm:$0xff]
        %v310 = vld [vmem:[%s269 + $0x90] sm:$0xff]
        %v311 = vld [vmem:[%s269 + $0x98] sm:$0xff]
        %v312 = vld [vmem:[%s269 + $0xa0] sm:$0xff]
        %v313 = vld [vmem:[%s269 + $0xa8] sm:$0xff]
        %v314 = vld [vmem:[%s269 + $0xb0] sm:$0xff]
        %v315 = vld [vmem:[%s269 + $0xb8] sm:$0xff]
        %v316 = vld [vmem:[%s269 + $0xc0] sm:$0xff]
        %v317 = vld [vmem:[%s269 + $0xc8] sm:$0xff]
        %v318 = vld [vmem:[%s269 + $0xd0] sm:$0xff]
        %v319 = vld [vmem:[%s269 + $0xd8] sm:$0xff]
        %v320 = vld [vmem:[%s269 + $0xe0] sm:$0xff]
        %v321 = vld [vmem:[%s269 + $0xe8] sm:$0xff]
        %v322 = vld [vmem:[%s269 + $0xf0] sm:$0xff]
        %v323 = vld [vmem:[%s269 + $0xf8] sm:$0xff]
        %v324 = vld [vmem:[%s269 + $0x100] sm:$0xff]
        %v325 = vld [vmem:[%s269 + $0x108] sm:$0xff]
        %v326 = vld [vmem:[%s269 + $0x110] sm:$0xff]
        %v327 = vld [vmem:[%s269 + $0x118] sm:$0xff]
        %v328 = vld [vmem:[%s269 + $0x120] sm:$0xff]
        %v329 = vld [vmem:[%s269 + $0x128] sm:$0xff]
        %v330 = vld [vmem:[%s269 + $0x130] sm:$0xff]
        %v331 = vld [vmem:[%s269 + $0x138] sm:$0xff]
        %v332 = vld [vmem:[%s269 + $0x140] sm:$0xff]
        %v333 = vld [vmem:[%s269 + $0x148] sm:$0xff]
        %v334 = vld [vmem:[%s269 + $0x150] sm:$0xff]
        %v335 = vld [vmem:[%s269 + $0x158] sm:$0xff]
        %v336 = vld [vmem:[%s269 + $0x160] sm:$0xff]
        %v337 = vld [vmem:[%s269 + $0x168] sm:$0xff]
        %v338 = vld [vmem:[%s269 + $0x170] sm:$0xff]
        %v339 = vld [vmem:[%s269 + $0x178] sm:$0xff]
        %v340 = vld [vmem:[%s269 + $0x180] sm:$0xff]
        %v341 = vld [vmem:[%s269 + $0x188] sm:$0xff]
        %v342 = vld [vmem:[%s269 + $0x190] sm:$0xff]
        %v343 = vld [vmem:[%s269 + $0x198] sm:$0xff]
        %v344 = vld [vmem:[%s269 + $0x1a0] sm:$0xff]
        %v345 = vld [vmem:[%s269 + $0x1a8] sm:$0xff]
        %v346 = vld [vmem:[%s269 + $0x1b0] sm:$0xff]
        %v347 = vld [vmem:[%s269 + $0x1b8] sm:$0xff]
        %v348 = vld [vmem:[%s269 + $0x1c0] sm:$0xff]
        %v349 = vld [vmem:[%s269 + $0x1c8] sm:$0xff]
        %v350 = vld [vmem:[%s269 + $0x1d0] sm:$0xff]
        %v351 = vld [vmem:[%s269 + $0x1d8] sm:$0xff]
        %v352 = vld [vmem:[%s269 + $0x1e0] sm:$0xff]
        %v353 = vld [vmem:[%s269 + $0x1e8] sm:$0xff]
        %v354 = vld [vmem:[%s269 + $0x1f0] sm:$0xff]
        %v355 = vld [vmem:[%s269 + $0x1f8] sm:$0xff]
        %v420 = vunpack.c.l.b16 %v292
        %v421 = vunpack.c.h.b16 %v292
        %v422 = vunpack.c.l.b16 %v293
        %v423 = vunpack.c.h.b16 %v293
        %v424 = vunpack.c.l.b16 %v294
        %v425 = vunpack.c.h.b16 %v294
        %v426 = vunpack.c.l.b16 %v295
        %v427 = vunpack.c.h.b16 %v295
        %v428 = vunpack.c.l.b16 %v296
        %v429 = vunpack.c.h.b16 %v296
        %v430 = vunpack.c.l.b16 %v297
        %v431 = vunpack.c.h.b16 %v297
        %v432 = vunpack.c.l.b16 %v298
        %v433 = vunpack.c.h.b16 %v298
        %v434 = vunpack.c.l.b16 %v299
        %v435 = vunpack.c.h.b16 %v299
        %v436 = vunpack.c.l.b16 %v300
        %v437 = vunpack.c.h.b16 %v300
        %v438 = vunpack.c.l.b16 %v301
        %v439 = vunpack.c.h.b16 %v301
        %v440 = vunpack.c.l.b16 %v302
        %v441 = vunpack.c.h.b16 %v302
        %v442 = vunpack.c.l.b16 %v303
        %v443 = vunpack.c.h.b16 %v303
        %v444 = vunpack.c.l.b16 %v304
        %v445 = vunpack.c.h.b16 %v304
        %v446 = vunpack.c.l.b16 %v305
        %v447 = vunpack.c.h.b16 %v305
        %v448 = vunpack.c.l.b16 %v306
        %v449 = vunpack.c.h.b16 %v306
        %v450 = vunpack.c.l.b16 %v307
        %v451 = vunpack.c.h.b16 %v307
        %v452 = vunpack.c.l.b16 %v308
        %v453 = vunpack.c.h.b16 %v308
        %v454 = vunpack.c.l.b16 %v309
        %v455 = vunpack.c.h.b16 %v309
        %v456 = vunpack.c.l.b16 %v310
        %v457 = vunpack.c.h.b16 %v310
        %v458 = vunpack.c.l.b16 %v311
        %v459 = vunpack.c.h.b16 %v311
        %v460 = vunpack.c.l.b16 %v312
        %v461 = vunpack.c.h.b16 %v312
        %v462 = vunpack.c.l.b16 %v313
        %v463 = vunpack.c.h.b16 %v313
        %v464 = vunpack.c.l.b16 %v314
        %v465 = vunpack.c.h.b16 %v314
        %v466 = vunpack.c.l.b16 %v315
        %v467 = vunpack.c.h.b16 %v315
        %v468 = vunpack.c.l.b16 %v316
        %v469 = vunpack.c.h.b16 %v316
        %v470 = vunpack.c.l.b16 %v317
        %v471 = vunpack.c.h.b16 %v317
        %v472 = vunpack.c.l.b16 %v318
        %v473 = vunpack.c.h.b16 %v318
        %v474 = vunpack.c.l.b16 %v319
        %v475 = vunpack.c.h.b16 %v319
        %v476 = vunpack.c.l.b16 %v320
        %v477 = vunpack.c.h.b16 %v320
        %v478 = vunpack.c.l.b16 %v321
        %v479 = vunpack.c.h.b16 %v321
        %v480 = vunpack.c.l.b16 %v322
        %v481 = vunpack.c.h.b16 %v322
        %v482 = vunpack.c.l.b16 %v323
        %v483 = vunpack.c.h.b16 %v323
        %v484 = vunpack.c.l.b16 %v324
        %v485 = vunpack.c.h.b16 %v324
        %v486 = vunpack.c.l.b16 %v325
        %v487 = vunpack.c.h.b16 %v325
        %v488 = vunpack.c.l.b16 %v326
        %v489 = vunpack.c.h.b16 %v326
        %v490 = vunpack.c.l.b16 %v327
        %v491 = vunpack.c.h.b16 %v327
        %v492 = vunpack.c.l.b16 %v328
        %v493 = vunpack.c.h.b16 %v328
        %v494 = vunpack.c.l.b16 %v329
        %v495 = vunpack.c.h.b16 %v329
        %v496 = vunpack.c.l.b16 %v330
        %v497 = vunpack.c.h.b16 %v330
        %v498 = vunpack.c.l.b16 %v331
        %v499 = vunpack.c.h.b16 %v331
        %v500 = vunpack.c.l.b16 %v332
        %v501 = vunpack.c.h.b16 %v332
        %v502 = vunpack.c.l.b16 %v333
        %v503 = vunpack.c.h.b16 %v333
        %v504 = vunpack.c.l.b16 %v334
        %v505 = vunpack.c.h.b16 %v334
        %v506 = vunpack.c.l.b16 %v335
        %v507 = vunpack.c.h.b16 %v335
        %v508 = vunpack.c.l.b16 %v336
        %v509 = vunpack.c.h.b16 %v336
        %v510 = vunpack.c.l.b16 %v337
        %v511 = vunpack.c.h.b16 %v337
        %v512 = vunpack.c.l.b16 %v338
        %v513 = vunpack.c.h.b16 %v338
        %v514 = vunpack.c.l.b16 %v339
        %v515 = vunpack.c.h.b16 %v339
        %v516 = vunpack.c.l.b16 %v340
        %v517 = vunpack.c.h.b16 %v340
        %v518 = vunpack.c.l.b16 %v341
        %v519 = vunpack.c.h.b16 %v341
        %v520 = vunpack.c.l.b16 %v342
        %v521 = vunpack.c.h.b16 %v342
        %v522 = vunpack.c.l.b16 %v343
        %v523 = vunpack.c.h.b16 %v343
        %v524 = vunpack.c.l.b16 %v344
        %v525 = vunpack.c.h.b16 %v344
        %v526 = vunpack.c.l.b16 %v345
        %v527 = vunpack.c.h.b16 %v345
        %v528 = vunpack.c.l.b16 %v346
        %v529 = vunpack.c.h.b16 %v346
        %v530 = vunpack.c.l.b16 %v347
        %v531 = vunpack.c.h.b16 %v347
        %v532 = vunpack.c.l.b16 %v348
        %v533 = vunpack.c.h.b16 %v348
        %v534 = vunpack.c.l.b16 %v349
        %v535 = vunpack.c.h.b16 %v349
        %v536 = vunpack.c.l.b16 %v350
        %v537 = vunpack.c.h.b16 %v350
        %v538 = vunpack.c.l.b16 %v351
        %v539 = vunpack.c.h.b16 %v351
        %v540 = vunpack.c.l.b16 %v352
        %v541 = vunpack.c.h.b16 %v352
        %v542 = vunpack.c.l.b16 %v353
        %v543 = vunpack.c.h.b16 %v353
        %v544 = vunpack.c.l.b16 %v354
        %v545 = vunpack.c.h.b16 %v354
        %v546 = vunpack.c.l.b16 %v355
        %v547 = vunpack.c.h.b16 %v355
        %v548 = vpack.c.b16 %v428, %v420
        %v549 = vpack.c.b16 %v429, %v421
        %v550 = vpack.c.b16 %v430, %v422
        %v551 = vpack.c.b16 %v431, %v423
        %v552 = vpack.c.b16 %v432, %v424
        %v553 = vpack.c.b16 %v433, %v425
        %v554 = vpack.c.b16 %v434, %v426
        %v555 = vpack.c.b16 %v435, %v427
        %v556 = vpack.c.b16 %v444, %v436
        %v557 = vpack.c.b16 %v445, %v437
        %v558 = vpack.c.b16 %v446, %v438
        %v559 = vpack.c.b16 %v447, %v439
        %v560 = vpack.c.b16 %v448, %v440
        %v561 = vpack.c.b16 %v449, %v441
        %v562 = vpack.c.b16 %v450, %v442
        %v563 = vpack.c.b16 %v451, %v443
        %v564 = vpack.c.b16 %v460, %v452
        %v565 = vpack.c.b16 %v461, %v453
        %v566 = vpack.c.b16 %v462, %v454
        %v567 = vpack.c.b16 %v463, %v455
        %v568 = vpack.c.b16 %v464, %v456
        %v569 = vpack.c.b16 %v465, %v457
        %v570 = vpack.c.b16 %v466, %v458
        %v571 = vpack.c.b16 %v467, %v459
        %v572 = vpack.c.b16 %v476, %v468
        %v573 = vpack.c.b16 %v477, %v469
        %v574 = vpack.c.b16 %v478, %v470
        %v575 = vpack.c.b16 %v479, %v471
        %v576 = vpack.c.b16 %v480, %v472
        %v577 = vpack.c.b16 %v481, %v473
        %v578 = vpack.c.b16 %v482, %v474
        %v579 = vpack.c.b16 %v483, %v475
        %v580 = vpack.c.b16 %v492, %v484
        %v581 = vpack.c.b16 %v493, %v485
        %v582 = vpack.c.b16 %v494, %v486
        %v583 = vpack.c.b16 %v495, %v487
        %v584 = vpack.c.b16 %v496, %v488
        %v585 = vpack.c.b16 %v497, %v489
        %v586 = vpack.c.b16 %v498, %v490
        %v587 = vpack.c.b16 %v499, %v491
        %v588 = vpack.c.b16 %v508, %v500
        %v589 = vpack.c.b16 %v509, %v501
        %v590 = vpack.c.b16 %v510, %v502
        %v591 = vpack.c.b16 %v511, %v503
        %v592 = vpack.c.b16 %v512, %v504
        %v593 = vpack.c.b16 %v513, %v505
        %v594 = vpack.c.b16 %v514, %v506
        %v595 = vpack.c.b16 %v515, %v507
        %v596 = vpack.c.b16 %v524, %v516
        %v597 = vpack.c.b16 %v525, %v517
        %v598 = vpack.c.b16 %v526, %v518
        %v599 = vpack.c.b16 %v527, %v519
        %v600 = vpack.c.b16 %v528, %v520
        %v601 = vpack.c.b16 %v529, %v521
        %v602 = vpack.c.b16 %v530, %v522
        %v603 = vpack.c.b16 %v531, %v523
        %v604 = vpack.c.b16 %v540, %v532
        %v605 = vpack.c.b16 %v541, %v533
        %v606 = vpack.c.b16 %v542, %v534
        %v607 = vpack.c.b16 %v543, %v535
        %v608 = vpack.c.b16 %v544, %v536
        %v609 = vpack.c.b16 %v545, %v537
        %v610 = vpack.c.b16 %v546, %v538
        %v611 = vpack.c.b16 %v547, %v539
        %676 = vmatprep.subr.bf16.mxu0 %v549
        %677 = vmatpush1.bf16.msra.mxu0 %v548
        %678 = vmatprep.subr.bf16.mxu0 %v557
        %679 = vmatpush1.bf16.msra.mxu0 %v556
        %680 = vmatprep.subr.bf16.mxu0 %v565
        %681 = vmatpush1.bf16.msra.mxu0 %v564
        %682 = vmatprep.subr.bf16.mxu0 %v573
        %683 = vmatpush1.bf16.msra.mxu0 %v572
        %684 = vmatprep.subr.bf16.mxu0 %v581
        %685 = vmatpush1.bf16.msra.mxu0 %v580
        %686 = vmatprep.subr.bf16.mxu0 %v589
        %687 = vmatpush1.bf16.msra.mxu0 %v588
        %688 = vmatprep.subr.bf16.mxu0 %v597
        %689 = vmatpush1.bf16.msra.mxu0 %v596
        %690 = vmatprep.subr.bf16.mxu0 %v605
        %691 = vmatpush1.bf16.msra.mxu0 %v604
        %692 = vmatprep.subr.bf16.mxu0 0
        %693 = vmatpush1.bf16.msra.mxu0 0
        %694 = vmatprep.subr.bf16.mxu0 0
        %695 = vmatpush1.bf16.msra.mxu0 0
        %696 = vmatprep.subr.bf16.mxu0 0
        %697 = vmatpush1.bf16.msra.mxu0 0
        %698 = vmatprep.subr.bf16.mxu0 0
        %699 = vmatpush1.bf16.msra.mxu0 0
        %700 = vmatprep.subr.bf16.mxu0 0
        %701 = vmatpush1.bf16.msra.mxu0 0
        %702 = vmatprep.subr.bf16.mxu0 0
        %703 = vmatpush1.bf16.msra.mxu0 0
        %704 = vmatprep.subr.bf16.mxu0 0
        %705 = vmatpush1.bf16.msra.mxu0 0
        %706 = vmatprep.subr.bf16.mxu0 0
        %707 = vmatpush1.bf16.msra.mxu0 0
        %708 = vmatprep.mubr.bf16.mxu0 0
        %709 = vmatmul.mubr.bf16.gmra.mrb[0].mxu0 %v291
        %v710 = vpop.f32.mrb[0].mxu0
        %v711 = vadd.f32 0.0, %v710
        %v712 = vpop.f32.mrb[0].mxu0
        %v713 = vadd.f32 0.0, %v712
        %v714 = vpop.f32.mrb[0].mxu0
        %v715 = vpop.f32.mrb[0].mxu0
        %716 = vdwg.mxu0
        %717 = vmatprep.subr.bf16.mxu0 %v551
        %718 = vmatpush1.bf16.msra.mxu0 %v550
        %719 = vmatprep.subr.bf16.mxu0 %v559
        %720 = vmatpush1.bf16.msra.mxu0 %v558
        %721 = vmatprep.subr.bf16.mxu0 %v567
        %722 = vmatpush1.bf16.msra.mxu0 %v566
        %723 = vmatprep.subr.bf16.mxu0 %v575
        %724 = vmatpush1.bf16.msra.mxu0 %v574
        %725 = vmatprep.subr.bf16.mxu0 %v583
        %726 = vmatpush1.bf16.msra.mxu0 %v582
        %727 = vmatprep.subr.bf16.mxu0 %v591
        %728 = vmatpush1.bf16.msra.mxu0 %v590
        %729 = vmatprep.subr.bf16.mxu0 %v599
        %730 = vmatpush1.bf16.msra.mxu0 %v598
        %731 = vmatprep.subr.bf16.mxu0 %v607
        %732 = vmatpush1.bf16.msra.mxu0 %v606
        %733 = vmatprep.subr.bf16.mxu0 0
        %734 = vmatpush1.bf16.msra.mxu0 0
        %735 = vmatprep.subr.bf16.mxu0 0
        %736 = vmatpush1.bf16.msra.mxu0 0
        %737 = vmatprep.subr.bf16.mxu0 0
        %738 = vmatpush1.bf16.msra.mxu0 0
        %739 = vmatprep.subr.bf16.mxu0 0
        %740 = vmatpush1.bf16.msra.mxu0 0
        %741 = vmatprep.subr.bf16.mxu0 0
        %742 = vmatpush1.bf16.msra.mxu0 0
        %743 = vmatprep.subr.bf16.mxu0 0
        %744 = vmatpush1.bf16.msra.mxu0 0
        %745 = vmatprep.subr.bf16.mxu0 0
        %746 = vmatpush1.bf16.msra.mxu0 0
        %747 = vmatprep.subr.bf16.mxu0 0
        %748 = vmatpush1.bf16.msra.mxu0 0
        %749 = vmatprep.mubr.bf16.mxu0 0
        %750 = vmatmul.mubr.bf16.gmra.mrb[0].mxu0 %v291
        %v751 = vpop.f32.mrb[0].mxu0
        %v752 = vadd.f32 0.0, %v751
        %v753 = vpop.f32.mrb[0].mxu0
        %v754 = vadd.f32 0.0, %v753
        %v755 = vpop.f32.mrb[0].mxu0
        %v756 = vpop.f32.mrb[0].mxu0
        %757 = vdwg.mxu0
        %758 = vmatprep.subr.bf16.mxu0 %v553
        %759 = vmatpush1.bf16.msra.mxu0 %v552
        %760 = vmatprep.subr.bf16.mxu0 %v561
        %761 = vmatpush1.bf16.msra.mxu0 %v560
        %762 = vmatprep.subr.bf16.mxu0 %v569
        %763 = vmatpush1.bf16.msra.mxu0 %v568
        %764 = vmatprep.subr.bf16.mxu0 %v577
        %765 = vmatpush1.bf16.msra.mxu0 %v576
        %766 = vmatprep.subr.bf16.mxu0 %v585
        %767 = vmatpush1.bf16.msra.mxu0 %v584
        %768 = vmatprep.subr.bf16.mxu0 %v593
        %769 = vmatpush1.bf16.msra.mxu0 %v592
        %770 = vmatprep.subr.bf16.mxu0 %v601
        %771 = vmatpush1.bf16.msra.mxu0 %v600
        %772 = vmatprep.subr.bf16.mxu0 %v609
        %773 = vmatpush1.bf16.msra.mxu0 %v608
        %774 = vmatprep.subr.bf16.mxu0 0
        %775 = vmatpush1.bf16.msra.mxu0 0
        %776 = vmatprep.subr.bf16.mxu0 0
        %777 = vmatpush1.bf16.msra.mxu0 0
        %778 = vmatprep.subr.bf16.mxu0 0
        %779 = vmatpush1.bf16.msra.mxu0 0
        %780 = vmatprep.subr.bf16.mxu0 0
        %781 = vmatpush1.bf16.msra.mxu0 0
        %782 = vmatprep.subr.bf16.mxu0 0
        %783 = vmatpush1.bf16.msra.mxu0 0
        %784 = vmatprep.subr.bf16.mxu0 0
        %785 = vmatpush1.bf16.msra.mxu0 0
        %786 = vmatprep.subr.bf16.mxu0 0
        %787 = vmatpush1.bf16.msra.mxu0 0
        %788 = vmatprep.subr.bf16.mxu0 0
        %789 = vmatpush1.bf16.msra.mxu0 0
        %790 = vmatprep.mubr.bf16.mxu0 0
        %791 = vmatmul.mubr.bf16.gmra.mrb[0].mxu0 %v291
        %v792 = vpop.f32.mrb[0].mxu0
        %v793 = vadd.f32 0.0, %v792
        %v794 = vpop.f32.mrb[0].mxu0
        %v795 = vadd.f32 0.0, %v794
        %v796 = vpop.f32.mrb[0].mxu0
        %v797 = vpop.f32.mrb[0].mxu0
        %798 = vdwg.mxu0
        %799 = vmatprep.subr.bf16.mxu0 %v555
        %800 = vmatpush1.bf16.msra.mxu0 %v554
        %801 = vmatprep.subr.bf16.mxu0 %v563
        %802 = vmatpush1.bf16.msra.mxu0 %v562
        %803 = vmatprep.subr.bf16.mxu0 %v571
        %804 = vmatpush1.bf16.msra.mxu0 %v570
        %805 = vmatprep.subr.bf16.mxu0 %v579
        %806 = vmatpush1.bf16.msra.mxu0 %v578
        %807 = vmatprep.subr.bf16.mxu0 %v587
        %808 = vmatpush1.bf16.msra.mxu0 %v586
        %809 = vmatprep.subr.bf16.mxu0 %v595
        %810 = vmatpush1.bf16.msra.mxu0 %v594
        %811 = vmatprep.subr.bf16.mxu0 %v603
        %812 = vmatpush1.bf16.msra.mxu0 %v602
        %813 = vmatprep.subr.bf16.mxu0 %v611
        %814 = vmatpush1.bf16.msra.mxu0 %v610
        %815 = vmatprep.subr.bf16.mxu0 0
        %816 = vmatpush1.bf16.msra.mxu0 0
        %817 = vmatprep.subr.bf16.mxu0 0
        %818 = vmatpush1.bf16.msra.mxu0 0
        %819 = vmatprep.subr.bf16.mxu0 0
        %820 = vmatpush1.bf16.msra.mxu0 0
        %821 = vmatprep.subr.bf16.mxu0 0
        %822 = vmatpush1.bf16.msra.mxu0 0
        %823 = vmatprep.subr.bf16.mxu0 0
        %824 = vmatpush1.bf16.msra.mxu0 0
        %825 = vmatprep.subr.bf16.mxu0 0
        %826 = vmatpush1.bf16.msra.mxu0 0
        %827 = vmatprep.subr.bf16.mxu0 0
        %828 = vmatpush1.bf16.msra.mxu0 0
        %829 = vmatprep.subr.bf16.mxu0 0
        %830 = vmatpush1.bf16.msra.mxu0 0
        %831 = vmatprep.mubr.bf16.mxu0 0
        %832 = vmatmul.mubr.bf16.gmra.mrb[0].mxu0 %v291
        %v833 = vpop.f32.mrb[0].mxu0
        %v834 = vadd.f32 0.0, %v833
        %v835 = vpop.f32.mrb[0].mxu0
        %v836 = vadd.f32 0.0, %v835
        %v837 = vpop.f32.mrb[0].mxu0
        %v838 = vpop.f32.mrb[0].mxu0
        %839 = vdwg.mxu0
        %840 = vst [vmem:[%s287] sm:$0xff] %v711
        %841 = vst [vmem:[%s287 + $0x8] sm:$0xff] %v713
        %842 = vst [vmem:[%s287 + $0x10] sm:$0xff] %v752
        %843 = vst [vmem:[%s287 + $0x18] sm:$0xff] %v754
        %844 = vst [vmem:[%s287 + $0x20] sm:$0xff] %v793
        %845 = vst [vmem:[%s287 + $0x28] sm:$0xff] %v795
        %846 = vst [vmem:[%s287 + $0x30] sm:$0xff] %v834
        %847 = vst [vmem:[%s287 + $0x38] sm:$0xff] %v836
        %s848 = sand.u32 %s71, 1
        %s849 = scalar_lea.sflag [#allocation4], %s848
        %s850 = sand.u32 %s71, 1
        %s851 = smul.addr %s850, 64
        %s852 = scalar_lea.vmem [#allocation3], %s851
        // Predicated region
        $region52: #{tuckertnt_forward.3} parent=46 // pred_check
          %p853 = pneg %p81
        $region53: #{tuckertnt_forward.3} parent=46 // pred_check_branch
          %855 = sbr.rel (%p853) target = $region55
        $region54: #{tuckertnt_forward.3} parent=46 // pred_region
          %s856 = smul.u32 8, %s16
          %s858 = ssub.s32 1024, 1024
          %859 = vsyncadd %s849, %s858
          %s860 = smul.addr %s856, 128
          %s861 = scalar_lea.hbm %s2, %s860
          %s863 = sshll.u32 %s852, 4
          %s864 = int_to_ptr.vmem [resolvable:$true] %s863
          %866 = dma.vmem_to_hbm [thread:$0]  %s864, 1024, %s861, %s849
        $region55: #{tuckertnt_forward.3} parent=46 // pred_fallthru
          _
      $region47: #{tuckertnt_forward.3} parent=5 // pred_fallthru
        _
      %p867 = scmp.le.s32.totalorder 2, %s11
      // Predicated region
      $region56: #{tuckertnt_forward.3} parent=5 // pred_check
        %p868 = pneg %p867
      $region57: #{tuckertnt_forward.3} parent=5 // pred_check_branch
        %870 = sbr.rel (%p868) target = $region59
      $region58: #{tuckertnt_forward.3} parent=5 // pred_region
        %s871 = ssub.s32 %s11, 2
        // Predicated region
        $region60: #{tuckertnt_forward.3} parent=58 // pred_check
          %p872 = pneg %p87
        $region61: #{tuckertnt_forward.3} parent=58 // pred_check_branch
          %874 = sbr.rel (%p872) target = $region63
        $region62: #{tuckertnt_forward.3} parent=58 // pred_region
          %s875 = sand.u32 %s72, 1
          %s876 = scalar_lea.sflag [#allocation4], %s875
          %s877 = sand.u32 %s72, 1
          %s878 = smul.addr %s877, 64
          %s879 = scalar_lea.vmem [#allocation3], %s878
          %880 = dma.done %s876, 1024
        $region63: #{tuckertnt_forward.3} parent=58 // pred_fallthru
          _
      $region59: #{tuckertnt_forward.3} parent=5 // pred_fallthru
        _
    $region6: #{tuckertnt_forward.3} parent=1 // loop_footer
      %s15 = sadd.s32 1, %s11
    $region7: #{tuckertnt_forward.3} parent=1 // loop_footer_branch
      %10 = sbr.rel target = $region3
    $region8: #{tuckertnt_forward.3} parent=1 // loop_exit
      _
    %881 = vsyncpa [#allocation4], 1
    %s882 = scalar_lea.sflag [#allocation4], 1
    %883 = vsyncpa %s882, 1

// kernel: tuckertnt_forward.2
$region0: #{tuckertnt_forward.2}
  #allocation0 [shape = 'u32[]', space=smem, size = 0x4, offset = 0x4, fixed_abs, tag = 'smem constant byte address 0x4 - core index']
  #allocation1 [shape = 'u32[144,128]{1,0:T(1,128)}', space=vmem, size = 0x12000, scoped, tag = 'internal scratch']
  #allocation2 [shape = 'f32[8,128]{1,0:T(8,128)}', space=vmem, size = 0x1000, scoped, tag = 'scratch operand']
  %s0 = inlined_call_operand.vmem [shape: f32[8,128], index: 0, kind: input, shape index: {}]
  %s1 = inlined_call_operand.vmem [shape: f32[1,128], index: 1, kind: input, shape index: {}]
  %s2 = inlined_call_operand.vmem [shape: f32[1,128], index: 2, kind: input, shape index: {}]
  %s3 = inlined_call_operand.vmem [shape: f32[1,128], index: 3, kind: input, shape index: {}]
  %s4 = inlined_call_operand.vmem [shape: f32[1,128], index: 4, kind: input, shape index: {}]
  %s5 = inlined_call_operand.vmem [shape: f32[128,8,1], index: 5, kind: input, shape index: {}]
  %s6 = inlined_call_operand.hbm [shape: bf16[128,128,128], index: 6, kind: input, shape index: {}]
  %s7 = inlined_call_operand.vmem [shape: bf16[8,128], index: 7, kind: output, shape index: {}]
  %s8 = sld [smem:[#allocation0]]
  $region73: #{tuckertnt_forward.2} parent=0
    _
  %s10 = ssub.s32 1, %s8
  %s11 = scalar_select 0, %s10, %s8
  $region1: #{tuckertnt_forward.2} parent=0
    #allocation3 [shape = 'u8[2097152]{0}', space=vmem, size = 0x200000, scoped, tag = 'input window, operand 6']
    #allocation4 [shape = 's32[2]{0}', space=sflag, size = 0x8, scoped, tag = 'scoped memory for tuckertnt_forward.2']
    %12 = vsyncpa [#allocation4], 0
    %s13 = scalar_lea.sflag [#allocation4], 1
    %14 = vsyncpa %s13, 0
    loop: start=0, step=1, limit=6
    $region2: #{tuckertnt_forward.2} parent=1 // loop_pre_header
      _
    $region3: #{tuckertnt_forward.2} parent=1 // loop_header
      %s16 = sphi 0, %s20
      %p17 = scmp.ge.s32.totalorder %s16, 6
      %s24 = sphi 0, %s24
      %s26 = sphi 0, %s24
      %s27 = sphi 0, %s26
      %s41 = sphi 0, %s27
      %s45 = sphi 0, %s45
      %s47 = sphi 0, %s45
      %s48 = sphi 0, %s47
      %s62 = sphi 0, %s48
      %s66 = sphi 0, %s66
      %s68 = sphi 0, %s66
      %s69 = sphi 0, %s68
      %s83 = sphi 0, %s69
      %s87 = sphi 0, %s87
      %s89 = sphi 0, %s87
      %s90 = sphi 0, %s89
      %s104 = sphi 0, %s90
      %s108 = sphi 0, %s108
      %s110 = sphi 0, %s108
      %s111 = sphi 0, %s110
      %s125 = sphi 0, %s111
      %s131 = sphi 0, %s133
      %s134 = sphi 0, %s131
      %s135 = sphi 0, %s134
      %s151 = sphi 0, %s135
      %s157 = sphi 0, %s159
      %s160 = sphi 0, %s157
      %s161 = sphi 0, %s160
      %s177 = sphi 0, %s161
      %s181 = sphi 0, %s181
      %s183 = sphi 0, %s181
      %s184 = sphi 0, %s183
      %s198 = sphi 0, %s184
    $region4: #{tuckertnt_forward.2} parent=1 // loop_header_branch
      %19 = sbr.rel (%p17) target = $region8
    $region5: #{tuckertnt_forward.2} parent=1 // loop_body
      %s21 = ssub.s32 %s16, 1
      %s22 = ssub.s32 %s16, 2
      %s23 = sadd.s32 %s16, 1
      %s25 = sadd.s32 %s24, 1
      %p28 = scmp.eq.s32.totalorder %s16, 3
      %p29 = scmp.ne.s32.totalorder %s24, %s26
      %p30 = scmp.eq.s32.totalorder %s16, 0
      %p31 = por %p29, %p30
      %p32 = scmp.ne.s32.totalorder %s24, %s26
      %p33 = scmp.eq.s32.totalorder %s21, 3
      %p34 = por %p32, %p33
      %p35 = scmp.ne.s32.totalorder %s26, %s27
      %p36 = scmp.eq.s32.totalorder %s21, 0
      %p37 = por %p35, %p36
      %p38 = scmp.ne.s32.totalorder %s26, %s27
      %p39 = scmp.eq.s32.totalorder %s22, 3
      %p40 = por %p38, %p39
      %p42 = scmp.ne.s32.totalorder %s27, %s41
      %p43 = scmp.eq.s32.totalorder %s22, 0
      %p44 = por %p42, %p43
      %s46 = sadd.s32 %s45, 1
      %p49 = scmp.eq.s32.totalorder %s16, 3
      %p50 = scmp.ne.s32.totalorder %s45, %s47
      %p51 = scmp.eq.s32.totalorder %s16, 0
      %p52 = por %p50, %p51
      %p53 = scmp.ne.s32.totalorder %s45, %s47
      %p54 = scmp.eq.s32.totalorder %s21, 3
      %p55 = por %p53, %p54
      %p56 = scmp.ne.s32.totalorder %s47, %s48
      %p57 = scmp.eq.s32.totalorder %s21, 0
      %p58 = por %p56, %p57
      %p59 = scmp.ne.s32.totalorder %s47, %s48
      %p60 = scmp.eq.s32.totalorder %s22, 3
      %p61 = por %p59, %p60
      %p63 = scmp.ne.s32.totalorder %s48, %s62
      %p64 = scmp.eq.s32.totalorder %s22, 0
      %p65 = por %p63, %p64
      %s67 = sadd.s32 %s66, 1
      %p70 = scmp.eq.s32.totalorder %s16, 3
      %p71 = scmp.ne.s32.totalorder %s66, %s68
      %p72 = scmp.eq.s32.totalorder %s16, 0
      %p73 = por %p71, %p72
      %p74 = scmp.ne.s32.totalorder %s66, %s68
      %p75 = scmp.eq.s32.totalorder %s21, 3
      %p76 = por %p74, %p75
      %p77 = scmp.ne.s32.totalorder %s68, %s69
      %p78 = scmp.eq.s32.totalorder %s21, 0
      %p79 = por %p77, %p78
      %p80 = scmp.ne.s32.totalorder %s68, %s69
      %p81 = scmp.eq.s32.totalorder %s22, 3
      %p82 = por %p80, %p81
      %p84 = scmp.ne.s32.totalorder %s69, %s83
      %p85 = scmp.eq.s32.totalorder %s22, 0
      %p86 = por %p84, %p85
      %s88 = sadd.s32 %s87, 1
      %p91 = scmp.eq.s32.totalorder %s16, 3
      %p92 = scmp.ne.s32.totalorder %s87, %s89
      %p93 = scmp.eq.s32.totalorder %s16, 0
      %p94 = por %p92, %p93
      %p95 = scmp.ne.s32.totalorder %s87, %s89
      %p96 = scmp.eq.s32.totalorder %s21, 3
      %p97 = por %p95, %p96
      %p98 = scmp.ne.s32.totalorder %s89, %s90
      %p99 = scmp.eq.s32.totalorder %s21, 0
      %p100 = por %p98, %p99
      %p101 = scmp.ne.s32.totalorder %s89, %s90
      %p102 = scmp.eq.s32.totalorder %s22, 3
      %p103 = por %p101, %p102
      %p105 = scmp.ne.s32.totalorder %s90, %s104
      %p106 = scmp.eq.s32.totalorder %s22, 0
      %p107 = por %p105, %p106
      %s109 = sadd.s32 %s108, 1
      %p112 = scmp.eq.s32.totalorder %s16, 3
      %p113 = scmp.ne.s32.totalorder %s108, %s110
      %p114 = scmp.eq.s32.totalorder %s16, 0
      %p115 = por %p113, %p114
      %p116 = scmp.ne.s32.totalorder %s108, %s110
      %p117 = scmp.eq.s32.totalorder %s21, 3
      %p118 = por %p116, %p117
      %p119 = scmp.ne.s32.totalorder %s110, %s111
      %p120 = scmp.eq.s32.totalorder %s21, 0
      %p121 = por %p119, %p120
      %p122 = scmp.ne.s32.totalorder %s110, %s111
      %p123 = scmp.eq.s32.totalorder %s22, 3
      %p124 = por %p122, %p123
      %p126 = scmp.ne.s32.totalorder %s111, %s125
      %p127 = scmp.eq.s32.totalorder %s22, 0
      %p128 = por %p126, %p127
      %s129 = ssub.s32 %s16, %s23
      %p130 = scmp.eq.s32.totalorder %s129, 0
      %s132 = sadd.s32 %s131, 1
      %s133 = scalar_select %p130, %s131, %s132
      %p136 = pneg %p130
      %p137 = scmp.eq.s32.totalorder %s16, 3
      %p138 = por %p136, %p137
      %p139 = scmp.ne.s32.totalorder %s131, %s134
      %p140 = scmp.eq.s32.totalorder %s16, 0
      %p141 = por %p139, %p140
      %p142 = scmp.ne.s32.totalorder %s131, %s134
      %p143 = scmp.eq.s32.totalorder %s21, 3
      %p144 = por %p142, %p143
      %p145 = scmp.ne.s32.totalorder %s134, %s135
      %p146 = scmp.eq.s32.totalorder %s21, 0
      %p147 = por %p145, %p146
      %p148 = scmp.ne.s32.totalorder %s134, %s135
      %p149 = scmp.eq.s32.totalorder %s22, 3
      %p150 = por %p148, %p149
      %p152 = scmp.ne.s32.totalorder %s135, %s151
      %p153 = scmp.eq.s32.totalorder %s22, 0
      %p154 = por %p152, %p153
      %s155 = ssub.s32 %s16, %s23
      %p156 = scmp.eq.s32.totalorder %s155, 0
      %s158 = sadd.s32 %s157, 1
      %s159 = scalar_select %p156, %s157, %s158
      %p162 = pneg %p156
      %p163 = scmp.eq.s32.totalorder %s16, 3
      %p164 = por %p162, %p163
      %p165 = scmp.ne.s32.totalorder %s157, %s160
      %p166 = scmp.eq.s32.totalorder %s16, 0
      %p167 = por %p165, %p166
      %p168 = scmp.ne.s32.totalorder %s157, %s160
      %p169 = scmp.eq.s32.totalorder %s21, 3
      %p170 = por %p168, %p169
      %p171 = scmp.ne.s32.totalorder %s160, %s161
      %p172 = scmp.eq.s32.totalorder %s21, 0
      %p173 = por %p171, %p172
      %p174 = scmp.ne.s32.totalorder %s160, %s161
      %p175 = scmp.eq.s32.totalorder %s22, 3
      %p176 = por %p174, %p175
      %p178 = scmp.ne.s32.totalorder %s161, %s177
      %p179 = scmp.eq.s32.totalorder %s22, 0
      %p180 = por %p178, %p179
      %s182 = sadd.s32 %s181, 1
      %p185 = scmp.eq.s32.totalorder %s16, 3
      %p186 = scmp.ne.s32.totalorder %s181, %s183
      %p187 = scmp.eq.s32.totalorder %s16, 0
      %p188 = por %p186, %p187
      %p189 = scmp.ne.s32.totalorder %s181, %s183
      %p190 = scmp.eq.s32.totalorder %s21, 3
      %p191 = por %p189, %p190
      %p192 = scmp.ne.s32.totalorder %s183, %s184
      %p193 = scmp.eq.s32.totalorder %s21, 0
      %p194 = por %p192, %p193
      %p195 = scmp.ne.s32.totalorder %s183, %s184
      %p196 = scmp.eq.s32.totalorder %s22, 3
      %p197 = por %p195, %p196
      %p199 = scmp.ne.s32.totalorder %s184, %s198
      %p200 = scmp.eq.s32.totalorder %s22, 0
      %p201 = por %p199, %p200
      %p202 = scmp.le.s32.totalorder 1, %s16
      %p203 = scmp.lt.s32.totalorder %s16, 5
      %p204 = pnand %p202, %p203
      %p205 = pneg %p204
      // Predicated region
      $region9: #{tuckertnt_forward.2} parent=5 // pred_check
        _
      $region10: #{tuckertnt_forward.2} parent=5 // pred_check_branch
        %207 = sbr.rel (%p204) target = $region12
      $region11: #{tuckertnt_forward.2} parent=5 // pred_region
        %s208 = ssub.s32 %s16, 1
        // Predicated region
        $region13: #{tuckertnt_forward.2} parent=11 // pred_check
          %p209 = pneg %p37
        $region14: #{tuckertnt_forward.2} parent=11 // pred_check_branch
          %211 = sbr.rel (%p209) target = $region16
        $region15: #{tuckertnt_forward.2} parent=11 // pred_region
          _
        $region16: #{tuckertnt_forward.2} parent=11 // pred_fallthru
          _
        // Predicated region
        $region17: #{tuckertnt_forward.2} parent=11 // pred_check
          %p212 = pneg %p58
        $region18: #{tuckertnt_forward.2} parent=11 // pred_check_branch
          %214 = sbr.rel (%p212) target = $region20
        $region19: #{tuckertnt_forward.2} parent=11 // pred_region
          _
        $region20: #{tuckertnt_forward.2} parent=11 // pred_fallthru
          _
        // Predicated region
        $region21: #{tuckertnt_forward.2} parent=11 // pred_check
          %p215 = pneg %p79
        $region22: #{tuckertnt_forward.2} parent=11 // pred_check_branch
          %217 = sbr.rel (%p215) target = $region24
        $region23: #{tuckertnt_forward.2} parent=11 // pred_region
          _
        $region24: #{tuckertnt_forward.2} parent=11 // pred_fallthru
          _
        // Predicated region
        $region25: #{tuckertnt_forward.2} parent=11 // pred_check
          %p218 = pneg %p100
        $region26: #{tuckertnt_forward.2} parent=11 // pred_check_branch
          %220 = sbr.rel (%p218) target = $region28
        $region27: #{tuckertnt_forward.2} parent=11 // pred_region
          _
        $region28: #{tuckertnt_forward.2} parent=11 // pred_fallthru
          _
        // Predicated region
        $region29: #{tuckertnt_forward.2} parent=11 // pred_check
          %p221 = pneg %p121
        $region30: #{tuckertnt_forward.2} parent=11 // pred_check_branch
          %223 = sbr.rel (%p221) target = $region32
        $region31: #{tuckertnt_forward.2} parent=11 // pred_region
          _
        $region32: #{tuckertnt_forward.2} parent=11 // pred_fallthru
          _
      $region12: #{tuckertnt_forward.2} parent=5 // pred_fallthru
        _
      %p224 = scmp.lt.s32.totalorder %s16, 4
      // Predicated region
      $region33: #{tuckertnt_forward.2} parent=5 // pred_check
        %p225 = pneg %p224
      $region34: #{tuckertnt_forward.2} parent=5 // pred_check_branch
        %227 = sbr.rel (%p225) target = $region36
      $region35: #{tuckertnt_forward.2} parent=5 // pred_region
        // Predicated region
        $region37: #{tuckertnt_forward.2} parent=35 // pred_check
          %p228 = pneg %p141
        $region38: #{tuckertnt_forward.2} parent=35 // pred_check_branch
          %230 = sbr.rel (%p228) target = $region40
        $region39: #{tuckertnt_forward.2} parent=35 // pred_region
          %s231 = smul.u32 32, %s16
          %p232 = scmp.lt.s32.totalorder %s231, 127
          %s233 = scalar_select %p232, %s231, 127
          %s234 = smul.addr %s233, 8
          %s235 = scalar_lea.vmem %s5, %s234
          %s236 = smul.u32 32, %s16
        $region40: #{tuckertnt_forward.2} parent=35 // pred_fallthru
          _
        // Predicated region
        $region41: #{tuckertnt_forward.2} parent=35 // pred_check
          %p237 = pneg %p167
        $region42: #{tuckertnt_forward.2} parent=35 // pred_check_branch
          %239 = sbr.rel (%p237) target = $region44
        $region43: #{tuckertnt_forward.2} parent=35 // pred_region
          %s240 = sand.u32 %s157, 1
          %s241 = scalar_lea.sflag [#allocation4], %s240
          %s242 = sand.u32 %s157, 1
          %s243 = smul.addr %s242, 2048
          %s244 = scalar_lea.vmem [#allocation3], %s243
          %s245 = smul.u32 32, %s16
          %s247 = ssub.s32 32768, 32768
          %248 = vsyncadd %s241, %s247
          %s249 = smul.addr %s245, 16
          %s250 = smul.addr %s249, 64
          %s251 = scalar_lea.hbm %s6, %s250
          %s252 = sshll.u32 %s244, 4
          %s253 = int_to_ptr.vmem [resolvable:$true] %s252
          %258 = dma.hbm_to_vmem [thread:$0]  %s251, 32768, %s253, %s241, 64, 64, 4
        $region44: #{tuckertnt_forward.2} parent=35 // pred_fallthru
          _
      $region36: #{tuckertnt_forward.2} parent=5 // pred_fallthru
        _
      %p259 = scmp.le.s32.totalorder 1, %s16
      %p260 = scmp.lt.s32.totalorder %s16, 5
      %p261 = pnand %p259, %p260
      %p262 = pneg %p261
      // Predicated region
      $region45: #{tuckertnt_forward.2} parent=5 // pred_check
        _
      $region46: #{tuckertnt_forward.2} parent=5 // pred_check_branch
        %264 = sbr.rel (%p261) target = $region48
      $region47: #{tuckertnt_forward.2} parent=5 // pred_region
        %s265 = ssub.s32 %s16, 1
        %s266 = sand.u32 %s160, 1
        %s267 = scalar_lea.sflag [#allocation4], %s266
        %s268 = sand.u32 %s160, 1
        %s269 = smul.addr %s268, 2048
        %s270 = scalar_lea.vmem [#allocation3], %s269
        // Predicated region
        $region49: #{tuckertnt_forward.2} parent=47 // pred_check
          %p271 = pneg %p173
        $region50: #{tuckertnt_forward.2} parent=47 // pred_check_branch
          %273 = sbr.rel (%p271) target = $region52
        $region51: #{tuckertnt_forward.2} parent=47 // pred_region
          %274 = dma.done %s267, 32768
        $region52: #{tuckertnt_forward.2} parent=47 // pred_fallthru
          _
        %p275 = pneg %p37
        %p276 = pneg %p34
        %p277 = pneg %p58
        %p278 = pneg %p55
        %p279 = pneg %p79
        %p280 = pneg %p76
        %p281 = pneg %p100
        %p282 = pneg %p97
        %p283 = pneg %p121
        %p284 = pneg %p118
        %s285 = smul.u32 32, %s21
        %p286 = scmp.lt.s32.totalorder %s285, 127
        %s287 = scalar_select %p286, %s285, 127
        %s288 = smul.addr %s287, 8
        %s289 = scalar_lea.vmem %s5, %s288
        %p290 = pneg %p147
        %p291 = pneg %p144
        %s292 = sand.u32 %s160, 1
        %s293 = scalar_lea.sflag [#allocation4], %s292
        %s294 = sand.u32 %s160, 1
        %s295 = smul.addr %s294, 2048
        %s296 = scalar_lea.vmem [#allocation3], %s295
        %p297 = pneg %p173
        %p298 = pneg %p170
        %p299 = pneg %p194
        %p300 = pneg %p191
        %s301 = smul.u32 32, %s21
        %p302 = scmp.lt.s32.totalorder %s301, 127
        %s303 = scalar_select %p302, %s301, 127
        %s304 = smul.addr %s303, 8
        %s305 = scalar_lea.vmem %s5, %s304
        %s306 = smul.u32 32, %s21
        %s307 = smul.u32 32, %s21
        %p309 = scmp.eq.s32.totalorder %s21, 0
        // Predicated region
        $region53: #{tuckertnt_forward.2} parent=47 // pred_check
          %p310 = pneg %p309
        $region54: #{tuckertnt_forward.2} parent=47 // pred_check_branch
          %312 = sbr.rel (%p310) target = $region56
        $region55: #{tuckertnt_forward.2} parent=47 // pred_region
          %313 = vst [vmem:[#allocation2] sm:$0xff] 0.0
        $region56: #{tuckertnt_forward.2} parent=47 // pred_fallthru
          _
        %v314 = vld [vmem:[%s0] sm:$0xff]
        %v315 = vld [vmem:[%s1] sm:$0x1]
        %v317 = vlaneseq
        %v318 = vshrl.u32 %v317, 7
        %v319 = vsub.s32 0, %v318
        %v320 = vrot.slane %v315, %v319
        %v322 = vmul.f32 %v314, %v320
        %v323 = vld [vmem:[%s2] sm:$0x1]
        %v325 = vlaneseq
        %v326 = vshrl.u32 %v325, 7
        %v327 = vsub.s32 0, %v326
        %v328 = vrot.slane %v323, %v327
        %v330 = vadd.f32 %v322, %v328
        %v331 = vpack.c.bf16 %v330, %v330
        %v332 = vld [vmem:[#allocation2] sm:$0xff]
        %v333 = vld [vmem:[%s270] sm:$0xf]
        %v334 = vld [vmem:[%s270 + $0x4] sm:$0xf]
        %v335 = vld [vmem:[%s270 + $0x8] sm:$0xf]
        %v336 = vld [vmem:[%s270 + $0xc] sm:$0xf]
        %v337 = vld [vmem:[%s270 + $0x10] sm:$0xf]
        %v338 = vld [vmem:[%s270 + $0x14] sm:$0xf]
        %v339 = vld [vmem:[%s270 + $0x18] sm:$0xf]
        %v340 = vld [vmem:[%s270 + $0x1c] sm:$0xf]
        %v341 = vld [vmem:[%s270 + $0x20] sm:$0xf]
        %v342 = vld [vmem:[%s270 + $0x24] sm:$0xf]
        %v343 = vld [vmem:[%s270 + $0x28] sm:$0xf]
        %v344 = vld [vmem:[%s270 + $0x2c] sm:$0xf]
        %v345 = vld [vmem:[%s270 + $0x30] sm:$0xf]
        %v346 = vld [vmem:[%s270 + $0x34] sm:$0xf]
        %v347 = vld [vmem:[%s270 + $0x38] sm:$0xf]
        %v348 = vld [vmem:[%s270 + $0x3c] sm:$0xf]
        %v365 = vunpack.c.l.b16 %v333
        %v366 = vunpack.c.l.b16 %v334
        %v367 = vunpack.c.l.b16 %v335
        %v368 = vunpack.c.l.b16 %v336
        %v369 = vunpack.c.l.b16 %v337
        %v370 = vunpack.c.l.b16 %v338
        %v371 = vunpack.c.l.b16 %v339
        %v372 = vunpack.c.l.b16 %v340
        %v373 = vunpack.c.l.b16 %v341
        %v374 = vunpack.c.l.b16 %v342
        %v375 = vunpack.c.l.b16 %v343
        %v376 = vunpack.c.l.b16 %v344
        %v377 = vunpack.c.l.b16 %v345
        %v378 = vunpack.c.l.b16 %v346
        %v379 = vunpack.c.l.b16 %v347
        %v380 = vunpack.c.l.b16 %v348
        %v381 = vpack.c.b16 %v366, %v365
        %v382 = vpack.c.b16 %v368, %v367
        %v383 = vpack.c.b16 %v370, %v369
        %v384 = vpack.c.b16 %v372, %v371
        %v385 = vpack.c.b16 %v374, %v373
        %v386 = vpack.c.b16 %v376, %v375
        %v387 = vpack.c.b16 %v378, %v377
        %v388 = vpack.c.b16 %v380, %v379
        %397 = vmatprep.subr.bf16.mxu0 0
        %398 = vmatpush1.bf16.msra.mxu0 %v381
        %399 = vmatprep.subr.bf16.mxu0 0
        %400 = vmatpush1.bf16.msra.mxu0 %v382
        %401 = vmatprep.subr.bf16.mxu0 0
        %402 = vmatpush1.bf16.msra.mxu0 %v383
        %403 = vmatprep.subr.bf16.mxu0 0
        %404 = vmatpush1.bf16.msra.mxu0 %v384
        %405 = vmatprep.subr.bf16.mxu0 0
        %406 = vmatpush1.bf16.msra.mxu0 %v385
        %407 = vmatprep.subr.bf16.mxu0 0
        %408 = vmatpush1.bf16.msra.mxu0 %v386
        %409 = vmatprep.subr.bf16.mxu0 0
        %410 = vmatpush1.bf16.msra.mxu0 %v387
        %411 = vmatprep.subr.bf16.mxu0 0
        %412 = vmatpush1.bf16.msra.mxu0 %v388
        %413 = vmatprep.subr.bf16.mxu0 0
        %414 = vmatpush1.bf16.msra.mxu0 0
        %415 = vmatprep.subr.bf16.mxu0 0
        %416 = vmatpush1.bf16.msra.mxu0 0
        %417 = vmatprep.subr.bf16.mxu0 0
        %418 = vmatpush1.bf16.msra.mxu0 0
        %419 = vmatprep.subr.bf16.mxu0 0
        %420 = vmatpush1.bf16.msra.mxu0 0
        %421 = vmatprep.subr.bf16.mxu0 0
        %422 = vmatpush1.bf16.msra.mxu0 0
        %423 = vmatprep.subr.bf16.mxu0 0
        %424 = vmatpush1.bf16.msra.mxu0 0
        %425 = vmatprep.subr.bf16.mxu0 0
        %426 = vmatpush1.bf16.msra.mxu0 0
        %427 = vmatprep.subr.bf16.mxu0 0
        %428 = vmatpush1.bf16.msra.mxu0 0
        %429 = vmatprep.mubr.bf16.mxu0 0
        %430 = vmatmul.mubr.bf16.gmra.mrb[0].mxu0 %v331
        %v431 = vpop.f32.mrb[0].mxu0
        %v432 = vadd.f32 0.0, %v431
        %v433 = vpop.f32.mrb[0].mxu0
        %v434 = vpop.f32.mrb[0].mxu0
        %v435 = vpop.f32.mrb[0].mxu0
        %436 = vdwg.mxu0
        %v437 = vld [vmem:[%s305] sm:$0xff]
        %439 = vset.pattern.permute.xlu0 0
        %440 = vperm.xlu0 %439, %v437
        %v441 = vpop.permute.xlu0 %440
        %v443 = vmul.f32 %v441, %v432
        %v444 = vadd.f32 %v332, %v443
        %s445 = scalar_lea.vmem %s270, 64 [#allocation3]
        %v446 = vld [vmem:[%s445] sm:$0xf]
        %v447 = vld [vmem:[%s445 + $0x4] sm:$0xf]
        %v448 = vld [vmem:[%s445 + $0x8] sm:$0xf]
        %v449 = vld [vmem:[%s445 + $0xc] sm:$0xf]
        %v450 = vld [vmem:[%s445 + $0x10] sm:$0xf]
        %v451 = vld [vmem:[%s445 + $0x14] sm:$0xf]
        %v452 = vld [vmem:[%s445 + $0x18] sm:$0xf]
        %v453 = vld [vmem:[%s445 + $0x1c] sm:$0xf]
        %v454 = vld [vmem:[%s445 + $0x20] sm:$0xf]
        %v455 = vld [vmem:[%s445 + $0x24] sm:$0xf]
        %v456 = vld [vmem:[%s445 + $0x28] sm:$0xf]
        %v457 = vld [vmem:[%s445 + $0x2c] sm:$0xf]
        %v458 = vld [vmem:[%s445 + $0x30] sm:$0xf]
        %v459 = vld [vmem:[%s445 + $0x34] sm:$0xf]
        %v460 = vld [vmem:[%s445 + $0x38] sm:$0xf]
        %v461 = vld [vmem:[%s445 + $0x3c] sm:$0xf]
        %v478 = vunpack.c.l.b16 %v446
        %v479 = vunpack.c.l.b16 %v447
        %v480 = vunpack.c.l.b16 %v448
        %v481 = vunpack.c.l.b16 %v449
        %v482 = vunpack.c.l.b16 %v450
        %v483 = vunpack.c.l.b16 %v451
        %v484 = vunpack.c.l.b16 %v452
        %v485 = vunpack.c.l.b16 %v453
        %v486 = vunpack.c.l.b16 %v454
        %v487 = vunpack.c.l.b16 %v455
        %v488 = vunpack.c.l.b16 %v456
        %v489 = vunpack.c.l.b16 %v457
        %v490 = vunpack.c.l.b16 %v458
        %v491 = vunpack.c.l.b16 %v459
        %v492 = vunpack.c.l.b16 %v460
        %v493 = vunpack.c.l.b16 %v461
        %v494 = vpack.c.b16 %v479, %v478
        %v495 = vpack.c.b16 %v481, %v480
        %v496 = vpack.c.b16 %v483, %v482
        %v497 = vpack.c.b16 %v485, %v484
        %v498 = vpack.c.b16 %v487, %v486
        %v499 = vpack.c.b16 %v489, %v488
        %v500 = vpack.c.b16 %v491, %v490
        %v501 = vpack.c.b16 %v493, %v492
        %510 = vmatprep.subr.bf16.mxu0 0
        %511 = vmatpush1.bf16.msra.mxu0 %v494
        %512 = vmatprep.subr.bf16.mxu0 0
        %513 = vmatpush1.bf16.msra.mxu0 %v495
        %514 = vmatprep.subr.bf16.mxu0 0
        %515 = vmatpush1.bf16.msra.mxu0 %v496
        %516 = vmatprep.subr.bf16.mxu0 0
        %517 = vmatpush1.bf16.msra.mxu0 %v497
        %518 = vmatprep.subr.bf16.mxu0 0
        %519 = vmatpush1.bf16.msra.mxu0 %v498
        %520 = vmatprep.subr.bf16.mxu0 0
        %521 = vmatpush1.bf16.msra.mxu0 %v499
        %522 = vmatprep.subr.bf16.mxu0 0
        %523 = vmatpush1.bf16.msra.mxu0 %v500
        %524 = vmatprep.subr.bf16.mxu0 0
        %525 = vmatpush1.bf16.msra.mxu0 %v501
        %526 = vmatprep.subr.bf16.mxu0 0
        %527 = vmatpush1.bf16.msra.mxu0 0
        %528 = vmatprep.subr.bf16.mxu0 0
        %529 = vmatpush1.bf16.msra.mxu0 0
        %530 = vmatprep.subr.bf16.mxu0 0
        %531 = vmatpush1.bf16.msra.mxu0 0
        %532 = vmatprep.subr.bf16.mxu0 0
        %533 = vmatpush1.bf16.msra.mxu0 0
        %534 = vmatprep.subr.bf16.mxu0 0
        %535 = vmatpush1.bf16.msra.mxu0 0
        %536 = vmatprep.subr.bf16.mxu0 0
        %537 = vmatpush1.bf16.msra.mxu0 0
        %538 = vmatprep.subr.bf16.mxu0 0
        %539 = vmatpush1.bf16.msra.mxu0 0
        %540 = vmatprep.subr.bf16.mxu0 0
        %541 = vmatpush1.bf16.msra.mxu0 0
        %542 = vmatprep.mubr.bf16.mxu0 0
        %543 = vmatmul.mubr.bf16.gmra.mrb[0].mxu0 %v331
        %v544 = vpop.f32.mrb[0].mxu0
        %v545 = vadd.f32 0.0, %v544
        %v546 = vpop.f32.mrb[0].mxu0
        %v547 = vpop.f32.mrb[0].mxu0
        %v548 = vpop.f32.mrb[0].mxu0
        %549 = vdwg.mxu0
        %s550 = scalar_lea.vmem %s305, 8
        %v551 = vld [vmem:[%s550] sm:$0xff]
        %553 = vset.pattern.permute.xlu0 0
        %554 = vperm.xlu0 %553, %v551
        %v555 = vpop.permute.xlu0 %554
        %v557 = vmul.f32 %v555, %v545
        %v558 = vadd.f32 %v444, %v557
        %s559 = scalar_lea.vmem %s270, 128 [#allocation3]
        %v560 = vld [vmem:[%s559] sm:$0xf]
        %v561 = vld [vmem:[%s559 + $0x4] sm:$0xf]
        %v562 = vld [vmem:[%s559 + $0x8] sm:$0xf]
        %v563 = vld [vmem:[%s559 + $0xc] sm:$0xf]
        %v564 = vld [vmem:[%s559 + $0x10] sm:$0xf]
        %v565 = vld [vmem:[%s559 + $0x14] sm:$0xf]
        %v566 = vld [vmem:[%s559 + $0x18] sm:$0xf]
        %v567 = vld [vmem:[%s559 + $0x1c] sm:$0xf]
        %v568 = vld [vmem:[%s559 + $0x20] sm:$0xf]
        %v569 = vld [vmem:[%s559 + $0x24] sm:$0xf]
        %v570 = vld [vmem:[%s559 + $0x28] sm:$0xf]
        %v571 = vld [vmem:[%s559 + $0x2c] sm:$0xf]
        %v572 = vld [vmem:[%s559 + $0x30] sm:$0xf]
        %v573 = vld [vmem:[%s559 + $0x34] sm:$0xf]
        %v574 = vld [vmem:[%s559 + $0x38] sm:$0xf]
        %v575 = vld [vmem:[%s559 + $0x3c] sm:$0xf]
        %v592 = vunpack.c.l.b16 %v560
        %v593 = vunpack.c.l.b16 %v561
        %v594 = vunpack.c.l.b16 %v562
        %v595 = vunpack.c.l.b16 %v563
        %v596 = vunpack.c.l.b16 %v564
        %v597 = vunpack.c.l.b16 %v565
        %v598 = vunpack.c.l.b16 %v566
        %v599 = vunpack.c.l.b16 %v567
        %v600 = vunpack.c.l.b16 %v568
        %v601 = vunpack.c.l.b16 %v569
        %v602 = vunpack.c.l.b16 %v570
        %v603 = vunpack.c.l.b16 %v571
        %v604 = vunpack.c.l.b16 %v572
        %v605 = vunpack.c.l.b16 %v573
        %v606 = vunpack.c.l.b16 %v574
        %v607 = vunpack.c.l.b16 %v575
        %v608 = vpack.c.b16 %v593, %v592
        %v609 = vpack.c.b16 %v595, %v594
        %v610 = vpack.c.b16 %v597, %v596
        %v611 = vpack.c.b16 %v599, %v598
        %v612 = vpack.c.b16 %v601, %v600
        %v613 = vpack.c.b16 %v603, %v602
        %v614 = vpack.c.b16 %v605, %v604
        %v615 = vpack.c.b16 %v607, %v606
        %624 = vmatprep.subr.bf16.mxu0 0
        %625 = vmatpush1.bf16.msra.mxu0 %v608
        %626 = vmatprep.subr.bf16.mxu0 0
        %627 = vmatpush1.bf16.msra.mxu0 %v609
        %628 = vmatprep.subr.bf16.mxu0 0
        %629 = vmatpush1.bf16.msra.mxu0 %v610
        %630 = vmatprep.subr.bf16.mxu0 0
        %631 = vmatpush1.bf16.msra.mxu0 %v611
        %632 = vmatprep.subr.bf16.mxu0 0
        %633 = vmatpush1.bf16.msra.mxu0 %v612
        %634 = vmatprep.subr.bf16.mxu0 0
        %635 = vmatpush1.bf16.msra.mxu0 %v613
        %636 = vmatprep.subr.bf16.mxu0 0
        %637 = vmatpush1.bf16.msra.mxu0 %v614
        %638 = vmatprep.subr.bf16.mxu0 0
        %639 = vmatpush1.bf16.msra.mxu0 %v615
        %640 = vmatprep.subr.bf16.mxu0 0
        %641 = vmatpush1.bf16.msra.mxu0 0
        %642 = vmatprep.subr.bf16.mxu0 0
        %643 = vmatpush1.bf16.msra.mxu0 0
        %644 = vmatprep.subr.bf16.mxu0 0
        %645 = vmatpush1.bf16.msra.mxu0 0
        %646 = vmatprep.subr.bf16.mxu0 0
        %647 = vmatpush1.bf16.msra.mxu0 0
        %648 = vmatprep.subr.bf16.mxu0 0
        %649 = vmatpush1.bf16.msra.mxu0 0
        %650 = vmatprep.subr.bf16.mxu0 0
        %651 = vmatpush1.bf16.msra.mxu0 0
        %652 = vmatprep.subr.bf16.mxu0 0
        %653 = vmatpush1.bf16.msra.mxu0 0
        %654 = vmatprep.subr.bf16.mxu0 0
        %655 = vmatpush1.bf16.msra.mxu0 0
        %656 = vmatprep.mubr.bf16.mxu0 0
        %657 = vmatmul.mubr.bf16.gmra.mrb[0].mxu0 %v331
        %v658 = vpop.f32.mrb[0].mxu0
        %v659 = vadd.f32 0.0, %v658
        %v660 = vpop.f32.mrb[0].mxu0
        %v661 = vpop.f32.mrb[0].mxu0
        %v662 = vpop.f32.mrb[0].mxu0
        %663 = vdwg.mxu0
        %s664 = scalar_lea.vmem %s305, 16
        %v665 = vld [vmem:[%s664] sm:$0xff]
        %667 = vset.pattern.permute.xlu0 0
        %668 = vperm.xlu0 %667, %v665
        %v669 = vpop.permute.xlu0 %668
        %v671 = vmul.f32 %v669, %v659
        %v672 = vadd.f32 %v558, %v671
        %s673 = scalar_lea.vmem %s270, 192 [#allocation3]
        %v674 = vld [vmem:[%s673] sm:$0xf]
        %v675 = vld [vmem:[%s673 + $0x4] sm:$0xf]
        %v676 = vld [vmem:[%s673 + $0x8] sm:$0xf]
        %v677 = vld [vmem:[%s673 + $0xc] sm:$0xf]
        %v678 = vld [vmem:[%s673 + $0x10] sm:$0xf]
        %v679 = vld [vmem:[%s673 + $0x14] sm:$0xf]
        %v680 = vld [vmem:[%s673 + $0x18] sm:$0xf]
        %v681 = vld [vmem:[%s673 + $0x1c] sm:$0xf]
        %v682 = vld [vmem:[%s673 + $0x20] sm:$0xf]
        %v683 = vld [vmem:[%s673 + $0x24] sm:$0xf]
        %v684 = vld [vmem:[%s673 + $0x28] sm:$0xf]
        %v685 = vld [vmem:[%s673 + $0x2c] sm:$0xf]
        %v686 = vld [vmem:[%s673 + $0x30] sm:$0xf]
        %v687 = vld [vmem:[%s673 + $0x34] sm:$0xf]
        %v688 = vld [vmem:[%s673 + $0x38] sm:$0xf]
        %v689 = vld [vmem:[%s673 + $0x3c] sm:$0xf]
        %v706 = vunpack.c.l.b16 %v674
        %v707 = vunpack.c.l.b16 %v675
        %v708 = vunpack.c.l.b16 %v676
        %v709 = vunpack.c.l.b16 %v677
        %v710 = vunpack.c.l.b16 %v678
        %v711 = vunpack.c.l.b16 %v679
        %v712 = vunpack.c.l.b16 %v680
        %v713 = vunpack.c.l.b16 %v681
        %v714 = vunpack.c.l.b16 %v682
        %v715 = vunpack.c.l.b16 %v683
        %v716 = vunpack.c.l.b16 %v684
        %v717 = vunpack.c.l.b16 %v685
        %v718 = vunpack.c.l.b16 %v686
        %v719 = vunpack.c.l.b16 %v687
        %v720 = vunpack.c.l.b16 %v688
        %v721 = vunpack.c.l.b16 %v689
        %v722 = vpack.c.b16 %v707, %v706
        %v723 = vpack.c.b16 %v709, %v708
        %v724 = vpack.c.b16 %v711, %v710
        %v725 = vpack.c.b16 %v713, %v712
        %v726 = vpack.c.b16 %v715, %v714
        %v727 = vpack.c.b16 %v717, %v716
        %v728 = vpack.c.b16 %v719, %v718
        %v729 = vpack.c.b16 %v721, %v720
        %738 = vmatprep.subr.bf16.mxu0 0
        %739 = vmatpush1.bf16.msra.mxu0 %v722
        %740 = vmatprep.subr.bf16.mxu0 0
        %741 = vmatpush1.bf16.msra.mxu0 %v723
        %742 = vmatprep.subr.bf16.mxu0 0
        %743 = vmatpush1.bf16.msra.mxu0 %v724
        %744 = vmatprep.subr.bf16.mxu0 0
        %745 = vmatpush1.bf16.msra.mxu0 %v725
        %746 = vmatprep.subr.bf16.mxu0 0
        %747 = vmatpush1.bf16.msra.mxu0 %v726
        %748 = vmatprep.subr.bf16.mxu0 0
        %749 = vmatpush1.bf16.msra.mxu0 %v727
        %750 = vmatprep.subr.bf16.mxu0 0
        %751 = vmatpush1.bf16.msra.mxu0 %v728
        %752 = vmatprep.subr.bf16.mxu0 0
        %753 = vmatpush1.bf16.msra.mxu0 %v729
        %754 = vmatprep.subr.bf16.mxu0 0
        %755 = vmatpush1.bf16.msra.mxu0 0
        %756 = vmatprep.subr.bf16.mxu0 0
        %757 = vmatpush1.bf16.msra.mxu0 0
        %758 = vmatprep.subr.bf16.mxu0 0
        %759 = vmatpush1.bf16.msra.mxu0 0
        %760 = vmatprep.subr.bf16.mxu0 0
        %761 = vmatpush1.bf16.msra.mxu0 0
        %762 = vmatprep.subr.bf16.mxu0 0
        %763 = vmatpush1.bf16.msra.mxu0 0
        %764 = vmatprep.subr.bf16.mxu0 0
        %765 = vmatpush1.bf16.msra.mxu0 0
        %766 = vmatprep.subr.bf16.mxu0 0
        %767 = vmatpush1.bf16.msra.mxu0 0
        %768 = vmatprep.subr.bf16.mxu0 0
        %769 = vmatpush1.bf16.msra.mxu0 0
        %770 = vmatprep.mubr.bf16.mxu0 0
        %771 = vmatmul.mubr.bf16.gmra.mrb[0].mxu0 %v331
        %v772 = vpop.f32.mrb[0].mxu0
        %v773 = vadd.f32 0.0, %v772
        %v774 = vpop.f32.mrb[0].mxu0
        %v775 = vpop.f32.mrb[0].mxu0
        %v776 = vpop.f32.mrb[0].mxu0
        %777 = vdwg.mxu0
        %s778 = scalar_lea.vmem %s305, 24
        %v779 = vld [vmem:[%s778] sm:$0xff]
        %781 = vset.pattern.permute.xlu0 0
        %782 = vperm.xlu0 %781, %v779
        %v783 = vpop.permute.xlu0 %782
        %v785 = vmul.f32 %v783, %v773
        %v786 = vadd.f32 %v672, %v785
        %s787 = scalar_lea.vmem %s270, 256 [#allocation3]
        %v788 = vld [vmem:[%s787] sm:$0xf]
        %v789 = vld [vmem:[%s787 + $0x4] sm:$0xf]
        %v790 = vld [vmem:[%s787 + $0x8] sm:$0xf]
        %v791 = vld [vmem:[%s787 + $0xc] sm:$0xf]
        %v792 = vld [vmem:[%s787 + $0x10] sm:$0xf]
        %v793 = vld [vmem:[%s787 + $0x14] sm:$0xf]
        %v794 = vld [vmem:[%s787 + $0x18] sm:$0xf]
        %v795 = vld [vmem:[%s787 + $0x1c] sm:$0xf]
        %v796 = vld [vmem:[%s787 + $0x20] sm:$0xf]
        %v797 = vld [vmem:[%s787 + $0x24] sm:$0xf]
        %v798 = vld [vmem:[%s787 + $0x28] sm:$0xf]
        %v799 = vld [vmem:[%s787 + $0x2c] sm:$0xf]
        %v800 = vld [vmem:[%s787 + $0x30] sm:$0xf]
        %v801 = vld [vmem:[%s787 + $0x34] sm:$0xf]
        %v802 = vld [vmem:[%s787 + $0x38] sm:$0xf]
        %v803 = vld [vmem:[%s787 + $0x3c] sm:$0xf]
        %v820 = vunpack.c.l.b16 %v788
        %v821 = vunpack.c.l.b16 %v789
        %v822 = vunpack.c.l.b16 %v790
        %v823 = vunpack.c.l.b16 %v791
        %v824 = vunpack.c.l.b16 %v792
        %v825 = vunpack.c.l.b16 %v793
        %v826 = vunpack.c.l.b16 %v794
        %v827 = vunpack.c.l.b16 %v795
        %v828 = vunpack.c.l.b16 %v796
        %v829 = vunpack.c.l.b16 %v797
        %v830 = vunpack.c.l.b16 %v798
        %v831 = vunpack.c.l.b16 %v799
        %v832 = vunpack.c.l.b16 %v800
        %v833 = vunpack.c.l.b16 %v801
        %v834 = vunpack.c.l.b16 %v802
        %v835 = vunpack.c.l.b16 %v803
        %v836 = vpack.c.b16 %v821, %v820
        %v837 = vpack.c.b16 %v823, %v822
        %v838 = vpack.c.b16 %v825, %v824
        %v839 = vpack.c.b16 %v827, %v826
        %v840 = vpack.c.b16 %v829, %v828
        %v841 = vpack.c.b16 %v831, %v830
        %v842 = vpack.c.b16 %v833, %v832
        %v843 = vpack.c.b16 %v835, %v834
        %852 = vmatprep.subr.bf16.mxu0 0
        %853 = vmatpush1.bf16.msra.mxu0 %v836
        %854 = vmatprep.subr.bf16.mxu0 0
        %855 = vmatpush1.bf16.msra.mxu0 %v837
        %856 = vmatprep.subr.bf16.mxu0 0
        %857 = vmatpush1.bf16.msra.mxu0 %v838
        %858 = vmatprep.subr.bf16.mxu0 0
        %859 = vmatpush1.bf16.msra.mxu0 %v839
        %860 = vmatprep.subr.bf16.mxu0 0
        %861 = vmatpush1.bf16.msra.mxu0 %v840
        %862 = vmatprep.subr.bf16.mxu0 0
        %863 = vmatpush1.bf16.msra.mxu0 %v841
        %864 = vmatprep.subr.bf16.mxu0 0
        %865 = vmatpush1.bf16.msra.mxu0 %v842
        %866 = vmatprep.subr.bf16.mxu0 0
        %867 = vmatpush1.bf16.msra.mxu0 %v843
        %868 = vmatprep.subr.bf16.mxu0 0
        %869 = vmatpush1.bf16.msra.mxu0 0
        %870 = vmatprep.subr.bf16.mxu0 0
        %871 = vmatpush1.bf16.msra.mxu0 0
        %872 = vmatprep.subr.bf16.mxu0 0
        %873 = vmatpush1.bf16.msra.mxu0 0
        %874 = vmatprep.subr.bf16.mxu0 0
        %875 = vmatpush1.bf16.msra.mxu0 0
        %876 = vmatprep.subr.bf16.mxu0 0
        %877 = vmatpush1.bf16.msra.mxu0 0
        %878 = vmatprep.subr.bf16.mxu0 0
        %879 = vmatpush1.bf16.msra.mxu0 0
        %880 = vmatprep.subr.bf16.mxu0 0
        %881 = vmatpush1.bf16.msra.mxu0 0
        %882 = vmatprep.subr.bf16.mxu0 0
        %883 = vmatpush1.bf16.msra.mxu0 0
        %884 = vmatprep.mubr.bf16.mxu0 0
        %885 = vmatmul.mubr.bf16.gmra.mrb[0].mxu0 %v331
        %v886 = vpop.f32.mrb[0].mxu0
        %v887 = vadd.f32 0.0, %v886
        %v888 = vpop.f32.mrb[0].mxu0
        %v889 = vpop.f32.mrb[0].mxu0
        %v890 = vpop.f32.mrb[0].mxu0
        %891 = vdwg.mxu0
        %s892 = scalar_lea.vmem %s305, 32
        %v893 = vld [vmem:[%s892] sm:$0xff]
        %895 = vset.pattern.permute.xlu0 0
        %896 = vperm.xlu0 %895, %v893
        %v897 = vpop.permute.xlu0 %896
        %v899 = vmul.f32 %v897, %v887
        %v900 = vadd.f32 %v786, %v899
        %s901 = scalar_lea.vmem %s270, 320 [#allocation3]
        %v902 = vld [vmem:[%s901] sm:$0xf]
        %v903 = vld [vmem:[%s901 + $0x4] sm:$0xf]
        %v904 = vld [vmem:[%s901 + $0x8] sm:$0xf]
        %v905 = vld [vmem:[%s901 + $0xc] sm:$0xf]
        %v906 = vld [vmem:[%s901 + $0x10] sm:$0xf]
        %v907 = vld [vmem:[%s901 + $0x14] sm:$0xf]
        %v908 = vld [vmem:[%s901 + $0x18] sm:$0xf]
        %v909 = vld [vmem:[%s901 + $0x1c] sm:$0xf]
        %v910 = vld [vmem:[%s901 + $0x20] sm:$0xf]
        %v911 = vld [vmem:[%s901 + $0x24] sm:$0xf]
        %v912 = vld [vmem:[%s901 + $0x28] sm:$0xf]
        %v913 = vld [vmem:[%s901 + $0x2c] sm:$0xf]
        %v914 = vld [vmem:[%s901 + $0x30] sm:$0xf]
        %v915 = vld [vmem:[%s901 + $0x34] sm:$0xf]
        %v916 = vld [vmem:[%s901 + $0x38] sm:$0xf]
        %v917 = vld [vmem:[%s901 + $0x3c] sm:$0xf]
        %v934 = vunpack.c.l.b16 %v902
        %v935 = vunpack.c.l.b16 %v903
        %v936 = vunpack.c.l.b16 %v904
        %v937 = vunpack.c.l.b16 %v905
        %v938 = vunpack.c.l.b16 %v906
        %v939 = vunpack.c.l.b16 %v907
        %v940 = vunpack.c.l.b16 %v908
        %v941 = vunpack.c.l.b16 %v909
        %v942 = vunpack.c.l.b16 %v910
        %v943 = vunpack.c.l.b16 %v911
        %v944 = vunpack.c.l.b16 %v912
        %v945 = vunpack.c.l.b16 %v913
        %v946 = vunpack.c.l.b16 %v914
        %v947 = vunpack.c.l.b16 %v915
        %v948 = vunpack.c.l.b16 %v916
        %v949 = vunpack.c.l.b16 %v917
        %v950 = vpack.c.b16 %v935, %v934
        %v951 = vpack.c.b16 %v937, %v936
        %v952 = vpack.c.b16 %v939, %v938
        %v953 = vpack.c.b16 %v941, %v940
        %v954 = vpack.c.b16 %v943, %v942
        %v955 = vpack.c.b16 %v945, %v944
        %v956 = vpack.c.b16 %v947, %v946
        %v957 = vpack.c.b16 %v949, %v948
        %966 = vmatprep.subr.bf16.mxu0 0
        %967 = vmatpush1.bf16.msra.mxu0 %v950
        %968 = vmatprep.subr.bf16.mxu0 0
        %969 = vmatpush1.bf16.msra.mxu0 %v951
        %970 = vmatprep.subr.bf16.mxu0 0
        %971 = vmatpush1.bf16.msra.mxu0 %v952
        %972 = vmatprep.subr.bf16.mxu0 0
        %973 = vmatpush1.bf16.msra.mxu0 %v953
        %974 = vmatprep.subr.bf16.mxu0 0
        %975 = vmatpush1.bf16.msra.mxu0 %v954
        %976 = vmatprep.subr.bf16.mxu0 0
        %977 = vmatpush1.bf16.msra.mxu0 %v955
        %978 = vmatprep.subr.bf16.mxu0 0
        %979 = vmatpush1.bf16.msra.mxu0 %v956
        %980 = vmatprep.subr.bf16.mxu0 0
        %981 = vmatpush1.bf16.msra.mxu0 %v957
        %982 = vmatprep.subr.bf16.mxu0 0
        %983 = vmatpush1.bf16.msra.mxu0 0
        %984 = vmatprep.subr.bf16.mxu0 0
        %985 = vmatpush1.bf16.msra.mxu0 0
        %986 = vmatprep.subr.bf16.mxu0 0
        %987 = vmatpush1.bf16.msra.mxu0 0
        %988 = vmatprep.subr.bf16.mxu0 0
        %989 = vmatpush1.bf16.msra.mxu0 0
        %990 = vmatprep.subr.bf16.mxu0 0
        %991 = vmatpush1.bf16.msra.mxu0 0
        %992 = vmatprep.subr.bf16.mxu0 0
        %993 = vmatpush1.bf16.msra.mxu0 0
        %994 = vmatprep.subr.bf16.mxu0 0
        %995 = vmatpush1.bf16.msra.mxu0 0
        %996 = vmatprep.subr.bf16.mxu0 0
        %997 = vmatpush1.bf16.msra.mxu0 0
        %998 = vmatprep.mubr.bf16.mxu0 0
        %999 = vmatmul.mubr.bf16.gmra.mrb[0].mxu0 %v331
        %v1000 = vpop.f32.mrb[0].mxu0
        %v1001 = vadd.f32 0.0, %v1000
        %v1002 = vpop.f32.mrb[0].mxu0
        %v1003 = vpop.f32.mrb[0].mxu0
        %v1004 = vpop.f32.mrb[0].mxu0
        %1005 = vdwg.mxu0
        %s1006 = scalar_lea.vmem %s305, 40
        %v1007 = vld [vmem:[%s1006] sm:$0xff]
        %1009 = vset.pattern.permute.xlu0 0
        %1010 = vperm.xlu0 %1009, %v1007
        %v1011 = vpop.permute.xlu0 %1010
        %v1013 = vmul.f32 %v1011, %v1001
        %v1014 = vadd.f32 %v900, %v1013
        %s1015 = scalar_lea.vmem %s270, 384 [#allocation3]
        %v1016 = vld [vmem:[%s1015] sm:$0xf]
        %v1017 = vld [vmem:[%s1015 + $0x4] sm:$0xf]
        %v1018 = vld [vmem:[%s1015 + $0x8] sm:$0xf]
        %v1019 = vld [vmem:[%s1015 + $0xc] sm:$0xf]
        %v1020 = vld [vmem:[%s1015 + $0x10] sm:$0xf]
        %v1021 = vld [vmem:[%s1015 + $0x14] sm:$0xf]
        %v1022 = vld [vmem:[%s1015 + $0x18] sm:$0xf]
        %v1023 = vld [vmem:[%s1015 + $0x1c] sm:$0xf]
        %v1024 = vld [vmem:[%s1015 + $0x20] sm:$0xf]
        %v1025 = vld [vmem:[%s1015 + $0x24] sm:$0xf]
        %v1026 = vld [vmem:[%s1015 + $0x28] sm:$0xf]
        %v1027 = vld [vmem:[%s1015 + $0x2c] sm:$0xf]
        %v1028 = vld [vmem:[%s1015 + $0x30] sm:$0xf]
        %v1029 = vld [vmem:[%s1015 + $0x34] sm:$0xf]
        %v1030 = vld [vmem:[%s1015 + $0x38] sm:$0xf]
        %v1031 = vld [vmem:[%s1015 + $0x3c] sm:$0xf]
        %v1048 = vunpack.c.l.b16 %v1016
        %v1049 = vunpack.c.l.b16 %v1017
        %v1050 = vunpack.c.l.b16 %v1018
        %v1051 = vunpack.c.l.b16 %v1019
        %v1052 = vunpack.c.l.b16 %v1020
        %v1053 = vunpack.c.l.b16 %v1021
        %v1054 = vunpack.c.l.b16 %v1022
        %v1055 = vunpack.c.l.b16 %v1023
        %v1056 = vunpack.c.l.b16 %v1024
        %v1057 = vunpack.c.l.b16 %v1025
        %v1058 = vunpack.c.l.b16 %v1026
        %v1059 = vunpack.c.l.b16 %v1027
        %v1060 = vunpack.c.l.b16 %v1028
        %v1061 = vunpack.c.l.b16 %v1029
        %v1062 = vunpack.c.l.b16 %v1030
        %v1063 = vunpack.c.l.b16 %v1031
        %v1064 = vpack.c.b16 %v1049, %v1048
        %v1065 = vpack.c.b16 %v1051, %v1050
        %v1066 = vpack.c.b16 %v1053, %v1052
        %v1067 = vpack.c.b16 %v1055, %v1054
        %v1068 = vpack.c.b16 %v1057, %v1056
        %v1069 = vpack.c.b16 %v1059, %v1058
        %v1070 = vpack.c.b16 %v1061, %v1060
        %v1071 = vpack.c.b16 %v1063, %v1062
        %1080 = vmatprep.subr.bf16.mxu0 0
        %1081 = vmatpush1.bf16.msra.mxu0 %v1064
        %1082 = vmatprep.subr.bf16.mxu0 0
        %1083 = vmatpush1.bf16.msra.mxu0 %v1065
        %1084 = vmatprep.subr.bf16.mxu0 0
        %1085 = vmatpush1.bf16.msra.mxu0 %v1066
        %1086 = vmatprep.subr.bf16.mxu0 0
        %1087 = vmatpush1.bf16.msra.mxu0 %v1067
        %1088 = vmatprep.subr.bf16.mxu0 0
        %1089 = vmatpush1.bf16.msra.mxu0 %v1068
        %1090 = vmatprep.subr.bf16.mxu0 0
        %1091 = vmatpush1.bf16.msra.mxu0 %v1069
        %1092 = vmatprep.subr.bf16.mxu0 0
        %1093 = vmatpush1.bf16.msra.mxu0 %v1070
        %1094 = vmatprep.subr.bf16.mxu0 0
        %1095 = vmatpush1.bf16.msra.mxu0 %v1071
        %1096 = vmatprep.subr.bf16.mxu0 0
        %1097 = vmatpush1.bf16.msra.mxu0 0
        %1098 = vmatprep.subr.bf16.mxu0 0
        %1099 = vmatpush1.bf16.msra.mxu0 0
        %1100 = vmatprep.subr.bf16.mxu0 0
        %1101 = vmatpush1.bf16.msra.mxu0 0
        %1102 = vmatprep.subr.bf16.mxu0 0
        %1103 = vmatpush1.bf16.msra.mxu0 0
        %1104 = vmatprep.subr.bf16.mxu0 0
        %1105 = vmatpush1.bf16.msra.mxu0 0
        %1106 = vmatprep.subr.bf16.mxu0 0
        %1107 = vmatpush1.bf16.msra.mxu0 0
        %1108 = vmatprep.subr.bf16.mxu0 0
        %1109 = vmatpush1.bf16.msra.mxu0 0
        %1110 = vmatprep.subr.bf16.mxu0 0
        %1111 = vmatpush1.bf16.msra.mxu0 0
        %1112 = vmatprep.mubr.bf16.mxu0 0
        %1113 = vmatmul.mubr.bf16.gmra.mrb[0].mxu0 %v331
        %v1114 = vpop.f32.mrb[0].mxu0
        %v1115 = vadd.f32 0.0, %v1114
        %v1116 = vpop.f32.mrb[0].mxu0
        %v1117 = vpop.f32.mrb[0].mxu0
        %v1118 = vpop.f32.mrb[0].mxu0
        %1119 = vdwg.mxu0
        %s1120 = scalar_lea.vmem %s305, 48
        %v1121 = vld [vmem:[%s1120] sm:$0xff]
        %1123 = vset.pattern.permute.xlu0 0
        %1124 = vperm.xlu0 %1123, %v1121
        %v1125 = vpop.permute.xlu0 %1124
        %v1127 = vmul.f32 %v1125, %v1115
        %v1128 = vadd.f32 %v1014, %v1127
        %s1129 = scalar_lea.vmem %s270, 448 [#allocation3]
        %v1130 = vld [vmem:[%s1129] sm:$0xf]
        %v1131 = vld [vmem:[%s1129 + $0x4] sm:$0xf]
        %v1132 = vld [vmem:[%s1129 + $0x8] sm:$0xf]
        %v1133 = vld [vmem:[%s1129 + $0xc] sm:$0xf]
        %v1134 = vld [vmem:[%s1129 + $0x10] sm:$0xf]
        %v1135 = vld [vmem:[%s1129 + $0x14] sm:$0xf]
        %v1136 = vld [vmem:[%s1129 + $0x18] sm:$0xf]
        %v1137 = vld [vmem:[%s1129 + $0x1c] sm:$0xf]
        %v1138 = vld [vmem:[%s1129 + $0x20] sm:$0xf]
        %v1139 = vld [vmem:[%s1129 + $0x24] sm:$0xf]
        %v1140 = vld [vmem:[%s1129 + $0x28] sm:$0xf]
        %v1141 = vld [vmem:[%s1129 + $0x2c] sm:$0xf]
        %v1142 = vld [vmem:[%s1129 + $0x30] sm:$0xf]
        %v1143 = vld [vmem:[%s1129 + $0x34] sm:$0xf]
        %v1144 = vld [vmem:[%s1129 + $0x38] sm:$0xf]
        %v1145 = vld [vmem:[%s1129 + $0x3c] sm:$0xf]
        %v1162 = vunpack.c.l.b16 %v1130
        %v1163 = vunpack.c.l.b16 %v1131
        %v1164 = vunpack.c.l.b16 %v1132
        %v1165 = vunpack.c.l.b16 %v1133
        %v1166 = vunpack.c.l.b16 %v1134
        %v1167 = vunpack.c.l.b16 %v1135
        %v1168 = vunpack.c.l.b16 %v1136
        %v1169 = vunpack.c.l.b16 %v1137
        %v1170 = vunpack.c.l.b16 %v1138
        %v1171 = vunpack.c.l.b16 %v1139
        %v1172 = vunpack.c.l.b16 %v1140
        %v1173 = vunpack.c.l.b16 %v1141
        %v1174 = vunpack.c.l.b16 %v1142
        %v1175 = vunpack.c.l.b16 %v1143
        %v1176 = vunpack.c.l.b16 %v1144
        %v1177 = vunpack.c.l.b16 %v1145
        %v1178 = vpack.c.b16 %v1163, %v1162
        %v1179 = vpack.c.b16 %v1165, %v1164
        %v1180 = vpack.c.b16 %v1167, %v1166
        %v1181 = vpack.c.b16 %v1169, %v1168
        %v1182 = vpack.c.b16 %v1171, %v1170
        %v1183 = vpack.c.b16 %v1173, %v1172
        %v1184 = vpack.c.b16 %v1175, %v1174
        %v1185 = vpack.c.b16 %v1177, %v1176
        %1194 = vmatprep.subr.bf16.mxu0 0
        %1195 = vmatpush1.bf16.msra.mxu0 %v1178
        %1196 = vmatprep.subr.bf16.mxu0 0
        %1197 = vmatpush1.bf16.msra.mxu0 %v1179
        %1198 = vmatprep.subr.bf16.mxu0 0
        %1199 = vmatpush1.bf16.msra.mxu0 %v1180
        %1200 = vmatprep.subr.bf16.mxu0 0
        %1201 = vmatpush1.bf16.msra.mxu0 %v1181
        %1202 = vmatprep.subr.bf16.mxu0 0
        %1203 = vmatpush1.bf16.msra.mxu0 %v1182
        %1204 = vmatprep.subr.bf16.mxu0 0
        %1205 = vmatpush1.bf16.msra.mxu0 %v1183
        %1206 = vmatprep.subr.bf16.mxu0 0
        %1207 = vmatpush1.bf16.msra.mxu0 %v1184
        %1208 = vmatprep.subr.bf16.mxu0 0
        %1209 = vmatpush1.bf16.msra.mxu0 %v1185
        %1210 = vmatprep.subr.bf16.mxu0 0
        %1211 = vmatpush1.bf16.msra.mxu0 0
        %1212 = vmatprep.subr.bf16.mxu0 0
        %1213 = vmatpush1.bf16.msra.mxu0 0
        %1214 = vmatprep.subr.bf16.mxu0 0
        %1215 = vmatpush1.bf16.msra.mxu0 0
        %1216 = vmatprep.subr.bf16.mxu0 0
        %1217 = vmatpush1.bf16.msra.mxu0 0
        %1218 = vmatprep.subr.bf16.mxu0 0
        %1219 = vmatpush1.bf16.msra.mxu0 0
        %1220 = vmatprep.subr.bf16.mxu0 0
        %1221 = vmatpush1.bf16.msra.mxu0 0
        %1222 = vmatprep.subr.bf16.mxu0 0
        %1223 = vmatpush1.bf16.msra.mxu0 0
        %1224 = vmatprep.subr.bf16.mxu0 0
        %1225 = vmatpush1.bf16.msra.mxu0 0
        %1226 = vmatprep.mubr.bf16.mxu0 0
        %1227 = vmatmul.mubr.bf16.gmra.mrb[0].mxu0 %v331
        %v1228 = vpop.f32.mrb[0].mxu0
        %v1229 = vadd.f32 0.0, %v1228
        %v1230 = vpop.f32.mrb[0].mxu0
        %v1231 = vpop.f32.mrb[0].mxu0
        %v1232 = vpop.f32.mrb[0].mxu0
        %1233 = vdwg.mxu0
        %s1234 = scalar_lea.vmem %s305, 56
        %v1235 = vld [vmem:[%s1234] sm:$0xff]
        %1237 = vset.pattern.permute.xlu0 0
        %1238 = vperm.xlu0 %1237, %v1235
        %v1239 = vpop.permute.xlu0 %1238
        %v1241 = vmul.f32 %v1239, %v1229
        %v1242 = vadd.f32 %v1128, %v1241
        %s1243 = scalar_lea.vmem %s270, 512 [#allocation3]
        %v1244 = vld [vmem:[%s1243] sm:$0xf]
        %v1245 = vld [vmem:[%s1243 + $0x4] sm:$0xf]
        %v1246 = vld [vmem:[%s1243 + $0x8] sm:$0xf]
        %v1247 = vld [vmem:[%s1243 + $0xc] sm:$0xf]
        %v1248 = vld [vmem:[%s1243 + $0x10] sm:$0xf]
        %v1249 = vld [vmem:[%s1243 + $0x14] sm:$0xf]
        %v1250 = vld [vmem:[%s1243 + $0x18] sm:$0xf]
        %v1251 = vld [vmem:[%s1243 + $0x1c] sm:$0xf]
        %v1252 = vld [vmem:[%s1243 + $0x20] sm:$0xf]
        %v1253 = vld [vmem:[%s1243 + $0x24] sm:$0xf]
        %v1254 = vld [vmem:[%s1243 + $0x28] sm:$0xf]
        %v1255 = vld [vmem:[%s1243 + $0x2c] sm:$0xf]
        %v1256 = vld [vmem:[%s1243 + $0x30] sm:$0xf]
        %v1257 = vld [vmem:[%s1243 + $0x34] sm:$0xf]
        %v1258 = vld [vmem:[%s1243 + $0x38] sm:$0xf]
        %v1259 = vld [vmem:[%s1243 + $0x3c] sm:$0xf]
        %v1276 = vunpack.c.l.b16 %v1244
        %v1277 = vunpack.c.l.b16 %v1245
        %v1278 = vunpack.c.l.b16 %v1246
        %v1279 = vunpack.c.l.b16 %v1247
        %v1280 = vunpack.c.l.b16 %v1248
        %v1281 = vunpack.c.l.b16 %v1249
        %v1282 = vunpack.c.l.b16 %v1250
        %v1283 = vunpack.c.l.b16 %v1251
        %v1284 = vunpack.c.l.b16 %v1252
        %v1285 = vunpack.c.l.b16 %v1253
        %v1286 = vunpack.c.l.b16 %v1254
        %v1287 = vunpack.c.l.b16 %v1255
        %v1288 = vunpack.c.l.b16 %v1256
        %v1289 = vunpack.c.l.b16 %v1257
        %v1290 = vunpack.c.l.b16 %v1258
        %v1291 = vunpack.c.l.b16 %v1259
        %v1292 = vpack.c.b16 %v1277, %v1276
        %v1293 = vpack.c.b16 %v1279, %v1278
        %v1294 = vpack.c.b16 %v1281, %v1280
        %v1295 = vpack.c.b16 %v1283, %v1282
        %v1296 = vpack.c.b16 %v1285, %v1284
        %v1297 = vpack.c.b16 %v1287, %v1286
        %v1298 = vpack.c.b16 %v1289, %v1288
        %v1299 = vpack.c.b16 %v1291, %v1290
        %1308 = vmatprep.subr.bf16.mxu0 0
        %1309 = vmatpush1.bf16.msra.mxu0 %v1292
        %1310 = vmatprep.subr.bf16.mxu0 0
        %1311 = vmatpush1.bf16.msra.mxu0 %v1293
        %1312 = vmatprep.subr.bf16.mxu0 0
        %1313 = vmatpush1.bf16.msra.mxu0 %v1294
        %1314 = vmatprep.subr.bf16.mxu0 0
        %1315 = vmatpush1.bf16.msra.mxu0 %v1295
        %1316 = vmatprep.subr.bf16.mxu0 0
        %1317 = vmatpush1.bf16.msra.mxu0 %v1296
        %1318 = vmatprep.subr.bf16.mxu0 0
        %1319 = vmatpush1.bf16.msra.mxu0 %v1297
        %1320 = vmatprep.subr.bf16.mxu0 0
        %1321 = vmatpush1.bf16.msra.mxu0 %v1298
        %1322 = vmatprep.subr.bf16.mxu0 0
        %1323 = vmatpush1.bf16.msra.mxu0 %v1299
        %1324 = vmatprep.subr.bf16.mxu0 0
        %1325 = vmatpush1.bf16.msra.mxu0 0
        %1326 = vmatprep.subr.bf16.mxu0 0
        %1327 = vmatpush1.bf16.msra.mxu0 0
        %1328 = vmatprep.subr.bf16.mxu0 0
        %1329 = vmatpush1.bf16.msra.mxu0 0
        %1330 = vmatprep.subr.bf16.mxu0 0
        %1331 = vmatpush1.bf16.msra.mxu0 0
        %1332 = vmatprep.subr.bf16.mxu0 0
        %1333 = vmatpush1.bf16.msra.mxu0 0
        %1334 = vmatprep.subr.bf16.mxu0 0
        %1335 = vmatpush1.bf16.msra.mxu0 0
        %1336 = vmatprep.subr.bf16.mxu0 0
        %1337 = vmatpush1.bf16.msra.mxu0 0
        %1338 = vmatprep.subr.bf16.mxu0 0
        %1339 = vmatpush1.bf16.msra.mxu0 0
        %1340 = vmatprep.mubr.bf16.mxu0 0
        %1341 = vmatmul.mubr.bf16.gmra.mrb[0].mxu0 %v331
        %v1342 = vpop.f32.mrb[0].mxu0
        %v1343 = vadd.f32 0.0, %v1342
        %v1344 = vpop.f32.mrb[0].mxu0
        %v1345 = vpop.f32.mrb[0].mxu0
        %v1346 = vpop.f32.mrb[0].mxu0
        %1347 = vdwg.mxu0
        %s1348 = scalar_lea.vmem %s305, 64
        %v1349 = vld [vmem:[%s1348] sm:$0xff]
        %1351 = vset.pattern.permute.xlu0 0
        %1352 = vperm.xlu0 %1351, %v1349
        %v1353 = vpop.permute.xlu0 %1352
        %v1355 = vmul.f32 %v1353, %v1343
        %v1356 = vadd.f32 %v1242, %v1355
        %s1357 = scalar_lea.vmem %s270, 576 [#allocation3]
        %v1358 = vld [vmem:[%s1357] sm:$0xf]
        %v1359 = vld [vmem:[%s1357 + $0x4] sm:$0xf]
        %v1360 = vld [vmem:[%s1357 + $0x8] sm:$0xf]
        %v1361 = vld [vmem:[%s1357 + $0xc] sm:$0xf]
        %v1362 = vld [vmem:[%s1357 + $0x10] sm:$0xf]
        %v1363 = vld [vmem:[%s1357 + $0x14] sm:$0xf]
        %v1364 = vld [vmem:[%s1357 + $0x18] sm:$0xf]
        %v1365 = vld [vmem:[%s1357 + $0x1c] sm:$0xf]
        %v1366 = vld [vmem:[%s1357 + $0x20] sm:$0xf]
        %v1367 = vld [vmem:[%s1357 + $0x24] sm:$0xf]
        %v1368 = vld [vmem:[%s1357 + $0x28] sm:$0xf]
        %v1369 = vld [vmem:[%s1357 + $0x2c] sm:$0xf]
        %v1370 = vld [vmem:[%s1357 + $0x30] sm:$0xf]
        %v1371 = vld [vmem:[%s1357 + $0x34] sm:$0xf]
        %v1372 = vld [vmem:[%s1357 + $0x38] sm:$0xf]
        %v1373 = vld [vmem:[%s1357 + $0x3c] sm:$0xf]
        %v1390 = vunpack.c.l.b16 %v1358
        %v1391 = vunpack.c.l.b16 %v1359
        %v1392 = vunpack.c.l.b16 %v1360
        %v1393 = vunpack.c.l.b16 %v1361
        %v1394 = vunpack.c.l.b16 %v1362
        %v1395 = vunpack.c.l.b16 %v1363
        %v1396 = vunpack.c.l.b16 %v1364
        %v1397 = vunpack.c.l.b16 %v1365
        %v1398 = vunpack.c.l.b16 %v1366
        %v1399 = vunpack.c.l.b16 %v1367
        %v1400 = vunpack.c.l.b16 %v1368
        %v1401 = vunpack.c.l.b16 %v1369
        %v1402 = vunpack.c.l.b16 %v1370
        %v1403 = vunpack.c.l.b16 %v1371
        %v1404 = vunpack.c.l.b16 %v1372
        %v1405 = vunpack.c.l.b16 %v1373
        %v1406 = vpack.c.b16 %v1391, %v1390
        %v1407 = vpack.c.b16 %v1393, %v1392
        %v1408 = vpack.c.b16 %v1395, %v1394
        %v1409 = vpack.c.b16 %v1397, %v1396
        %v1410 = vpack.c.b16 %v1399, %v1398
        %v1411 = vpack.c.b16 %v1401, %v1400
        %v1412 = vpack.c.b16 %v1403, %v1402
        %v1413 = vpack.c.b16 %v1405, %v1404
        %1422 = vmatprep.subr.bf16.mxu0 0
        %1423 = vmatpush1.bf16.msra.mxu0 %v1406
        %1424 = vmatprep.subr.bf16.mxu0 0
        %1425 = vmatpush1.bf16.msra.mxu0 %v1407
        %1426 = vmatprep.subr.bf16.mxu0 0
        %1427 = vmatpush1.bf16.msra.mxu0 %v1408
        %1428 = vmatprep.subr.bf16.mxu0 0
        %1429 = vmatpush1.bf16.msra.mxu0 %v1409
        %1430 = vmatprep.subr.bf16.mxu0 0
        %1431 = vmatpush1.bf16.msra.mxu0 %v1410
        %1432 = vmatprep.subr.bf16.mxu0 0
        %1433 = vmatpush1.bf16.msra.mxu0 %v1411
        %1434 = vmatprep.subr.bf16.mxu0 0
        %1435 = vmatpush1.bf16.msra.mxu0 %v1412
        %1436 = vmatprep.subr.bf16.mxu0 0
        %1437 = vmatpush1.bf16.msra.mxu0 %v1413
        %1438 = vmatprep.subr.bf16.mxu0 0
        %1439 = vmatpush1.bf16.msra.mxu0 0
        %1440 = vmatprep.subr.bf16.mxu0 0
        %1441 = vmatpush1.bf16.msra.mxu0 0
        %1442 = vmatprep.subr.bf16.mxu0 0
        %1443 = vmatpush1.bf16.msra.mxu0 0
        %1444 = vmatprep.subr.bf16.mxu0 0
        %1445 = vmatpush1.bf16.msra.mxu0 0
        %1446 = vmatprep.subr.bf16.mxu0 0
        %1447 = vmatpush1.bf16.msra.mxu0 0
        %1448 = vmatprep.subr.bf16.mxu0 0
        %1449 = vmatpush1.bf16.msra.mxu0 0
        %1450 = vmatprep.subr.bf16.mxu0 0
        %1451 = vmatpush1.bf16.msra.mxu0 0
        %1452 = vmatprep.subr.bf16.mxu0 0
        %1453 = vmatpush1.bf16.msra.mxu0 0
        %1454 = vmatprep.mubr.bf16.mxu0 0
        %1455 = vmatmul.mubr.bf16.gmra.mrb[0].mxu0 %v331
        %v1456 = vpop.f32.mrb[0].mxu0
        %v1457 = vadd.f32 0.0, %v1456
        %v1458 = vpop.f32.mrb[0].mxu0
        %v1459 = vpop.f32.mrb[0].mxu0
        %v1460 = vpop.f32.mrb[0].mxu0
        %1461 = vdwg.mxu0
        %s1462 = scalar_lea.vmem %s305, 72
        %v1463 = vld [vmem:[%s1462] sm:$0xff]
        %1465 = vset.pattern.permute.xlu0 0
        %1466 = vperm.xlu0 %1465, %v1463
        %v1467 = vpop.permute.xlu0 %1466
        %v1469 = vmul.f32 %v1467, %v1457
        %v1470 = vadd.f32 %v1356, %v1469
        %s1471 = scalar_lea.vmem %s270, 640 [#allocation3]
        %v1472 = vld [vmem:[%s1471] sm:$0xf]
        %v1473 = vld [vmem:[%s1471 + $0x4] sm:$0xf]
        %v1474 = vld [vmem:[%s1471 + $0x8] sm:$0xf]
        %v1475 = vld [vmem:[%s1471 + $0xc] sm:$0xf]
        %v1476 = vld [vmem:[%s1471 + $0x10] sm:$0xf]
        %v1477 = vld [vmem:[%s1471 + $0x14] sm:$0xf]
        %v1478 = vld [vmem:[%s1471 + $0x18] sm:$0xf]
        %v1479 = vld [vmem:[%s1471 + $0x1c] sm:$0xf]
        %v1480 = vld [vmem:[%s1471 + $0x20] sm:$0xf]
        %v1481 = vld [vmem:[%s1471 + $0x24] sm:$0xf]
        %v1482 = vld [vmem:[%s1471 + $0x28] sm:$0xf]
        %v1483 = vld [vmem:[%s1471 + $0x2c] sm:$0xf]
        %v1484 = vld [vmem:[%s1471 + $0x30] sm:$0xf]
        %v1485 = vld [vmem:[%s1471 + $0x34] sm:$0xf]
        %v1486 = vld [vmem:[%s1471 + $0x38] sm:$0xf]
        %v1487 = vld [vmem:[%s1471 + $0x3c] sm:$0xf]
        %v1504 = vunpack.c.l.b16 %v1472
        %v1505 = vunpack.c.l.b16 %v1473
        %v1506 = vunpack.c.l.b16 %v1474
        %v1507 = vunpack.c.l.b16 %v1475
        %v1508 = vunpack.c.l.b16 %v1476
        %v1509 = vunpack.c.l.b16 %v1477
        %v1510 = vunpack.c.l.b16 %v1478
        %v1511 = vunpack.c.l.b16 %v1479
        %v1512 = vunpack.c.l.b16 %v1480
        %v1513 = vunpack.c.l.b16 %v1481
        %v1514 = vunpack.c.l.b16 %v1482
        %v1515 = vunpack.c.l.b16 %v1483
        %v1516 = vunpack.c.l.b16 %v1484
        %v1517 = vunpack.c.l.b16 %v1485
        %v1518 = vunpack.c.l.b16 %v1486
        %v1519 = vunpack.c.l.b16 %v1487
        %v1520 = vpack.c.b16 %v1505, %v1504
        %v1521 = vpack.c.b16 %v1507, %v1506
        %v1522 = vpack.c.b16 %v1509, %v1508
        %v1523 = vpack.c.b16 %v1511, %v1510
        %v1524 = vpack.c.b16 %v1513, %v1512
        %v1525 = vpack.c.b16 %v1515, %v1514
        %v1526 = vpack.c.b16 %v1517, %v1516
        %v1527 = vpack.c.b16 %v1519, %v1518
        %1536 = vmatprep.subr.bf16.mxu0 0
        %1537 = vmatpush1.bf16.msra.mxu0 %v1520
        %1538 = vmatprep.subr.bf16.mxu0 0
        %1539 = vmatpush1.bf16.msra.mxu0 %v1521
        %1540 = vmatprep.subr.bf16.mxu0 0
        %1541 = vmatpush1.bf16.msra.mxu0 %v1522
        %1542 = vmatprep.subr.bf16.mxu0 0
        %1543 = vmatpush1.bf16.msra.mxu0 %v1523
        %1544 = vmatprep.subr.bf16.mxu0 0
        %1545 = vmatpush1.bf16.msra.mxu0 %v1524
        %1546 = vmatprep.subr.bf16.mxu0 0
        %1547 = vmatpush1.bf16.msra.mxu0 %v1525
        %1548 = vmatprep.subr.bf16.mxu0 0
        %1549 = vmatpush1.bf16.msra.mxu0 %v1526
        %1550 = vmatprep.subr.bf16.mxu0 0
        %1551 = vmatpush1.bf16.msra.mxu0 %v1527
        %1552 = vmatprep.subr.bf16.mxu0 0
        %1553 = vmatpush1.bf16.msra.mxu0 0
        %1554 = vmatprep.subr.bf16.mxu0 0
        %1555 = vmatpush1.bf16.msra.mxu0 0
        %1556 = vmatprep.subr.bf16.mxu0 0
        %1557 = vmatpush1.bf16.msra.mxu0 0
        %1558 = vmatprep.subr.bf16.mxu0 0
        %1559 = vmatpush1.bf16.msra.mxu0 0
        %1560 = vmatprep.subr.bf16.mxu0 0
        %1561 = vmatpush1.bf16.msra.mxu0 0
        %1562 = vmatprep.subr.bf16.mxu0 0
        %1563 = vmatpush1.bf16.msra.mxu0 0
        %1564 = vmatprep.subr.bf16.mxu0 0
        %1565 = vmatpush1.bf16.msra.mxu0 0
        %1566 = vmatprep.subr.bf16.mxu0 0
        %1567 = vmatpush1.bf16.msra.mxu0 0
        %1568 = vmatprep.mubr.bf16.mxu0 0
        %1569 = vmatmul.mubr.bf16.gmra.mrb[0].mxu0 %v331
        %v1570 = vpop.f32.mrb[0].mxu0
        %v1571 = vadd.f32 0.0, %v1570
        %v1572 = vpop.f32.mrb[0].mxu0
        %v1573 = vpop.f32.mrb[0].mxu0
        %v1574 = vpop.f32.mrb[0].mxu0
        %1575 = vdwg.mxu0
        %s1576 = scalar_lea.vmem %s305, 80
        %v1577 = vld [vmem:[%s1576] sm:$0xff]
        %1579 = vset.pattern.permute.xlu0 0
        %1580 = vperm.xlu0 %1579, %v1577
        %v1581 = vpop.permute.xlu0 %1580
        %v1583 = vmul.f32 %v1581, %v1571
        %v1584 = vadd.f32 %v1470, %v1583
        %s1585 = scalar_lea.vmem %s270, 704 [#allocation3]
        %v1586 = vld [vmem:[%s1585] sm:$0xf]
        %v1587 = vld [vmem:[%s1585 + $0x4] sm:$0xf]
        %v1588 = vld [vmem:[%s1585 + $0x8] sm:$0xf]
        %v1589 = vld [vmem:[%s1585 + $0xc] sm:$0xf]
        %v1590 = vld [vmem:[%s1585 + $0x10] sm:$0xf]
        %v1591 = vld [vmem:[%s1585 + $0x14] sm:$0xf]
        %v1592 = vld [vmem:[%s1585 + $0x18] sm:$0xf]
        %v1593 = vld [vmem:[%s1585 + $0x1c] sm:$0xf]
        %v1594 = vld [vmem:[%s1585 + $0x20] sm:$0xf]
        %v1595 = vld [vmem:[%s1585 + $0x24] sm:$0xf]
        %v1596 = vld [vmem:[%s1585 + $0x28] sm:$0xf]
        %v1597 = vld [vmem:[%s1585 + $0x2c] sm:$0xf]
        %v1598 = vld [vmem:[%s1585 + $0x30] sm:$0xf]
        %v1599 = vld [vmem:[%s1585 + $0x34] sm:$0xf]
        %v1600 = vld [vmem:[%s1585 + $0x38] sm:$0xf]
        %v1601 = vld [vmem:[%s1585 + $0x3c] sm:$0xf]
        %v1618 = vunpack.c.l.b16 %v1586
        %v1619 = vunpack.c.l.b16 %v1587
        %v1620 = vunpack.c.l.b16 %v1588
        %v1621 = vunpack.c.l.b16 %v1589
        %v1622 = vunpack.c.l.b16 %v1590
        %v1623 = vunpack.c.l.b16 %v1591
        %v1624 = vunpack.c.l.b16 %v1592
        %v1625 = vunpack.c.l.b16 %v1593
        %v1626 = vunpack.c.l.b16 %v1594
        %v1627 = vunpack.c.l.b16 %v1595
        %v1628 = vunpack.c.l.b16 %v1596
        %v1629 = vunpack.c.l.b16 %v1597
        %v1630 = vunpack.c.l.b16 %v1598
        %v1631 = vunpack.c.l.b16 %v1599
        %v1632 = vunpack.c.l.b16 %v1600
        %v1633 = vunpack.c.l.b16 %v1601
        %v1634 = vpack.c.b16 %v1619, %v1618
        %v1635 = vpack.c.b16 %v1621, %v1620
        %v1636 = vpack.c.b16 %v1623, %v1622
        %v1637 = vpack.c.b16 %v1625, %v1624
        %v1638 = vpack.c.b16 %v1627, %v1626
        %v1639 = vpack.c.b16 %v1629, %v1628
        %v1640 = vpack.c.b16 %v1631, %v1630
        %v1641 = vpack.c.b16 %v1633, %v1632
        %1650 = vmatprep.subr.bf16.mxu0 0
        %1651 = vmatpush1.bf16.msra.mxu0 %v1634
        %1652 = vmatprep.subr.bf16.mxu0 0
        %1653 = vmatpush1.bf16.msra.mxu0 %v1635
        %1654 = vmatprep.subr.bf16.mxu0 0
        %1655 = vmatpush1.bf16.msra.mxu0 %v1636
        %1656 = vmatprep.subr.bf16.mxu0 0
        %1657 = vmatpush1.bf16.msra.mxu0 %v1637
        %1658 = vmatprep.subr.bf16.mxu0 0
        %1659 = vmatpush1.bf16.msra.mxu0 %v1638
        %1660 = vmatprep.subr.bf16.mxu0 0
        %1661 = vmatpush1.bf16.msra.mxu0 %v1639
        %1662 = vmatprep.subr.bf16.mxu0 0
        %1663 = vmatpush1.bf16.msra.mxu0 %v1640
        %1664 = vmatprep.subr.bf16.mxu0 0
        %1665 = vmatpush1.bf16.msra.mxu0 %v1641
        %1666 = vmatprep.subr.bf16.mxu0 0
        %1667 = vmatpush1.bf16.msra.mxu0 0
        %1668 = vmatprep.subr.bf16.mxu0 0
        %1669 = vmatpush1.bf16.msra.mxu0 0
        %1670 = vmatprep.subr.bf16.mxu0 0
        %1671 = vmatpush1.bf16.msra.mxu0 0
        %1672 = vmatprep.subr.bf16.mxu0 0
        %1673 = vmatpush1.bf16.msra.mxu0 0
        %1674 = vmatprep.subr.bf16.mxu0 0
        %1675 = vmatpush1.bf16.msra.mxu0 0
        %1676 = vmatprep.subr.bf16.mxu0 0
        %1677 = vmatpush1.bf16.msra.mxu0 0
        %1678 = vmatprep.subr.bf16.mxu0 0
        %1679 = vmatpush1.bf16.msra.mxu0 0
        %1680 = vmatprep.subr.bf16.mxu0 0
        %1681 = vmatpush1.bf16.msra.mxu0 0
        %1682 = vmatprep.mubr.bf16.mxu0 0
        %1683 = vmatmul.mubr.bf16.gmra.mrb[0].mxu0 %v331
        %v1684 = vpop.f32.mrb[0].mxu0
        %v1685 = vadd.f32 0.0, %v1684
        %v1686 = vpop.f32.mrb[0].mxu0
        %v1687 = vpop.f32.mrb[0].mxu0
        %v1688 = vpop.f32.mrb[0].mxu0
        %1689 = vdwg.mxu0
        %s1690 = scalar_lea.vmem %s305, 88
        %v1691 = vld [vmem:[%s1690] sm:$0xff]
        %1693 = vset.pattern.permute.xlu0 0
        %1694 = vperm.xlu0 %1693, %v1691
        %v1695 = vpop.permute.xlu0 %1694
        %v1697 = vmul.f32 %v1695, %v1685
        %v1698 = vadd.f32 %v1584, %v1697
        %s1699 = scalar_lea.vmem %s270, 768 [#allocation3]
        %v1700 = vld [vmem:[%s1699] sm:$0xf]
        %v1701 = vld [vmem:[%s1699 + $0x4] sm:$0xf]
        %v1702 = vld [vmem:[%s1699 + $0x8] sm:$0xf]
        %v1703 = vld [vmem:[%s1699 + $0xc] sm:$0xf]
        %v1704 = vld [vmem:[%s1699 + $0x10] sm:$0xf]
        %v1705 = vld [vmem:[%s1699 + $0x14] sm:$0xf]
        %v1706 = vld [vmem:[%s1699 + $0x18] sm:$0xf]
        %v1707 = vld [vmem:[%s1699 + $0x1c] sm:$0xf]
        %v1708 = vld [vmem:[%s1699 + $0x20] sm:$0xf]
        %v1709 = vld [vmem:[%s1699 + $0x24] sm:$0xf]
        %v1710 = vld [vmem:[%s1699 + $0x28] sm:$0xf]
        %v1711 = vld [vmem:[%s1699 + $0x2c] sm:$0xf]
        %v1712 = vld [vmem:[%s1699 + $0x30] sm:$0xf]
        %v1713 = vld [vmem:[%s1699 + $0x34] sm:$0xf]
        %v1714 = vld [vmem:[%s1699 + $0x38] sm:$0xf]
        %v1715 = vld [vmem:[%s1699 + $0x3c] sm:$0xf]
        %v1732 = vunpack.c.l.b16 %v1700
        %v1733 = vunpack.c.l.b16 %v1701
        %v1734 = vunpack.c.l.b16 %v1702
        %v1735 = vunpack.c.l.b16 %v1703
        %v1736 = vunpack.c.l.b16 %v1704
        %v1737 = vunpack.c.l.b16 %v1705
        %v1738 = vunpack.c.l.b16 %v1706
        %v1739 = vunpack.c.l.b16 %v1707
        %v1740 = vunpack.c.l.b16 %v1708
        %v1741 = vunpack.c.l.b16 %v1709
        %v1742 = vunpack.c.l.b16 %v1710
        %v1743 = vunpack.c.l.b16 %v1711
        %v1744 = vunpack.c.l.b16 %v1712
        %v1745 = vunpack.c.l.b16 %v1713
        %v1746 = vunpack.c.l.b16 %v1714
        %v1747 = vunpack.c.l.b16 %v1715
        %v1748 = vpack.c.b16 %v1733, %v1732
        %v1749 = vpack.c.b16 %v1735, %v1734
        %v1750 = vpack.c.b16 %v1737, %v1736
        %v1751 = vpack.c.b16 %v1739, %v1738
        %v1752 = vpack.c.b16 %v1741, %v1740
        %v1753 = vpack.c.b16 %v1743, %v1742
        %v1754 = vpack.c.b16 %v1745, %v1744
        %v1755 = vpack.c.b16 %v1747, %v1746
        %1764 = vmatprep.subr.bf16.mxu0 0
        %1765 = vmatpush1.bf16.msra.mxu0 %v1748
        %1766 = vmatprep.subr.bf16.mxu0 0
        %1767 = vmatpush1.bf16.msra.mxu0 %v1749
        %1768 = vmatprep.subr.bf16.mxu0 0
        %1769 = vmatpush1.bf16.msra.mxu0 %v1750
        %1770 = vmatprep.subr.bf16.mxu0 0
        %1771 = vmatpush1.bf16.msra.mxu0 %v1751
        %1772 = vmatprep.subr.bf16.mxu0 0
        %1773 = vmatpush1.bf16.msra.mxu0 %v1752
        %1774 = vmatprep.subr.bf16.mxu0 0
        %1775 = vmatpush1.bf16.msra.mxu0 %v1753
        %1776 = vmatprep.subr.bf16.mxu0 0
        %1777 = vmatpush1.bf16.msra.mxu0 %v1754
        %1778 = vmatprep.subr.bf16.mxu0 0
        %1779 = vmatpush1.bf16.msra.mxu0 %v1755
        %1780 = vmatprep.subr.bf16.mxu0 0
        %1781 = vmatpush1.bf16.msra.mxu0 0
        %1782 = vmatprep.subr.bf16.mxu0 0
        %1783 = vmatpush1.bf16.msra.mxu0 0
        %1784 = vmatprep.subr.bf16.mxu0 0
        %1785 = vmatpush1.bf16.msra.mxu0 0
        %1786 = vmatprep.subr.bf16.mxu0 0
        %1787 = vmatpush1.bf16.msra.mxu0 0
        %1788 = vmatprep.subr.bf16.mxu0 0
        %1789 = vmatpush1.bf16.msra.mxu0 0
        %1790 = vmatprep.subr.bf16.mxu0 0
        %1791 = vmatpush1.bf16.msra.mxu0 0
        %1792 = vmatprep.subr.bf16.mxu0 0
        %1793 = vmatpush1.bf16.msra.mxu0 0
        %1794 = vmatprep.subr.bf16.mxu0 0
        %1795 = vmatpush1.bf16.msra.mxu0 0
        %1796 = vmatprep.mubr.bf16.mxu0 0
        %1797 = vmatmul.mubr.bf16.gmra.mrb[0].mxu0 %v331
        %v1798 = vpop.f32.mrb[0].mxu0
        %v1799 = vadd.f32 0.0, %v1798
        %v1800 = vpop.f32.mrb[0].mxu0
        %v1801 = vpop.f32.mrb[0].mxu0
        %v1802 = vpop.f32.mrb[0].mxu0
        %1803 = vdwg.mxu0
        %s1804 = scalar_lea.vmem %s305, 96
        %v1805 = vld [vmem:[%s1804] sm:$0xff]
        %1807 = vset.pattern.permute.xlu0 0
        %1808 = vperm.xlu0 %1807, %v1805
        %v1809 = vpop.permute.xlu0 %1808
        %v1811 = vmul.f32 %v1809, %v1799
        %v1812 = vadd.f32 %v1698, %v1811
        %s1813 = scalar_lea.vmem %s270, 832 [#allocation3]
        %v1814 = vld [vmem:[%s1813] sm:$0xf]
        %v1815 = vld [vmem:[%s1813 + $0x4] sm:$0xf]
        %v1816 = vld [vmem:[%s1813 + $0x8] sm:$0xf]
        %v1817 = vld [vmem:[%s1813 + $0xc] sm:$0xf]
        %v1818 = vld [vmem:[%s1813 + $0x10] sm:$0xf]
        %v1819 = vld [vmem:[%s1813 + $0x14] sm:$0xf]
        %v1820 = vld [vmem:[%s1813 + $0x18] sm:$0xf]
        %v1821 = vld [vmem:[%s1813 + $0x1c] sm:$0xf]
        %v1822 = vld [vmem:[%s1813 + $0x20] sm:$0xf]
        %v1823 = vld [vmem:[%s1813 + $0x24] sm:$0xf]
        %v1824 = vld [vmem:[%s1813 + $0x28] sm:$0xf]
        %v1825 = vld [vmem:[%s1813 + $0x2c] sm:$0xf]
        %v1826 = vld [vmem:[%s1813 + $0x30] sm:$0xf]
        %v1827 = vld [vmem:[%s1813 + $0x34] sm:$0xf]
        %v1828 = vld [vmem:[%s1813 + $0x38] sm:$0xf]
        %v1829 = vld [vmem:[%s1813 + $0x3c] sm:$0xf]
        %v1846 = vunpack.c.l.b16 %v1814
        %v1847 = vunpack.c.l.b16 %v1815
        %v1848 = vunpack.c.l.b16 %v1816
        %v1849 = vunpack.c.l.b16 %v1817
        %v1850 = vunpack.c.l.b16 %v1818
        %v1851 = vunpack.c.l.b16 %v1819
        %v1852 = vunpack.c.l.b16 %v1820
        %v1853 = vunpack.c.l.b16 %v1821
        %v1854 = vunpack.c.l.b16 %v1822
        %v1855 = vunpack.c.l.b16 %v1823
        %v1856 = vunpack.c.l.b16 %v1824
        %v1857 = vunpack.c.l.b16 %v1825
        %v1858 = vunpack.c.l.b16 %v1826
        %v1859 = vunpack.c.l.b16 %v1827
        %v1860 = vunpack.c.l.b16 %v1828
        %v1861 = vunpack.c.l.b16 %v1829
        %v1862 = vpack.c.b16 %v1847, %v1846
        %v1863 = vpack.c.b16 %v1849, %v1848
        %v1864 = vpack.c.b16 %v1851, %v1850
        %v1865 = vpack.c.b16 %v1853, %v1852
        %v1866 = vpack.c.b16 %v1855, %v1854
        %v1867 = vpack.c.b16 %v1857, %v1856
        %v1868 = vpack.c.b16 %v1859, %v1858
        %v1869 = vpack.c.b16 %v1861, %v1860
        %1878 = vmatprep.subr.bf16.mxu0 0
        %1879 = vmatpush1.bf16.msra.mxu0 %v1862
        %1880 = vmatprep.subr.bf16.mxu0 0
        %1881 = vmatpush1.bf16.msra.mxu0 %v1863
        %1882 = vmatprep.subr.bf16.mxu0 0
        %1883 = vmatpush1.bf16.msra.mxu0 %v1864
        %1884 = vmatprep.subr.bf16.mxu0 0
        %1885 = vmatpush1.bf16.msra.mxu0 %v1865
        %1886 = vmatprep.subr.bf16.mxu0 0
        %1887 = vmatpush1.bf16.msra.mxu0 %v1866
        %1888 = vmatprep.subr.bf16.mxu0 0
        %1889 = vmatpush1.bf16.msra.mxu0 %v1867
        %1890 = vmatprep.subr.bf16.mxu0 0
        %1891 = vmatpush1.bf16.msra.mxu0 %v1868
        %1892 = vmatprep.subr.bf16.mxu0 0
        %1893 = vmatpush1.bf16.msra.mxu0 %v1869
        %1894 = vmatprep.subr.bf16.mxu0 0
        %1895 = vmatpush1.bf16.msra.mxu0 0
        %1896 = vmatprep.subr.bf16.mxu0 0
        %1897 = vmatpush1.bf16.msra.mxu0 0
        %1898 = vmatprep.subr.bf16.mxu0 0
        %1899 = vmatpush1.bf16.msra.mxu0 0
        %1900 = vmatprep.subr.bf16.mxu0 0
        %1901 = vmatpush1.bf16.msra.mxu0 0
        %1902 = vmatprep.subr.bf16.mxu0 0
        %1903 = vmatpush1.bf16.msra.mxu0 0
        %1904 = vmatprep.subr.bf16.mxu0 0
        %1905 = vmatpush1.bf16.msra.mxu0 0
        %1906 = vmatprep.subr.bf16.mxu0 0
        %1907 = vmatpush1.bf16.msra.mxu0 0
        %1908 = vmatprep.subr.bf16.mxu0 0
        %1909 = vmatpush1.bf16.msra.mxu0 0
        %1910 = vmatprep.mubr.bf16.mxu0 0
        %1911 = vmatmul.mubr.bf16.gmra.mrb[0].mxu0 %v331
        %v1912 = vpop.f32.mrb[0].mxu0
        %v1913 = vadd.f32 0.0, %v1912
        %v1914 = vpop.f32.mrb[0].mxu0
        %v1915 = vpop.f32.mrb[0].mxu0
        %v1916 = vpop.f32.mrb[0].mxu0
        %1917 = vdwg.mxu0
        %s1918 = scalar_lea.vmem %s305, 104
        %v1919 = vld [vmem:[%s1918] sm:$0xff]
        %1921 = vset.pattern.permute.xlu0 0
        %1922 = vperm.xlu0 %1921, %v1919
        %v1923 = vpop.permute.xlu0 %1922
        %v1925 = vmul.f32 %v1923, %v1913
        %v1926 = vadd.f32 %v1812, %v1925
        %s1927 = scalar_lea.vmem %s270, 896 [#allocation3]
        %v1928 = vld [vmem:[%s1927] sm:$0xf]
        %v1929 = vld [vmem:[%s1927 + $0x4] sm:$0xf]
        %v1930 = vld [vmem:[%s1927 + $0x8] sm:$0xf]
        %v1931 = vld [vmem:[%s1927 + $0xc] sm:$0xf]
        %v1932 = vld [vmem:[%s1927 + $0x10] sm:$0xf]
        %v1933 = vld [vmem:[%s1927 + $0x14] sm:$0xf]
        %v1934 = vld [vmem:[%s1927 + $0x18] sm:$0xf]
        %v1935 = vld [vmem:[%s1927 + $0x1c] sm:$0xf]
        %v1936 = vld [vmem:[%s1927 + $0x20] sm:$0xf]
        %v1937 = vld [vmem:[%s1927 + $0x24] sm:$0xf]
        %v1938 = vld [vmem:[%s1927 + $0x28] sm:$0xf]
        %v1939 = vld [vmem:[%s1927 + $0x2c] sm:$0xf]
        %v1940 = vld [vmem:[%s1927 + $0x30] sm:$0xf]
        %v1941 = vld [vmem:[%s1927 + $0x34] sm:$0xf]
        %v1942 = vld [vmem:[%s1927 + $0x38] sm:$0xf]
        %v1943 = vld [vmem:[%s1927 + $0x3c] sm:$0xf]
        %v1960 = vunpack.c.l.b16 %v1928
        %v1961 = vunpack.c.l.b16 %v1929
        %v1962 = vunpack.c.l.b16 %v1930
        %v1963 = vunpack.c.l.b16 %v1931
        %v1964 = vunpack.c.l.b16 %v1932
        %v1965 = vunpack.c.l.b16 %v1933
        %v1966 = vunpack.c.l.b16 %v1934
        %v1967 = vunpack.c.l.b16 %v1935
        %v1968 = vunpack.c.l.b16 %v1936
        %v1969 = vunpack.c.l.b16 %v1937
        %v1970 = vunpack.c.l.b16 %v1938
        %v1971 = vunpack.c.l.b16 %v1939
        %v1972 = vunpack.c.l.b16 %v1940
        %v1973 = vunpack.c.l.b16 %v1941
        %v1974 = vunpack.c.l.b16 %v1942
        %v1975 = vunpack.c.l.b16 %v1943
        %v1976 = vpack.c.b16 %v1961, %v1960
        %v1977 = vpack.c.b16 %v1963, %v1962
        %v1978 = vpack.c.b16 %v1965, %v1964
        %v1979 = vpack.c.b16 %v1967, %v1966
        %v1980 = vpack.c.b16 %v1969, %v1968
        %v1981 = vpack.c.b16 %v1971, %v1970
        %v1982 = vpack.c.b16 %v1973, %v1972
        %v1983 = vpack.c.b16 %v1975, %v1974
        %1992 = vmatprep.subr.bf16.mxu0 0
        %1993 = vmatpush1.bf16.msra.mxu0 %v1976
        %1994 = vmatprep.subr.bf16.mxu0 0
        %1995 = vmatpush1.bf16.msra.mxu0 %v1977
        %1996 = vmatprep.subr.bf16.mxu0 0
        %1997 = vmatpush1.bf16.msra.mxu0 %v1978
        %1998 = vmatprep.subr.bf16.mxu0 0
        %1999 = vmatpush1.bf16.msra.mxu0 %v1979
        %2000 = vmatprep.subr.bf16.mxu0 0
        %2001 = vmatpush1.bf16.msra.mxu0 %v1980
        %2002 = vmatprep.subr.bf16.mxu0 0
        %2003 = vmatpush1.bf16.msra.mxu0 %v1981
        %2004 = vmatprep.subr.bf16.mxu0 0
        %2005 = vmatpush1.bf16.msra.mxu0 %v1982
        %2006 = vmatprep.subr.bf16.mxu0 0
        %2007 = vmatpush1.bf16.msra.mxu0 %v1983
        %2008 = vmatprep.subr.bf16.mxu0 0
        %2009 = vmatpush1.bf16.msra.mxu0 0
        %2010 = vmatprep.subr.bf16.mxu0 0
        %2011 = vmatpush1.bf16.msra.mxu0 0
        %2012 = vmatprep.subr.bf16.mxu0 0
        %2013 = vmatpush1.bf16.msra.mxu0 0
        %2014 = vmatprep.subr.bf16.mxu0 0
        %2015 = vmatpush1.bf16.msra.mxu0 0
        %2016 = vmatprep.subr.bf16.mxu0 0
        %2017 = vmatpush1.bf16.msra.mxu0 0
        %2018 = vmatprep.subr.bf16.mxu0 0
        %2019 = vmatpush1.bf16.msra.mxu0 0
        %2020 = vmatprep.subr.bf16.mxu0 0
        %2021 = vmatpush1.bf16.msra.mxu0 0
        %2022 = vmatprep.subr.bf16.mxu0 0
        %2023 = vmatpush1.bf16.msra.mxu0 0
        %2024 = vmatprep.mubr.bf16.mxu0 0
        %2025 = vmatmul.mubr.bf16.gmra.mrb[0].mxu0 %v331
        %v2026 = vpop.f32.mrb[0].mxu0
        %v2027 = vadd.f32 0.0, %v2026
        %v2028 = vpop.f32.mrb[0].mxu0
        %v2029 = vpop.f32.mrb[0].mxu0
        %v2030 = vpop.f32.mrb[0].mxu0
        %2031 = vdwg.mxu0
        %s2032 = scalar_lea.vmem %s305, 112
        %v2033 = vld [vmem:[%s2032] sm:$0xff]
        %2035 = vset.pattern.permute.xlu0 0
        %2036 = vperm.xlu0 %2035, %v2033
        %v2037 = vpop.permute.xlu0 %2036
        %v2039 = vmul.f32 %v2037, %v2027
        %v2040 = vadd.f32 %v1926, %v2039
        %s2041 = scalar_lea.vmem %s270, 960 [#allocation3]
        %v2042 = vld [vmem:[%s2041] sm:$0xf]
        %v2043 = vld [vmem:[%s2041 + $0x4] sm:$0xf]
        %v2044 = vld [vmem:[%s2041 + $0x8] sm:$0xf]
        %v2045 = vld [vmem:[%s2041 + $0xc] sm:$0xf]
        %v2046 = vld [vmem:[%s2041 + $0x10] sm:$0xf]
        %v2047 = vld [vmem:[%s2041 + $0x14] sm:$0xf]
        %v2048 = vld [vmem:[%s2041 + $0x18] sm:$0xf]
        %v2049 = vld [vmem:[%s2041 + $0x1c] sm:$0xf]
        %v2050 = vld [vmem:[%s2041 + $0x20] sm:$0xf]
        %v2051 = vld [vmem:[%s2041 + $0x24] sm:$0xf]
        %v2052 = vld [vmem:[%s2041 + $0x28] sm:$0xf]
        %v2053 = vld [vmem:[%s2041 + $0x2c] sm:$0xf]
        %v2054 = vld [vmem:[%s2041 + $0x30] sm:$0xf]
        %v2055 = vld [vmem:[%s2041 + $0x34] sm:$0xf]
        %v2056 = vld [vmem:[%s2041 + $0x38] sm:$0xf]
        %v2057 = vld [vmem:[%s2041 + $0x3c] sm:$0xf]
        %v2074 = vunpack.c.l.b16 %v2042
        %v2075 = vunpack.c.l.b16 %v2043
        %v2076 = vunpack.c.l.b16 %v2044
        %v2077 = vunpack.c.l.b16 %v2045
        %v2078 = vunpack.c.l.b16 %v2046
        %v2079 = vunpack.c.l.b16 %v2047
        %v2080 = vunpack.c.l.b16 %v2048
        %v2081 = vunpack.c.l.b16 %v2049
        %v2082 = vunpack.c.l.b16 %v2050
        %v2083 = vunpack.c.l.b16 %v2051
        %v2084 = vunpack.c.l.b16 %v2052
        %v2085 = vunpack.c.l.b16 %v2053
        %v2086 = vunpack.c.l.b16 %v2054
        %v2087 = vunpack.c.l.b16 %v2055
        %v2088 = vunpack.c.l.b16 %v2056
        %v2089 = vunpack.c.l.b16 %v2057
        %v2090 = vpack.c.b16 %v2075, %v2074
        %v2091 = vpack.c.b16 %v2077, %v2076
        %v2092 = vpack.c.b16 %v2079, %v2078
        %v2093 = vpack.c.b16 %v2081, %v2080
        %v2094 = vpack.c.b16 %v2083, %v2082
        %v2095 = vpack.c.b16 %v2085, %v2084
        %v2096 = vpack.c.b16 %v2087, %v2086
        %v2097 = vpack.c.b16 %v2089, %v2088
        %2106 = vmatprep.subr.bf16.mxu0 0
        %2107 = vmatpush1.bf16.msra.mxu0 %v2090
        %2108 = vmatprep.subr.bf16.mxu0 0
        %2109 = vmatpush1.bf16.msra.mxu0 %v2091
        %2110 = vmatprep.subr.bf16.mxu0 0
        %2111 = vmatpush1.bf16.msra.mxu0 %v2092
        %2112 = vmatprep.subr.bf16.mxu0 0
        %2113 = vmatpush1.bf16.msra.mxu0 %v2093
        %2114 = vmatprep.subr.bf16.mxu0 0
        %2115 = vmatpush1.bf16.msra.mxu0 %v2094
        %2116 = vmatprep.subr.bf16.mxu0 0
        %2117 = vmatpush1.bf16.msra.mxu0 %v2095
        %2118 = vmatprep.subr.bf16.mxu0 0
        %2119 = vmatpush1.bf16.msra.mxu0 %v2096
        %2120 = vmatprep.subr.bf16.mxu0 0
        %2121 = vmatpush1.bf16.msra.mxu0 %v2097
        %2122 = vmatprep.subr.bf16.mxu0 0
        %2123 = vmatpush1.bf16.msra.mxu0 0
        %2124 = vmatprep.subr.bf16.mxu0 0
        %2125 = vmatpush1.bf16.msra.mxu0 0
        %2126 = vmatprep.subr.bf16.mxu0 0
        %2127 = vmatpush1.bf16.msra.mxu0 0
        %2128 = vmatprep.subr.bf16.mxu0 0
        %2129 = vmatpush1.bf16.msra.mxu0 0
        %2130 = vmatprep.subr.bf16.mxu0 0
        %2131 = vmatpush1.bf16.msra.mxu0 0
        %2132 = vmatprep.subr.bf16.mxu0 0
        %2133 = vmatpush1.bf16.msra.mxu0 0
        %2134 = vmatprep.subr.bf16.mxu0 0
        %2135 = vmatpush1.bf16.msra.mxu0 0
        %2136 = vmatprep.subr.bf16.mxu0 0
        %2137 = vmatpush1.bf16.msra.mxu0 0
        %2138 = vmatprep.mubr.bf16.mxu0 0
        %2139 = vmatmul.mubr.bf16.gmra.mrb[0].mxu0 %v331
        %v2140 = vpop.f32.mrb[0].mxu0
        %v2141 = vadd.f32 0.0, %v2140
        %v2142 = vpop.f32.mrb[0].mxu0
        %v2143 = vpop.f32.mrb[0].mxu0
        %v2144 = vpop.f32.mrb[0].mxu0
        %2145 = vdwg.mxu0
        %s2146 = scalar_lea.vmem %s305, 120
        %v2147 = vld [vmem:[%s2146] sm:$0xff]
        %2149 = vset.pattern.permute.xlu0 0
        %2150 = vperm.xlu0 %2149, %v2147
        %v2151 = vpop.permute.xlu0 %2150
        %v2153 = vmul.f32 %v2151, %v2141
        %v2154 = vadd.f32 %v2040, %v2153
        %s2155 = scalar_lea.vmem %s270, 1024 [#allocation3]
        %v2156 = vld [vmem:[%s2155] sm:$0xf]
        %v2157 = vld [vmem:[%s2155 + $0x4] sm:$0xf]
        %v2158 = vld [vmem:[%s2155 + $0x8] sm:$0xf]
        %v2159 = vld [vmem:[%s2155 + $0xc] sm:$0xf]
        %v2160 = vld [vmem:[%s2155 + $0x10] sm:$0xf]
        %v2161 = vld [vmem:[%s2155 + $0x14] sm:$0xf]
        %v2162 = vld [vmem:[%s2155 + $0x18] sm:$0xf]
        %v2163 = vld [vmem:[%s2155 + $0x1c] sm:$0xf]
        %v2164 = vld [vmem:[%s2155 + $0x20] sm:$0xf]
        %v2165 = vld [vmem:[%s2155 + $0x24] sm:$0xf]
        %v2166 = vld [vmem:[%s2155 + $0x28] sm:$0xf]
        %v2167 = vld [vmem:[%s2155 + $0x2c] sm:$0xf]
        %v2168 = vld [vmem:[%s2155 + $0x30] sm:$0xf]
        %v2169 = vld [vmem:[%s2155 + $0x34] sm:$0xf]
        %v2170 = vld [vmem:[%s2155 + $0x38] sm:$0xf]
        %v2171 = vld [vmem:[%s2155 + $0x3c] sm:$0xf]
        %v2188 = vunpack.c.l.b16 %v2156
        %v2189 = vunpack.c.l.b16 %v2157
        %v2190 = vunpack.c.l.b16 %v2158
        %v2191 = vunpack.c.l.b16 %v2159
        %v2192 = vunpack.c.l.b16 %v2160
        %v2193 = vunpack.c.l.b16 %v2161
        %v2194 = vunpack.c.l.b16 %v2162
        %v2195 = vunpack.c.l.b16 %v2163
        %v2196 = vunpack.c.l.b16 %v2164
        %v2197 = vunpack.c.l.b16 %v2165
        %v2198 = vunpack.c.l.b16 %v2166
        %v2199 = vunpack.c.l.b16 %v2167
        %v2200 = vunpack.c.l.b16 %v2168
        %v2201 = vunpack.c.l.b16 %v2169
        %v2202 = vunpack.c.l.b16 %v2170
        %v2203 = vunpack.c.l.b16 %v2171
        %v2204 = vpack.c.b16 %v2189, %v2188
        %v2205 = vpack.c.b16 %v2191, %v2190
        %v2206 = vpack.c.b16 %v2193, %v2192
        %v2207 = vpack.c.b16 %v2195, %v2194
        %v2208 = vpack.c.b16 %v2197, %v2196
        %v2209 = vpack.c.b16 %v2199, %v2198
        %v2210 = vpack.c.b16 %v2201, %v2200
        %v2211 = vpack.c.b16 %v2203, %v2202
        %2220 = vmatprep.subr.bf16.mxu0 0
        %2221 = vmatpush1.bf16.msra.mxu0 %v2204
        %2222 = vmatprep.subr.bf16.mxu0 0
        %2223 = vmatpush1.bf16.msra.mxu0 %v2205
        %2224 = vmatprep.subr.bf16.mxu0 0
        %2225 = vmatpush1.bf16.msra.mxu0 %v2206
        %2226 = vmatprep.subr.bf16.mxu0 0
        %2227 = vmatpush1.bf16.msra.mxu0 %v2207
        %2228 = vmatprep.subr.bf16.mxu0 0
        %2229 = vmatpush1.bf16.msra.mxu0 %v2208
        %2230 = vmatprep.subr.bf16.mxu0 0
        %2231 = vmatpush1.bf16.msra.mxu0 %v2209
        %2232 = vmatprep.subr.bf16.mxu0 0
        %2233 = vmatpush1.bf16.msra.mxu0 %v2210
        %2234 = vmatprep.subr.bf16.mxu0 0
        %2235 = vmatpush1.bf16.msra.mxu0 %v2211
        %2236 = vmatprep.subr.bf16.mxu0 0
        %2237 = vmatpush1.bf16.msra.mxu0 0
        %2238 = vmatprep.subr.bf16.mxu0 0
        %2239 = vmatpush1.bf16.msra.mxu0 0
        %2240 = vmatprep.subr.bf16.mxu0 0
        %2241 = vmatpush1.bf16.msra.mxu0 0
        %2242 = vmatprep.subr.bf16.mxu0 0
        %2243 = vmatpush1.bf16.msra.mxu0 0
        %2244 = vmatprep.subr.bf16.mxu0 0
        %2245 = vmatpush1.bf16.msra.mxu0 0
        %2246 = vmatprep.subr.bf16.mxu0 0
        %2247 = vmatpush1.bf16.msra.mxu0 0
        %2248 = vmatprep.subr.bf16.mxu0 0
        %2249 = vmatpush1.bf16.msra.mxu0 0
        %2250 = vmatprep.subr.bf16.mxu0 0
        %2251 = vmatpush1.bf16.msra.mxu0 0
        %2252 = vmatprep.mubr.bf16.mxu0 0
        %2253 = vmatmul.mubr.bf16.gmra.mrb[0].mxu0 %v331
        %v2254 = vpop.f32.mrb[0].mxu0
        %v2255 = vadd.f32 0.0, %v2254
        %v2256 = vpop.f32.mrb[0].mxu0
        %v2257 = vpop.f32.mrb[0].mxu0
        %v2258 = vpop.f32.mrb[0].mxu0
        %2259 = vdwg.mxu0
        %s2260 = scalar_lea.vmem %s305, 128
        %v2261 = vld [vmem:[%s2260] sm:$0xff]
        %2263 = vset.pattern.permute.xlu0 0
        %2264 = vperm.xlu0 %2263, %v2261
        %v2265 = vpop.permute.xlu0 %2264
        %v2267 = vmul.f32 %v2265, %v2255
        %v2268 = vadd.f32 %v2154, %v2267
        %s2269 = scalar_lea.vmem %s270, 1088 [#allocation3]
        %v2270 = vld [vmem:[%s2269] sm:$0xf]
        %v2271 = vld [vmem:[%s2269 + $0x4] sm:$0xf]
        %v2272 = vld [vmem:[%s2269 + $0x8] sm:$0xf]
        %v2273 = vld [vmem:[%s2269 + $0xc] sm:$0xf]
        %v2274 = vld [vmem:[%s2269 + $0x10] sm:$0xf]
        %v2275 = vld [vmem:[%s2269 + $0x14] sm:$0xf]
        %v2276 = vld [vmem:[%s2269 + $0x18] sm:$0xf]
        %v2277 = vld [vmem:[%s2269 + $0x1c] sm:$0xf]
        %v2278 = vld [vmem:[%s2269 + $0x20] sm:$0xf]
        %v2279 = vld [vmem:[%s2269 + $0x24] sm:$0xf]
        %v2280 = vld [vmem:[%s2269 + $0x28] sm:$0xf]
        %v2281 = vld [vmem:[%s2269 + $0x2c] sm:$0xf]
        %v2282 = vld [vmem:[%s2269 + $0x30] sm:$0xf]
        %v2283 = vld [vmem:[%s2269 + $0x34] sm:$0xf]
        %v2284 = vld [vmem:[%s2269 + $0x38] sm:$0xf]
        %v2285 = vld [vmem:[%s2269 + $0x3c] sm:$0xf]
        %v2302 = vunpack.c.l.b16 %v2270
        %v2303 = vunpack.c.l.b16 %v2271
        %v2304 = vunpack.c.l.b16 %v2272
        %v2305 = vunpack.c.l.b16 %v2273
        %v2306 = vunpack.c.l.b16 %v2274
        %v2307 = vunpack.c.l.b16 %v2275
        %v2308 = vunpack.c.l.b16 %v2276
        %v2309 = vunpack.c.l.b16 %v2277
        %v2310 = vunpack.c.l.b16 %v2278
        %v2311 = vunpack.c.l.b16 %v2279
        %v2312 = vunpack.c.l.b16 %v2280
        %v2313 = vunpack.c.l.b16 %v2281
        %v2314 = vunpack.c.l.b16 %v2282
        %v2315 = vunpack.c.l.b16 %v2283
        %v2316 = vunpack.c.l.b16 %v2284
        %v2317 = vunpack.c.l.b16 %v2285
        %v2318 = vpack.c.b16 %v2303, %v2302
        %v2319 = vpack.c.b16 %v2305, %v2304
        %v2320 = vpack.c.b16 %v2307, %v2306
        %v2321 = vpack.c.b16 %v2309, %v2308
        %v2322 = vpack.c.b16 %v2311, %v2310
        %v2323 = vpack.c.b16 %v2313, %v2312
        %v2324 = vpack.c.b16 %v2315, %v2314
        %v2325 = vpack.c.b16 %v2317, %v2316
        %2334 = vmatprep.subr.bf16.mxu0 0
        %2335 = vmatpush1.bf16.msra.mxu0 %v2318
        %2336 = vmatprep.subr.bf16.mxu0 0
        %2337 = vmatpush1.bf16.msra.mxu0 %v2319
        %2338 = vmatprep.subr.bf16.mxu0 0
        %2339 = vmatpush1.bf16.msra.mxu0 %v2320
        %2340 = vmatprep.subr.bf16.mxu0 0
        %2341 = vmatpush1.bf16.msra.mxu0 %v2321
        %2342 = vmatprep.subr.bf16.mxu0 0
        %2343 = vmatpush1.bf16.msra.mxu0 %v2322
        %2344 = vmatprep.subr.bf16.mxu0 0
        %2345 = vmatpush1.bf16.msra.mxu0 %v2323
        %2346 = vmatprep.subr.bf16.mxu0 0
        %2347 = vmatpush1.bf16.msra.mxu0 %v2324
        %2348 = vmatprep.subr.bf16.mxu0 0
        %2349 = vmatpush1.bf16.msra.mxu0 %v2325
        %2350 = vmatprep.subr.bf16.mxu0 0
        %2351 = vmatpush1.bf16.msra.mxu0 0
        %2352 = vmatprep.subr.bf16.mxu0 0
        %2353 = vmatpush1.bf16.msra.mxu0 0
        %2354 = vmatprep.subr.bf16.mxu0 0
        %2355 = vmatpush1.bf16.msra.mxu0 0
        %2356 = vmatprep.subr.bf16.mxu0 0
        %2357 = vmatpush1.bf16.msra.mxu0 0
        %2358 = vmatprep.subr.bf16.mxu0 0
        %2359 = vmatpush1.bf16.msra.mxu0 0
        %2360 = vmatprep.subr.bf16.mxu0 0
        %2361 = vmatpush1.bf16.msra.mxu0 0
        %2362 = vmatprep.subr.bf16.mxu0 0
        %2363 = vmatpush1.bf16.msra.mxu0 0
        %2364 = vmatprep.subr.bf16.mxu0 0
        %2365 = vmatpush1.bf16.msra.mxu0 0
        %2366 = vmatprep.mubr.bf16.mxu0 0
        %2367 = vmatmul.mubr.bf16.gmra.mrb[0].mxu0 %v331
        %v2368 = vpop.f32.mrb[0].mxu0
        %v2369 = vadd.f32 0.0, %v2368
        %v2370 = vpop.f32.mrb[0].mxu0
        %v2371 = vpop.f32.mrb[0].mxu0
        %v2372 = vpop.f32.mrb[0].mxu0
        %2373 = vdwg.mxu0
        %s2374 = scalar_lea.vmem %s305, 136
        %v2375 = vld [vmem:[%s2374] sm:$0xff]
        %2377 = vset.pattern.permute.xlu0 0
        %2378 = vperm.xlu0 %2377, %v2375
        %v2379 = vpop.permute.xlu0 %2378
        %v2381 = vmul.f32 %v2379, %v2369
        %v2382 = vadd.f32 %v2268, %v2381
        %s2383 = scalar_lea.vmem %s270, 1152 [#allocation3]
        %v2384 = vld [vmem:[%s2383] sm:$0xf]
        %v2385 = vld [vmem:[%s2383 + $0x4] sm:$0xf]
        %v2386 = vld [vmem:[%s2383 + $0x8] sm:$0xf]
        %v2387 = vld [vmem:[%s2383 + $0xc] sm:$0xf]
        %v2388 = vld [vmem:[%s2383 + $0x10] sm:$0xf]
        %v2389 = vld [vmem:[%s2383 + $0x14] sm:$0xf]
        %v2390 = vld [vmem:[%s2383 + $0x18] sm:$0xf]
        %v2391 = vld [vmem:[%s2383 + $0x1c] sm:$0xf]
        %v2392 = vld [vmem:[%s2383 + $0x20] sm:$0xf]
        %v2393 = vld [vmem:[%s2383 + $0x24] sm:$0xf]
        %v2394 = vld [vmem:[%s2383 + $0x28] sm:$0xf]
        %v2395 = vld [vmem:[%s2383 + $0x2c] sm:$0xf]
        %v2396 = vld [vmem:[%s2383 + $0x30] sm:$0xf]
        %v2397 = vld [vmem:[%s2383 + $0x34] sm:$0xf]
        %v2398 = vld [vmem:[%s2383 + $0x38] sm:$0xf]
        %v2399 = vld [vmem:[%s2383 + $0x3c] sm:$0xf]
        %v2416 = vunpack.c.l.b16 %v2384
        %v2417 = vunpack.c.l.b16 %v2385
        %v2418 = vunpack.c.l.b16 %v2386
        %v2419 = vunpack.c.l.b16 %v2387
        %v2420 = vunpack.c.l.b16 %v2388
        %v2421 = vunpack.c.l.b16 %v2389
        %v2422 = vunpack.c.l.b16 %v2390
        %v2423 = vunpack.c.l.b16 %v2391
        %v2424 = vunpack.c.l.b16 %v2392
        %v2425 = vunpack.c.l.b16 %v2393
        %v2426 = vunpack.c.l.b16 %v2394
        %v2427 = vunpack.c.l.b16 %v2395
        %v2428 = vunpack.c.l.b16 %v2396
        %v2429 = vunpack.c.l.b16 %v2397
        %v2430 = vunpack.c.l.b16 %v2398
        %v2431 = vunpack.c.l.b16 %v2399
        %v2432 = vpack.c.b16 %v2417, %v2416
        %v2433 = vpack.c.b16 %v2419, %v2418
        %v2434 = vpack.c.b16 %v2421, %v2420
        %v2435 = vpack.c.b16 %v2423, %v2422
        %v2436 = vpack.c.b16 %v2425, %v2424
        %v2437 = vpack.c.b16 %v2427, %v2426
        %v2438 = vpack.c.b16 %v2429, %v2428
        %v2439 = vpack.c.b16 %v2431, %v2430
        %2448 = vmatprep.subr.bf16.mxu0 0
        %2449 = vmatpush1.bf16.msra.mxu0 %v2432
        %2450 = vmatprep.subr.bf16.mxu0 0
        %2451 = vmatpush1.bf16.msra.mxu0 %v2433
        %2452 = vmatprep.subr.bf16.mxu0 0
        %2453 = vmatpush1.bf16.msra.mxu0 %v2434
        %2454 = vmatprep.subr.bf16.mxu0 0
        %2455 = vmatpush1.bf16.msra.mxu0 %v2435
        %2456 = vmatprep.subr.bf16.mxu0 0
        %2457 = vmatpush1.bf16.msra.mxu0 %v2436
        %2458 = vmatprep.subr.bf16.mxu0 0
        %2459 = vmatpush1.bf16.msra.mxu0 %v2437
        %2460 = vmatprep.subr.bf16.mxu0 0
        %2461 = vmatpush1.bf16.msra.mxu0 %v2438
        %2462 = vmatprep.subr.bf16.mxu0 0
        %2463 = vmatpush1.bf16.msra.mxu0 %v2439
        %2464 = vmatprep.subr.bf16.mxu0 0
        %2465 = vmatpush1.bf16.msra.mxu0 0
        %2466 = vmatprep.subr.bf16.mxu0 0
        %2467 = vmatpush1.bf16.msra.mxu0 0
        %2468 = vmatprep.subr.bf16.mxu0 0
        %2469 = vmatpush1.bf16.msra.mxu0 0
        %2470 = vmatprep.subr.bf16.mxu0 0
        %2471 = vmatpush1.bf16.msra.mxu0 0
        %2472 = vmatprep.subr.bf16.mxu0 0
        %2473 = vmatpush1.bf16.msra.mxu0 0
        %2474 = vmatprep.subr.bf16.mxu0 0
        %2475 = vmatpush1.bf16.msra.mxu0 0
        %2476 = vmatprep.subr.bf16.mxu0 0
        %2477 = vmatpush1.bf16.msra.mxu0 0
        %2478 = vmatprep.subr.bf16.mxu0 0
        %2479 = vmatpush1.bf16.msra.mxu0 0
        %2480 = vmatprep.mubr.bf16.mxu0 0
        %2481 = vmatmul.mubr.bf16.gmra.mrb[0].mxu0 %v331
        %v2482 = vpop.f32.mrb[0].mxu0
        %v2483 = vadd.f32 0.0, %v2482
        %v2484 = vpop.f32.mrb[0].mxu0
        %v2485 = vpop.f32.mrb[0].mxu0
        %v2486 = vpop.f32.mrb[0].mxu0
        %2487 = vdwg.mxu0
        %s2488 = scalar_lea.vmem %s305, 144
        %v2489 = vld [vmem:[%s2488] sm:$0xff]
        %2491 = vset.pattern.permute.xlu0 0
        %2492 = vperm.xlu0 %2491, %v2489
        %v2493 = vpop.permute.xlu0 %2492
        %v2495 = vmul.f32 %v2493, %v2483
        %v2496 = vadd.f32 %v2382, %v2495
        %s2497 = scalar_lea.vmem %s270, 1216 [#allocation3]
        %v2498 = vld [vmem:[%s2497] sm:$0xf]
        %v2499 = vld [vmem:[%s2497 + $0x4] sm:$0xf]
        %v2500 = vld [vmem:[%s2497 + $0x8] sm:$0xf]
        %v2501 = vld [vmem:[%s2497 + $0xc] sm:$0xf]
        %v2502 = vld [vmem:[%s2497 + $0x10] sm:$0xf]
        %v2503 = vld [vmem:[%s2497 + $0x14] sm:$0xf]
        %v2504 = vld [vmem:[%s2497 + $0x18] sm:$0xf]
        %v2505 = vld [vmem:[%s2497 + $0x1c] sm:$0xf]
        %v2506 = vld [vmem:[%s2497 + $0x20] sm:$0xf]
        %v2507 = vld [vmem:[%s2497 + $0x24] sm:$0xf]
        %v2508 = vld [vmem:[%s2497 + $0x28] sm:$0xf]
        %v2509 = vld [vmem:[%s2497 + $0x2c] sm:$0xf]
        %v2510 = vld [vmem:[%s2497 + $0x30] sm:$0xf]
        %v2511 = vld [vmem:[%s2497 + $0x34] sm:$0xf]
        %v2512 = vld [vmem:[%s2497 + $0x38] sm:$0xf]
        %v2513 = vld [vmem:[%s2497 + $0x3c] sm:$0xf]
        %v2530 = vunpack.c.l.b16 %v2498
        %v2531 = vunpack.c.l.b16 %v2499
        %v2532 = vunpack.c.l.b16 %v2500
        %v2533 = vunpack.c.l.b16 %v2501
        %v2534 = vunpack.c.l.b16 %v2502
        %v2535 = vunpack.c.l.b16 %v2503
        %v2536 = vunpack.c.l.b16 %v2504
        %v2537 = vunpack.c.l.b16 %v2505
        %v2538 = vunpack.c.l.b16 %v2506
        %v2539 = vunpack.c.l.b16 %v2507
        %v2540 = vunpack.c.l.b16 %v2508
        %v2541 = vunpack.c.l.b16 %v2509
        %v2542 = vunpack.c.l.b16 %v2510
        %v2543 = vunpack.c.l.b16 %v2511
        %v2544 = vunpack.c.l.b16 %v2512
        %v2545 = vunpack.c.l.b16 %v2513
        %v2546 = vpack.c.b16 %v2531, %v2530
        %v2547 = vpack.c.b16 %v2533, %v2532
        %v2548 = vpack.c.b16 %v2535, %v2534
        %v2549 = vpack.c.b16 %v2537, %v2536
        %v2550 = vpack.c.b16 %v2539, %v2538
        %v2551 = vpack.c.b16 %v2541, %v2540
        %v2552 = vpack.c.b16 %v2543, %v2542
        %v2553 = vpack.c.b16 %v2545, %v2544
        %2562 = vmatprep.subr.bf16.mxu0 0
        %2563 = vmatpush1.bf16.msra.mxu0 %v2546
        %2564 = vmatprep.subr.bf16.mxu0 0
        %2565 = vmatpush1.bf16.msra.mxu0 %v2547
        %2566 = vmatprep.subr.bf16.mxu0 0
        %2567 = vmatpush1.bf16.msra.mxu0 %v2548
        %2568 = vmatprep.subr.bf16.mxu0 0
        %2569 = vmatpush1.bf16.msra.mxu0 %v2549
        %2570 = vmatprep.subr.bf16.mxu0 0
        %2571 = vmatpush1.bf16.msra.mxu0 %v2550
        %2572 = vmatprep.subr.bf16.mxu0 0
        %2573 = vmatpush1.bf16.msra.mxu0 %v2551
        %2574 = vmatprep.subr.bf16.mxu0 0
        %2575 = vmatpush1.bf16.msra.mxu0 %v2552
        %2576 = vmatprep.subr.bf16.mxu0 0
        %2577 = vmatpush1.bf16.msra.mxu0 %v2553
        %2578 = vmatprep.subr.bf16.mxu0 0
        %2579 = vmatpush1.bf16.msra.mxu0 0
        %2580 = vmatprep.subr.bf16.mxu0 0
        %2581 = vmatpush1.bf16.msra.mxu0 0
        %2582 = vmatprep.subr.bf16.mxu0 0
        %2583 = vmatpush1.bf16.msra.mxu0 0
        %2584 = vmatprep.subr.bf16.mxu0 0
        %2585 = vmatpush1.bf16.msra.mxu0 0
        %2586 = vmatprep.subr.bf16.mxu0 0
        %2587 = vmatpush1.bf16.msra.mxu0 0
        %2588 = vmatprep.subr.bf16.mxu0 0
        %2589 = vmatpush1.bf16.msra.mxu0 0
        %2590 = vmatprep.subr.bf16.mxu0 0
        %2591 = vmatpush1.bf16.msra.mxu0 0
        %2592 = vmatprep.subr.bf16.mxu0 0
        %2593 = vmatpush1.bf16.msra.mxu0 0
        %2594 = vmatprep.mubr.bf16.mxu0 0
        %2595 = vmatmul.mubr.bf16.gmra.mrb[0].mxu0 %v331
        %v2596 = vpop.f32.mrb[0].mxu0
        %v2597 = vadd.f32 0.0, %v2596
        %v2598 = vpop.f32.mrb[0].mxu0
        %v2599 = vpop.f32.mrb[0].mxu0
        %v2600 = vpop.f32.mrb[0].mxu0
        %2601 = vdwg.mxu0
        %s2602 = scalar_lea.vmem %s305, 152
        %v2603 = vld [vmem:[%s2602] sm:$0xff]
        %2605 = vset.pattern.permute.xlu0 0
        %2606 = vperm.xlu0 %2605, %v2603
        %v2607 = vpop.permute.xlu0 %2606
        %v2609 = vmul.f32 %v2607, %v2597
        %v2610 = vadd.f32 %v2496, %v2609
        %s2611 = scalar_lea.vmem %s270, 1280 [#allocation3]
        %v2612 = vld [vmem:[%s2611] sm:$0xf]
        %v2613 = vld [vmem:[%s2611 + $0x4] sm:$0xf]
        %v2614 = vld [vmem:[%s2611 + $0x8] sm:$0xf]
        %v2615 = vld [vmem:[%s2611 + $0xc] sm:$0xf]
        %v2616 = vld [vmem:[%s2611 + $0x10] sm:$0xf]
        %v2617 = vld [vmem:[%s2611 + $0x14] sm:$0xf]
        %v2618 = vld [vmem:[%s2611 + $0x18] sm:$0xf]
        %v2619 = vld [vmem:[%s2611 + $0x1c] sm:$0xf]
        %v2620 = vld [vmem:[%s2611 + $0x20] sm:$0xf]
        %v2621 = vld [vmem:[%s2611 + $0x24] sm:$0xf]
        %v2622 = vld [vmem:[%s2611 + $0x28] sm:$0xf]
        %v2623 = vld [vmem:[%s2611 + $0x2c] sm:$0xf]
        %v2624 = vld [vmem:[%s2611 + $0x30] sm:$0xf]
        %v2625 = vld [vmem:[%s2611 + $0x34] sm:$0xf]
        %v2626 = vld [vmem:[%s2611 + $0x38] sm:$0xf]
        %v2627 = vld [vmem:[%s2611 + $0x3c] sm:$0xf]
        %v2644 = vunpack.c.l.b16 %v2612
        %v2645 = vunpack.c.l.b16 %v2613
        %v2646 = vunpack.c.l.b16 %v2614
        %v2647 = vunpack.c.l.b16 %v2615
        %v2648 = vunpack.c.l.b16 %v2616
        %v2649 = vunpack.c.l.b16 %v2617
        %v2650 = vunpack.c.l.b16 %v2618
        %v2651 = vunpack.c.l.b16 %v2619
        %v2652 = vunpack.c.l.b16 %v2620
        %v2653 = vunpack.c.l.b16 %v2621
        %v2654 = vunpack.c.l.b16 %v2622
        %v2655 = vunpack.c.l.b16 %v2623
        %v2656 = vunpack.c.l.b16 %v2624
        %v2657 = vunpack.c.l.b16 %v2625
        %v2658 = vunpack.c.l.b16 %v2626
        %v2659 = vunpack.c.l.b16 %v2627
        %v2660 = vpack.c.b16 %v2645, %v2644
        %v2661 = vpack.c.b16 %v2647, %v2646
        %v2662 = vpack.c.b16 %v2649, %v2648
        %v2663 = vpack.c.b16 %v2651, %v2650
        %v2664 = vpack.c.b16 %v2653, %v2652
        %v2665 = vpack.c.b16 %v2655, %v2654
        %v2666 = vpack.c.b16 %v2657, %v2656
        %v2667 = vpack.c.b16 %v2659, %v2658
        %2676 = vmatprep.subr.bf16.mxu0 0
        %2677 = vmatpush1.bf16.msra.mxu0 %v2660
        %2678 = vmatprep.subr.bf16.mxu0 0
        %2679 = vmatpush1.bf16.msra.mxu0 %v2661
        %2680 = vmatprep.subr.bf16.mxu0 0
        %2681 = vmatpush1.bf16.msra.mxu0 %v2662
        %2682 = vmatprep.subr.bf16.mxu0 0
        %2683 = vmatpush1.bf16.msra.mxu0 %v2663
        %2684 = vmatprep.subr.bf16.mxu0 0
        %2685 = vmatpush1.bf16.msra.mxu0 %v2664
        %2686 = vmatprep.subr.bf16.mxu0 0
        %2687 = vmatpush1.bf16.msra.mxu0 %v2665
        %2688 = vmatprep.subr.bf16.mxu0 0
        %2689 = vmatpush1.bf16.msra.mxu0 %v2666
        %2690 = vmatprep.subr.bf16.mxu0 0
        %2691 = vmatpush1.bf16.msra.mxu0 %v2667
        %2692 = vmatprep.subr.bf16.mxu0 0
        %2693 = vmatpush1.bf16.msra.mxu0 0
        %2694 = vmatprep.subr.bf16.mxu0 0
        %2695 = vmatpush1.bf16.msra.mxu0 0
        %2696 = vmatprep.subr.bf16.mxu0 0
        %2697 = vmatpush1.bf16.msra.mxu0 0
        %2698 = vmatprep.subr.bf16.mxu0 0
        %2699 = vmatpush1.bf16.msra.mxu0 0
        %2700 = vmatprep.subr.bf16.mxu0 0
        %2701 = vmatpush1.bf16.msra.mxu0 0
        %2702 = vmatprep.subr.bf16.mxu0 0
        %2703 = vmatpush1.bf16.msra.mxu0 0
        %2704 = vmatprep.subr.bf16.mxu0 0
        %2705 = vmatpush1.bf16.msra.mxu0 0
        %2706 = vmatprep.subr.bf16.mxu0 0
        %2707 = vmatpush1.bf16.msra.mxu0 0
        %2708 = vmatprep.mubr.bf16.mxu0 0
        %2709 = vmatmul.mubr.bf16.gmra.mrb[0].mxu0 %v331
        %v2710 = vpop.f32.mrb[0].mxu0
        %v2711 = vadd.f32 0.0, %v2710
        %v2712 = vpop.f32.mrb[0].mxu0
        %v2713 = vpop.f32.mrb[0].mxu0
        %v2714 = vpop.f32.mrb[0].mxu0
        %2715 = vdwg.mxu0
        %s2716 = scalar_lea.vmem %s305, 160
        %v2717 = vld [vmem:[%s2716] sm:$0xff]
        %2719 = vset.pattern.permute.xlu0 0
        %2720 = vperm.xlu0 %2719, %v2717
        %v2721 = vpop.permute.xlu0 %2720
        %v2723 = vmul.f32 %v2721, %v2711
        %v2724 = vadd.f32 %v2610, %v2723
        %s2725 = scalar_lea.vmem %s270, 1344 [#allocation3]
        %v2726 = vld [vmem:[%s2725] sm:$0xf]
        %v2727 = vld [vmem:[%s2725 + $0x4] sm:$0xf]
        %v2728 = vld [vmem:[%s2725 + $0x8] sm:$0xf]
        %v2729 = vld [vmem:[%s2725 + $0xc] sm:$0xf]
        %v2730 = vld [vmem:[%s2725 + $0x10] sm:$0xf]
        %v2731 = vld [vmem:[%s2725 + $0x14] sm:$0xf]
        %v2732 = vld [vmem:[%s2725 + $0x18] sm:$0xf]
        %v2733 = vld [vmem:[%s2725 + $0x1c] sm:$0xf]
        %v2734 = vld [vmem:[%s2725 + $0x20] sm:$0xf]
        %v2735 = vld [vmem:[%s2725 + $0x24] sm:$0xf]
        %v2736 = vld [vmem:[%s2725 + $0x28] sm:$0xf]
        %v2737 = vld [vmem:[%s2725 + $0x2c] sm:$0xf]
        %v2738 = vld [vmem:[%s2725 + $0x30] sm:$0xf]
        %v2739 = vld [vmem:[%s2725 + $0x34] sm:$0xf]
        %v2740 = vld [vmem:[%s2725 + $0x38] sm:$0xf]
        %v2741 = vld [vmem:[%s2725 + $0x3c] sm:$0xf]
        %v2758 = vunpack.c.l.b16 %v2726
        %v2759 = vunpack.c.l.b16 %v2727
        %v2760 = vunpack.c.l.b16 %v2728
        %v2761 = vunpack.c.l.b16 %v2729
        %v2762 = vunpack.c.l.b16 %v2730
        %v2763 = vunpack.c.l.b16 %v2731
        %v2764 = vunpack.c.l.b16 %v2732
        %v2765 = vunpack.c.l.b16 %v2733
        %v2766 = vunpack.c.l.b16 %v2734
        %v2767 = vunpack.c.l.b16 %v2735
        %v2768 = vunpack.c.l.b16 %v2736
        %v2769 = vunpack.c.l.b16 %v2737
        %v2770 = vunpack.c.l.b16 %v2738
        %v2771 = vunpack.c.l.b16 %v2739
        %v2772 = vunpack.c.l.b16 %v2740
        %v2773 = vunpack.c.l.b16 %v2741
        %v2774 = vpack.c.b16 %v2759, %v2758
        %v2775 = vpack.c.b16 %v2761, %v2760
        %v2776 = vpack.c.b16 %v2763, %v2762
        %v2777 = vpack.c.b16 %v2765, %v2764
        %v2778 = vpack.c.b16 %v2767, %v2766
        %v2779 = vpack.c.b16 %v2769, %v2768
        %v2780 = vpack.c.b16 %v2771, %v2770
        %v2781 = vpack.c.b16 %v2773, %v2772
        %2790 = vmatprep.subr.bf16.mxu0 0
        %2791 = vmatpush1.bf16.msra.mxu0 %v2774
        %2792 = vmatprep.subr.bf16.mxu0 0
        %2793 = vmatpush1.bf16.msra.mxu0 %v2775
        %2794 = vmatprep.subr.bf16.mxu0 0
        %2795 = vmatpush1.bf16.msra.mxu0 %v2776
        %2796 = vmatprep.subr.bf16.mxu0 0
        %2797 = vmatpush1.bf16.msra.mxu0 %v2777
        %2798 = vmatprep.subr.bf16.mxu0 0
        %2799 = vmatpush1.bf16.msra.mxu0 %v2778
        %2800 = vmatprep.subr.bf16.mxu0 0
        %2801 = vmatpush1.bf16.msra.mxu0 %v2779
        %2802 = vmatprep.subr.bf16.mxu0 0
        %2803 = vmatpush1.bf16.msra.mxu0 %v2780
        %2804 = vmatprep.subr.bf16.mxu0 0
        %2805 = vmatpush1.bf16.msra.mxu0 %v2781
        %2806 = vmatprep.subr.bf16.mxu0 0
        %2807 = vmatpush1.bf16.msra.mxu0 0
        %2808 = vmatprep.subr.bf16.mxu0 0
        %2809 = vmatpush1.bf16.msra.mxu0 0
        %2810 = vmatprep.subr.bf16.mxu0 0
        %2811 = vmatpush1.bf16.msra.mxu0 0
        %2812 = vmatprep.subr.bf16.mxu0 0
        %2813 = vmatpush1.bf16.msra.mxu0 0
        %2814 = vmatprep.subr.bf16.mxu0 0
        %2815 = vmatpush1.bf16.msra.mxu0 0
        %2816 = vmatprep.subr.bf16.mxu0 0
        %2817 = vmatpush1.bf16.msra.mxu0 0
        %2818 = vmatprep.subr.bf16.mxu0 0
        %2819 = vmatpush1.bf16.msra.mxu0 0
        %2820 = vmatprep.subr.bf16.mxu0 0
        %2821 = vmatpush1.bf16.msra.mxu0 0
        %2822 = vmatprep.mubr.bf16.mxu0 0
        %2823 = vmatmul.mubr.bf16.gmra.mrb[0].mxu0 %v331
        %v2824 = vpop.f32.mrb[0].mxu0
        %v2825 = vadd.f32 0.0, %v2824
        %v2826 = vpop.f32.mrb[0].mxu0
        %v2827 = vpop.f32.mrb[0].mxu0
        %v2828 = vpop.f32.mrb[0].mxu0
        %2829 = vdwg.mxu0
        %s2830 = scalar_lea.vmem %s305, 168
        %v2831 = vld [vmem:[%s2830] sm:$0xff]
        %2833 = vset.pattern.permute.xlu0 0
        %2834 = vperm.xlu0 %2833, %v2831
        %v2835 = vpop.permute.xlu0 %2834
        %v2837 = vmul.f32 %v2835, %v2825
        %v2838 = vadd.f32 %v2724, %v2837
        %s2839 = scalar_lea.vmem %s270, 1408 [#allocation3]
        %v2840 = vld [vmem:[%s2839] sm:$0xf]
        %v2841 = vld [vmem:[%s2839 + $0x4] sm:$0xf]
        %v2842 = vld [vmem:[%s2839 + $0x8] sm:$0xf]
        %v2843 = vld [vmem:[%s2839 + $0xc] sm:$0xf]
        %v2844 = vld [vmem:[%s2839 + $0x10] sm:$0xf]
        %v2845 = vld [vmem:[%s2839 + $0x14] sm:$0xf]
        %v2846 = vld [vmem:[%s2839 + $0x18] sm:$0xf]
        %v2847 = vld [vmem:[%s2839 + $0x1c] sm:$0xf]
        %v2848 = vld [vmem:[%s2839 + $0x20] sm:$0xf]
        %v2849 = vld [vmem:[%s2839 + $0x24] sm:$0xf]
        %v2850 = vld [vmem:[%s2839 + $0x28] sm:$0xf]
        %v2851 = vld [vmem:[%s2839 + $0x2c] sm:$0xf]
        %v2852 = vld [vmem:[%s2839 + $0x30] sm:$0xf]
        %v2853 = vld [vmem:[%s2839 + $0x34] sm:$0xf]
        %v2854 = vld [vmem:[%s2839 + $0x38] sm:$0xf]
        %v2855 = vld [vmem:[%s2839 + $0x3c] sm:$0xf]
        %v2872 = vunpack.c.l.b16 %v2840
        %v2873 = vunpack.c.l.b16 %v2841
        %v2874 = vunpack.c.l.b16 %v2842
        %v2875 = vunpack.c.l.b16 %v2843
        %v2876 = vunpack.c.l.b16 %v2844
        %v2877 = vunpack.c.l.b16 %v2845
        %v2878 = vunpack.c.l.b16 %v2846
        %v2879 = vunpack.c.l.b16 %v2847
        %v2880 = vunpack.c.l.b16 %v2848
        %v2881 = vunpack.c.l.b16 %v2849
        %v2882 = vunpack.c.l.b16 %v2850
        %v2883 = vunpack.c.l.b16 %v2851
        %v2884 = vunpack.c.l.b16 %v2852
        %v2885 = vunpack.c.l.b16 %v2853
        %v2886 = vunpack.c.l.b16 %v2854
        %v2887 = vunpack.c.l.b16 %v2855
        %v2888 = vpack.c.b16 %v2873, %v2872
        %v2889 = vpack.c.b16 %v2875, %v2874
        %v2890 = vpack.c.b16 %v2877, %v2876
        %v2891 = vpack.c.b16 %v2879, %v2878
        %v2892 = vpack.c.b16 %v2881, %v2880
        %v2893 = vpack.c.b16 %v2883, %v2882
        %v2894 = vpack.c.b16 %v2885, %v2884
        %v2895 = vpack.c.b16 %v2887, %v2886
        %2904 = vmatprep.subr.bf16.mxu0 0
        %2905 = vmatpush1.bf16.msra.mxu0 %v2888
        %2906 = vmatprep.subr.bf16.mxu0 0
        %2907 = vmatpush1.bf16.msra.mxu0 %v2889
        %2908 = vmatprep.subr.bf16.mxu0 0
        %2909 = vmatpush1.bf16.msra.mxu0 %v2890
        %2910 = vmatprep.subr.bf16.mxu0 0
        %2911 = vmatpush1.bf16.msra.mxu0 %v2891
        %2912 = vmatprep.subr.bf16.mxu0 0
        %2913 = vmatpush1.bf16.msra.mxu0 %v2892
        %2914 = vmatprep.subr.bf16.mxu0 0
        %2915 = vmatpush1.bf16.msra.mxu0 %v2893
        %2916 = vmatprep.subr.bf16.mxu0 0
        %2917 = vmatpush1.bf16.msra.mxu0 %v2894
        %2918 = vmatprep.subr.bf16.mxu0 0
        %2919 = vmatpush1.bf16.msra.mxu0 %v2895
        %2920 = vmatprep.subr.bf16.mxu0 0
        %2921 = vmatpush1.bf16.msra.mxu0 0
        %2922 = vmatprep.subr.bf16.mxu0 0
        %2923 = vmatpush1.bf16.msra.mxu0 0
        %2924 = vmatprep.subr.bf16.mxu0 0
        %2925 = vmatpush1.bf16.msra.mxu0 0
        %2926 = vmatprep.subr.bf16.mxu0 0
        %2927 = vmatpush1.bf16.msra.mxu0 0
        %2928 = vmatprep.subr.bf16.mxu0 0
        %2929 = vmatpush1.bf16.msra.mxu0 0
        %2930 = vmatprep.subr.bf16.mxu0 0
        %2931 = vmatpush1.bf16.msra.mxu0 0
        %2932 = vmatprep.subr.bf16.mxu0 0
        %2933 = vmatpush1.bf16.msra.mxu0 0
        %2934 = vmatprep.subr.bf16.mxu0 0
        %2935 = vmatpush1.bf16.msra.mxu0 0
        %2936 = vmatprep.mubr.bf16.mxu0 0
        %2937 = vmatmul.mubr.bf16.gmra.mrb[0].mxu0 %v331
        %v2938 = vpop.f32.mrb[0].mxu0
        %v2939 = vadd.f32 0.0, %v2938
        %v2940 = vpop.f32.mrb[0].mxu0
        %v2941 = vpop.f32.mrb[0].mxu0
        %v2942 = vpop.f32.mrb[0].mxu0
        %2943 = vdwg.mxu0
        %s2944 = scalar_lea.vmem %s305, 176
        %v2945 = vld [vmem:[%s2944] sm:$0xff]
        %2947 = vset.pattern.permute.xlu0 0
        %2948 = vperm.xlu0 %2947, %v2945
        %v2949 = vpop.permute.xlu0 %2948
        %v2951 = vmul.f32 %v2949, %v2939
        %v2952 = vadd.f32 %v2838, %v2951
        %s2953 = scalar_lea.vmem %s270, 1472 [#allocation3]
        %v2954 = vld [vmem:[%s2953] sm:$0xf]
        %v2955 = vld [vmem:[%s2953 + $0x4] sm:$0xf]
        %v2956 = vld [vmem:[%s2953 + $0x8] sm:$0xf]
        %v2957 = vld [vmem:[%s2953 + $0xc] sm:$0xf]
        %v2958 = vld [vmem:[%s2953 + $0x10] sm:$0xf]
        %v2959 = vld [vmem:[%s2953 + $0x14] sm:$0xf]
        %v2960 = vld [vmem:[%s2953 + $0x18] sm:$0xf]
        %v2961 = vld [vmem:[%s2953 + $0x1c] sm:$0xf]
        %v2962 = vld [vmem:[%s2953 + $0x20] sm:$0xf]
        %v2963 = vld [vmem:[%s2953 + $0x24] sm:$0xf]
        %v2964 = vld [vmem:[%s2953 + $0x28] sm:$0xf]
        %v2965 = vld [vmem:[%s2953 + $0x2c] sm:$0xf]
        %v2966 = vld [vmem:[%s2953 + $0x30] sm:$0xf]
        %v2967 = vld [vmem:[%s2953 + $0x34] sm:$0xf]
        %v2968 = vld [vmem:[%s2953 + $0x38] sm:$0xf]
        %v2969 = vld [vmem:[%s2953 + $0x3c] sm:$0xf]
        %v2986 = vunpack.c.l.b16 %v2954
        %v2987 = vunpack.c.l.b16 %v2955
        %v2988 = vunpack.c.l.b16 %v2956
        %v2989 = vunpack.c.l.b16 %v2957
        %v2990 = vunpack.c.l.b16 %v2958
        %v2991 = vunpack.c.l.b16 %v2959
        %v2992 = vunpack.c.l.b16 %v2960
        %v2993 = vunpack.c.l.b16 %v2961
        %v2994 = vunpack.c.l.b16 %v2962
        %v2995 = vunpack.c.l.b16 %v2963
        %v2996 = vunpack.c.l.b16 %v2964
        %v2997 = vunpack.c.l.b16 %v2965
        %v2998 = vunpack.c.l.b16 %v2966
        %v2999 = vunpack.c.l.b16 %v2967
        %v3000 = vunpack.c.l.b16 %v2968
        %v3001 = vunpack.c.l.b16 %v2969
        %v3002 = vpack.c.b16 %v2987, %v2986
        %v3003 = vpack.c.b16 %v2989, %v2988
        %v3004 = vpack.c.b16 %v2991, %v2990
        %v3005 = vpack.c.b16 %v2993, %v2992
        %v3006 = vpack.c.b16 %v2995, %v2994
        %v3007 = vpack.c.b16 %v2997, %v2996
        %v3008 = vpack.c.b16 %v2999, %v2998
        %v3009 = vpack.c.b16 %v3001, %v3000
        %3018 = vmatprep.subr.bf16.mxu0 0
        %3019 = vmatpush1.bf16.msra.mxu0 %v3002
        %3020 = vmatprep.subr.bf16.mxu0 0
        %3021 = vmatpush1.bf16.msra.mxu0 %v3003
        %3022 = vmatprep.subr.bf16.mxu0 0
        %3023 = vmatpush1.bf16.msra.mxu0 %v3004
        %3024 = vmatprep.subr.bf16.mxu0 0
        %3025 = vmatpush1.bf16.msra.mxu0 %v3005
        %3026 = vmatprep.subr.bf16.mxu0 0
        %3027 = vmatpush1.bf16.msra.mxu0 %v3006
        %3028 = vmatprep.subr.bf16.mxu0 0
        %3029 = vmatpush1.bf16.msra.mxu0 %v3007
        %3030 = vmatprep.subr.bf16.mxu0 0
        %3031 = vmatpush1.bf16.msra.mxu0 %v3008
        %3032 = vmatprep.subr.bf16.mxu0 0
        %3033 = vmatpush1.bf16.msra.mxu0 %v3009
        %3034 = vmatprep.subr.bf16.mxu0 0
        %3035 = vmatpush1.bf16.msra.mxu0 0
        %3036 = vmatprep.subr.bf16.mxu0 0
        %3037 = vmatpush1.bf16.msra.mxu0 0
        %3038 = vmatprep.subr.bf16.mxu0 0
        %3039 = vmatpush1.bf16.msra.mxu0 0
        %3040 = vmatprep.subr.bf16.mxu0 0
        %3041 = vmatpush1.bf16.msra.mxu0 0
        %3042 = vmatprep.subr.bf16.mxu0 0
        %3043 = vmatpush1.bf16.msra.mxu0 0
        %3044 = vmatprep.subr.bf16.mxu0 0
        %3045 = vmatpush1.bf16.msra.mxu0 0
        %3046 = vmatprep.subr.bf16.mxu0 0
        %3047 = vmatpush1.bf16.msra.mxu0 0
        %3048 = vmatprep.subr.bf16.mxu0 0
        %3049 = vmatpush1.bf16.msra.mxu0 0
        %3050 = vmatprep.mubr.bf16.mxu0 0
        %3051 = vmatmul.mubr.bf16.gmra.mrb[0].mxu0 %v331
        %v3052 = vpop.f32.mrb[0].mxu0
        %v3053 = vadd.f32 0.0, %v3052
        %v3054 = vpop.f32.mrb[0].mxu0
        %v3055 = vpop.f32.mrb[0].mxu0
        %v3056 = vpop.f32.mrb[0].mxu0
        %3057 = vdwg.mxu0
        %s3058 = scalar_lea.vmem %s305, 184
        %v3059 = vld [vmem:[%s3058] sm:$0xff]
        %3061 = vset.pattern.permute.xlu0 0
        %3062 = vperm.xlu0 %3061, %v3059
        %v3063 = vpop.permute.xlu0 %3062
        %v3065 = vmul.f32 %v3063, %v3053
        %v3066 = vadd.f32 %v2952, %v3065
        %s3067 = scalar_lea.vmem %s270, 1536 [#allocation3]
        %v3068 = vld [vmem:[%s3067] sm:$0xf]
        %v3069 = vld [vmem:[%s3067 + $0x4] sm:$0xf]
        %v3070 = vld [vmem:[%s3067 + $0x8] sm:$0xf]
        %v3071 = vld [vmem:[%s3067 + $0xc] sm:$0xf]
        %v3072 = vld [vmem:[%s3067 + $0x10] sm:$0xf]
        %v3073 = vld [vmem:[%s3067 + $0x14] sm:$0xf]
        %v3074 = vld [vmem:[%s3067 + $0x18] sm:$0xf]
        %v3075 = vld [vmem:[%s3067 + $0x1c] sm:$0xf]
        %v3076 = vld [vmem:[%s3067 + $0x20] sm:$0xf]
        %v3077 = vld [vmem:[%s3067 + $0x24] sm:$0xf]
        %v3078 = vld [vmem:[%s3067 + $0x28] sm:$0xf]
        %v3079 = vld [vmem:[%s3067 + $0x2c] sm:$0xf]
        %v3080 = vld [vmem:[%s3067 + $0x30] sm:$0xf]
        %v3081 = vld [vmem:[%s3067 + $0x34] sm:$0xf]
        %v3082 = vld [vmem:[%s3067 + $0x38] sm:$0xf]
        %v3083 = vld [vmem:[%s3067 + $0x3c] sm:$0xf]
        %v3100 = vunpack.c.l.b16 %v3068
        %v3101 = vunpack.c.l.b16 %v3069
        %v3102 = vunpack.c.l.b16 %v3070
        %v3103 = vunpack.c.l.b16 %v3071
        %v3104 = vunpack.c.l.b16 %v3072
        %v3105 = vunpack.c.l.b16 %v3073
        %v3106 = vunpack.c.l.b16 %v3074
        %v3107 = vunpack.c.l.b16 %v3075
        %v3108 = vunpack.c.l.b16 %v3076
        %v3109 = vunpack.c.l.b16 %v3077
        %v3110 = vunpack.c.l.b16 %v3078
        %v3111 = vunpack.c.l.b16 %v3079
        %v3112 = vunpack.c.l.b16 %v3080
        %v3113 = vunpack.c.l.b16 %v3081
        %v3114 = vunpack.c.l.b16 %v3082
        %v3115 = vunpack.c.l.b16 %v3083
        %v3116 = vpack.c.b16 %v3101, %v3100
        %v3117 = vpack.c.b16 %v3103, %v3102
        %v3118 = vpack.c.b16 %v3105, %v3104
        %v3119 = vpack.c.b16 %v3107, %v3106
        %v3120 = vpack.c.b16 %v3109, %v3108
        %v3121 = vpack.c.b16 %v3111, %v3110
        %v3122 = vpack.c.b16 %v3113, %v3112
        %v3123 = vpack.c.b16 %v3115, %v3114
        %3132 = vmatprep.subr.bf16.mxu0 0
        %3133 = vmatpush1.bf16.msra.mxu0 %v3116
        %3134 = vmatprep.subr.bf16.mxu0 0
        %3135 = vmatpush1.bf16.msra.mxu0 %v3117
        %3136 = vmatprep.subr.bf16.mxu0 0
        %3137 = vmatpush1.bf16.msra.mxu0 %v3118
        %3138 = vmatprep.subr.bf16.mxu0 0
        %3139 = vmatpush1.bf16.msra.mxu0 %v3119
        %3140 = vmatprep.subr.bf16.mxu0 0
        %3141 = vmatpush1.bf16.msra.mxu0 %v3120
        %3142 = vmatprep.subr.bf16.mxu0 0
        %3143 = vmatpush1.bf16.msra.mxu0 %v3121
        %3144 = vmatprep.subr.bf16.mxu0 0
        %3145 = vmatpush1.bf16.msra.mxu0 %v3122
        %3146 = vmatprep.subr.bf16.mxu0 0
        %3147 = vmatpush1.bf16.msra.mxu0 %v3123
        %3148 = vmatprep.subr.bf16.mxu0 0
        %3149 = vmatpush1.bf16.msra.mxu0 0
        %3150 = vmatprep.subr.bf16.mxu0 0
        %3151 = vmatpush1.bf16.msra.mxu0 0
        %3152 = vmatprep.subr.bf16.mxu0 0
        %3153 = vmatpush1.bf16.msra.mxu0 0
        %3154 = vmatprep.subr.bf16.mxu0 0
        %3155 = vmatpush1.bf16.msra.mxu0 0
        %3156 = vmatprep.subr.bf16.mxu0 0
        %3157 = vmatpush1.bf16.msra.mxu0 0
        %3158 = vmatprep.subr.bf16.mxu0 0
        %3159 = vmatpush1.bf16.msra.mxu0 0
        %3160 = vmatprep.subr.bf16.mxu0 0
        %3161 = vmatpush1.bf16.msra.mxu0 0
        %3162 = vmatprep.subr.bf16.mxu0 0
        %3163 = vmatpush1.bf16.msra.mxu0 0
        %3164 = vmatprep.mubr.bf16.mxu0 0
        %3165 = vmatmul.mubr.bf16.gmra.mrb[0].mxu0 %v331
        %v3166 = vpop.f32.mrb[0].mxu0
        %v3167 = vadd.f32 0.0, %v3166
        %v3168 = vpop.f32.mrb[0].mxu0
        %v3169 = vpop.f32.mrb[0].mxu0
        %v3170 = vpop.f32.mrb[0].mxu0
        %3171 = vdwg.mxu0
        %s3172 = scalar_lea.vmem %s305, 192
        %v3173 = vld [vmem:[%s3172] sm:$0xff]
        %3175 = vset.pattern.permute.xlu0 0
        %3176 = vperm.xlu0 %3175, %v3173
        %v3177 = vpop.permute.xlu0 %3176
        %v3179 = vmul.f32 %v3177, %v3167
        %v3180 = vadd.f32 %v3066, %v3179
        %s3181 = scalar_lea.vmem %s270, 1600 [#allocation3]
        %v3182 = vld [vmem:[%s3181] sm:$0xf]
        %v3183 = vld [vmem:[%s3181 + $0x4] sm:$0xf]
        %v3184 = vld [vmem:[%s3181 + $0x8] sm:$0xf]
        %v3185 = vld [vmem:[%s3181 + $0xc] sm:$0xf]
        %v3186 = vld [vmem:[%s3181 + $0x10] sm:$0xf]
        %v3187 = vld [vmem:[%s3181 + $0x14] sm:$0xf]
        %v3188 = vld [vmem:[%s3181 + $0x18] sm:$0xf]
        %v3189 = vld [vmem:[%s3181 + $0x1c] sm:$0xf]
        %v3190 = vld [vmem:[%s3181 + $0x20] sm:$0xf]
        %v3191 = vld [vmem:[%s3181 + $0x24] sm:$0xf]
        %v3192 = vld [vmem:[%s3181 + $0x28] sm:$0xf]
        %v3193 = vld [vmem:[%s3181 + $0x2c] sm:$0xf]
        %v3194 = vld [vmem:[%s3181 + $0x30] sm:$0xf]
        %v3195 = vld [vmem:[%s3181 + $0x34] sm:$0xf]
        %v3196 = vld [vmem:[%s3181 + $0x38] sm:$0xf]
        %v3197 = vld [vmem:[%s3181 + $0x3c] sm:$0xf]
        %v3214 = vunpack.c.l.b16 %v3182
        %v3215 = vunpack.c.l.b16 %v3183
        %v3216 = vunpack.c.l.b16 %v3184
        %v3217 = vunpack.c.l.b16 %v3185
        %v3218 = vunpack.c.l.b16 %v3186
        %v3219 = vunpack.c.l.b16 %v3187
        %v3220 = vunpack.c.l.b16 %v3188
        %v3221 = vunpack.c.l.b16 %v3189
        %v3222 = vunpack.c.l.b16 %v3190
        %v3223 = vunpack.c.l.b16 %v3191
        %v3224 = vunpack.c.l.b16 %v3192
        %v3225 = vunpack.c.l.b16 %v3193
        %v3226 = vunpack.c.l.b16 %v3194
        %v3227 = vunpack.c.l.b16 %v3195
        %v3228 = vunpack.c.l.b16 %v3196
        %v3229 = vunpack.c.l.b16 %v3197
        %v3230 = vpack.c.b16 %v3215, %v3214
        %v3231 = vpack.c.b16 %v3217, %v3216
        %v3232 = vpack.c.b16 %v3219, %v3218
        %v3233 = vpack.c.b16 %v3221, %v3220
        %v3234 = vpack.c.b16 %v3223, %v3222
        %v3235 = vpack.c.b16 %v3225, %v3224
        %v3236 = vpack.c.b16 %v3227, %v3226
        %v3237 = vpack.c.b16 %v3229, %v3228
        %3246 = vmatprep.subr.bf16.mxu0 0
        %3247 = vmatpush1.bf16.msra.mxu0 %v3230
        %3248 = vmatprep.subr.bf16.mxu0 0
        %3249 = vmatpush1.bf16.msra.mxu0 %v3231
        %3250 = vmatprep.subr.bf16.mxu0 0
        %3251 = vmatpush1.bf16.msra.mxu0 %v3232
        %3252 = vmatprep.subr.bf16.mxu0 0
        %3253 = vmatpush1.bf16.msra.mxu0 %v3233
        %3254 = vmatprep.subr.bf16.mxu0 0
        %3255 = vmatpush1.bf16.msra.mxu0 %v3234
        %3256 = vmatprep.subr.bf16.mxu0 0
        %3257 = vmatpush1.bf16.msra.mxu0 %v3235
        %3258 = vmatprep.subr.bf16.mxu0 0
        %3259 = vmatpush1.bf16.msra.mxu0 %v3236
        %3260 = vmatprep.subr.bf16.mxu0 0
        %3261 = vmatpush1.bf16.msra.mxu0 %v3237
        %3262 = vmatprep.subr.bf16.mxu0 0
        %3263 = vmatpush1.bf16.msra.mxu0 0
        %3264 = vmatprep.subr.bf16.mxu0 0
        %3265 = vmatpush1.bf16.msra.mxu0 0
        %3266 = vmatprep.subr.bf16.mxu0 0
        %3267 = vmatpush1.bf16.msra.mxu0 0
        %3268 = vmatprep.subr.bf16.mxu0 0
        %3269 = vmatpush1.bf16.msra.mxu0 0
        %3270 = vmatprep.subr.bf16.mxu0 0
        %3271 = vmatpush1.bf16.msra.mxu0 0
        %3272 = vmatprep.subr.bf16.mxu0 0
        %3273 = vmatpush1.bf16.msra.mxu0 0
        %3274 = vmatprep.subr.bf16.mxu0 0
        %3275 = vmatpush1.bf16.msra.mxu0 0
        %3276 = vmatprep.subr.bf16.mxu0 0
        %3277 = vmatpush1.bf16.msra.mxu0 0
        %3278 = vmatprep.mubr.bf16.mxu0 0
        %3279 = vmatmul.mubr.bf16.gmra.mrb[0].mxu0 %v331
        %v3280 = vpop.f32.mrb[0].mxu0
        %v3281 = vadd.f32 0.0, %v3280
        %v3282 = vpop.f32.mrb[0].mxu0
        %v3283 = vpop.f32.mrb[0].mxu0
        %v3284 = vpop.f32.mrb[0].mxu0
        %3285 = vdwg.mxu0
        %s3286 = scalar_lea.vmem %s305, 200
        %v3287 = vld [vmem:[%s3286] sm:$0xff]
        %3289 = vset.pattern.permute.xlu0 0
        %3290 = vperm.xlu0 %3289, %v3287
        %v3291 = vpop.permute.xlu0 %3290
        %v3293 = vmul.f32 %v3291, %v3281
        %v3294 = vadd.f32 %v3180, %v3293
        %s3295 = scalar_lea.vmem %s270, 1664 [#allocation3]
        %v3296 = vld [vmem:[%s3295] sm:$0xf]
        %v3297 = vld [vmem:[%s3295 + $0x4] sm:$0xf]
        %v3298 = vld [vmem:[%s3295 + $0x8] sm:$0xf]
        %v3299 = vld [vmem:[%s3295 + $0xc] sm:$0xf]
        %v3300 = vld [vmem:[%s3295 + $0x10] sm:$0xf]
        %v3301 = vld [vmem:[%s3295 + $0x14] sm:$0xf]
        %v3302 = vld [vmem:[%s3295 + $0x18] sm:$0xf]
        %v3303 = vld [vmem:[%s3295 + $0x1c] sm:$0xf]
        %v3304 = vld [vmem:[%s3295 + $0x20] sm:$0xf]
        %v3305 = vld [vmem:[%s3295 + $0x24] sm:$0xf]
        %v3306 = vld [vmem:[%s3295 + $0x28] sm:$0xf]
        %v3307 = vld [vmem:[%s3295 + $0x2c] sm:$0xf]
        %v3308 = vld [vmem:[%s3295 + $0x30] sm:$0xf]
        %v3309 = vld [vmem:[%s3295 + $0x34] sm:$0xf]
        %v3310 = vld [vmem:[%s3295 + $0x38] sm:$0xf]
        %v3311 = vld [vmem:[%s3295 + $0x3c] sm:$0xf]
        %v3328 = vunpack.c.l.b16 %v3296
        %v3329 = vunpack.c.l.b16 %v3297
        %v3330 = vunpack.c.l.b16 %v3298
        %v3331 = vunpack.c.l.b16 %v3299
        %v3332 = vunpack.c.l.b16 %v3300
        %v3333 = vunpack.c.l.b16 %v3301
        %v3334 = vunpack.c.l.b16 %v3302
        %v3335 = vunpack.c.l.b16 %v3303
        %v3336 = vunpack.c.l.b16 %v3304
        %v3337 = vunpack.c.l.b16 %v3305
        %v3338 = vunpack.c.l.b16 %v3306
        %v3339 = vunpack.c.l.b16 %v3307
        %v3340 = vunpack.c.l.b16 %v3308
        %v3341 = vunpack.c.l.b16 %v3309
        %v3342 = vunpack.c.l.b16 %v3310
        %v3343 = vunpack.c.l.b16 %v3311
        %v3344 = vpack.c.b16 %v3329, %v3328
        %v3345 = vpack.c.b16 %v3331, %v3330
        %v3346 = vpack.c.b16 %v3333, %v3332
        %v3347 = vpack.c.b16 %v3335, %v3334
        %v3348 = vpack.c.b16 %v3337, %v3336
        %v3349 = vpack.c.b16 %v3339, %v3338
        %v3350 = vpack.c.b16 %v3341, %v3340
        %v3351 = vpack.c.b16 %v3343, %v3342
        %3360 = vmatprep.subr.bf16.mxu0 0
        %3361 = vmatpush1.bf16.msra.mxu0 %v3344
        %3362 = vmatprep.subr.bf16.mxu0 0
        %3363 = vmatpush1.bf16.msra.mxu0 %v3345
        %3364 = vmatprep.subr.bf16.mxu0 0
        %3365 = vmatpush1.bf16.msra.mxu0 %v3346
        %3366 = vmatprep.subr.bf16.mxu0 0
        %3367 = vmatpush1.bf16.msra.mxu0 %v3347
        %3368 = vmatprep.subr.bf16.mxu0 0
        %3369 = vmatpush1.bf16.msra.mxu0 %v3348
        %3370 = vmatprep.subr.bf16.mxu0 0
        %3371 = vmatpush1.bf16.msra.mxu0 %v3349
        %3372 = vmatprep.subr.bf16.mxu0 0
        %3373 = vmatpush1.bf16.msra.mxu0 %v3350
        %3374 = vmatprep.subr.bf16.mxu0 0
        %3375 = vmatpush1.bf16.msra.mxu0 %v3351
        %3376 = vmatprep.subr.bf16.mxu0 0
        %3377 = vmatpush1.bf16.msra.mxu0 0
        %3378 = vmatprep.subr.bf16.mxu0 0
        %3379 = vmatpush1.bf16.msra.mxu0 0
        %3380 = vmatprep.subr.bf16.mxu0 0
        %3381 = vmatpush1.bf16.msra.mxu0 0
        %3382 = vmatprep.subr.bf16.mxu0 0
        %3383 = vmatpush1.bf16.msra.mxu0 0
        %3384 = vmatprep.subr.bf16.mxu0 0
        %3385 = vmatpush1.bf16.msra.mxu0 0
        %3386 = vmatprep.subr.bf16.mxu0 0
        %3387 = vmatpush1.bf16.msra.mxu0 0
        %3388 = vmatprep.subr.bf16.mxu0 0
        %3389 = vmatpush1.bf16.msra.mxu0 0
        %3390 = vmatprep.subr.bf16.mxu0 0
        %3391 = vmatpush1.bf16.msra.mxu0 0
        %3392 = vmatprep.mubr.bf16.mxu0 0
        %3393 = vmatmul.mubr.bf16.gmra.mrb[0].mxu0 %v331
        %v3394 = vpop.f32.mrb[0].mxu0
        %v3395 = vadd.f32 0.0, %v3394
        %v3396 = vpop.f32.mrb[0].mxu0
        %v3397 = vpop.f32.mrb[0].mxu0
        %v3398 = vpop.f32.mrb[0].mxu0
        %3399 = vdwg.mxu0
        %s3400 = scalar_lea.vmem %s305, 208
        %v3401 = vld [vmem:[%s3400] sm:$0xff]
        %3403 = vset.pattern.permute.xlu0 0
        %3404 = vperm.xlu0 %3403, %v3401
        %v3405 = vpop.permute.xlu0 %3404
        %v3407 = vmul.f32 %v3405, %v3395
        %v3408 = vadd.f32 %v3294, %v3407
        %s3409 = scalar_lea.vmem %s270, 1728 [#allocation3]
        %v3410 = vld [vmem:[%s3409] sm:$0xf]
        %v3411 = vld [vmem:[%s3409 + $0x4] sm:$0xf]
        %v3412 = vld [vmem:[%s3409 + $0x8] sm:$0xf]
        %v3413 = vld [vmem:[%s3409 + $0xc] sm:$0xf]
        %v3414 = vld [vmem:[%s3409 + $0x10] sm:$0xf]
        %v3415 = vld [vmem:[%s3409 + $0x14] sm:$0xf]
        %v3416 = vld [vmem:[%s3409 + $0x18] sm:$0xf]
        %v3417 = vld [vmem:[%s3409 + $0x1c] sm:$0xf]
        %v3418 = vld [vmem:[%s3409 + $0x20] sm:$0xf]
        %v3419 = vld [vmem:[%s3409 + $0x24] sm:$0xf]
        %v3420 = vld [vmem:[%s3409 + $0x28] sm:$0xf]
        %v3421 = vld [vmem:[%s3409 + $0x2c] sm:$0xf]
        %v3422 = vld [vmem:[%s3409 + $0x30] sm:$0xf]
        %v3423 = vld [vmem:[%s3409 + $0x34] sm:$0xf]
        %v3424 = vld [vmem:[%s3409 + $0x38] sm:$0xf]
        %v3425 = vld [vmem:[%s3409 + $0x3c] sm:$0xf]
        %v3442 = vunpack.c.l.b16 %v3410
        %v3443 = vunpack.c.l.b16 %v3411
        %v3444 = vunpack.c.l.b16 %v3412
        %v3445 = vunpack.c.l.b16 %v3413
        %v3446 = vunpack.c.l.b16 %v3414
        %v3447 = vunpack.c.l.b16 %v3415
        %v3448 = vunpack.c.l.b16 %v3416
        %v3449 = vunpack.c.l.b16 %v3417
        %v3450 = vunpack.c.l.b16 %v3418
        %v3451 = vunpack.c.l.b16 %v3419
        %v3452 = vunpack.c.l.b16 %v3420
        %v3453 = vunpack.c.l.b16 %v3421
        %v3454 = vunpack.c.l.b16 %v3422
        %v3455 = vunpack.c.l.b16 %v3423
        %v3456 = vunpack.c.l.b16 %v3424
        %v3457 = vunpack.c.l.b16 %v3425
        %v3458 = vpack.c.b16 %v3443, %v3442
        %v3459 = vpack.c.b16 %v3445, %v3444
        %v3460 = vpack.c.b16 %v3447, %v3446
        %v3461 = vpack.c.b16 %v3449, %v3448
        %v3462 = vpack.c.b16 %v3451, %v3450
        %v3463 = vpack.c.b16 %v3453, %v3452
        %v3464 = vpack.c.b16 %v3455, %v3454
        %v3465 = vpack.c.b16 %v3457, %v3456
        %3474 = vmatprep.subr.bf16.mxu0 0
        %3475 = vmatpush1.bf16.msra.mxu0 %v3458
        %3476 = vmatprep.subr.bf16.mxu0 0
        %3477 = vmatpush1.bf16.msra.mxu0 %v3459
        %3478 = vmatprep.subr.bf16.mxu0 0
        %3479 = vmatpush1.bf16.msra.mxu0 %v3460
        %3480 = vmatprep.subr.bf16.mxu0 0
        %3481 = vmatpush1.bf16.msra.mxu0 %v3461
        %3482 = vmatprep.subr.bf16.mxu0 0
        %3483 = vmatpush1.bf16.msra.mxu0 %v3462
        %3484 = vmatprep.subr.bf16.mxu0 0
        %3485 = vmatpush1.bf16.msra.mxu0 %v3463
        %3486 = vmatprep.subr.bf16.mxu0 0
        %3487 = vmatpush1.bf16.msra.mxu0 %v3464
        %3488 = vmatprep.subr.bf16.mxu0 0
        %3489 = vmatpush1.bf16.msra.mxu0 %v3465
        %3490 = vmatprep.subr.bf16.mxu0 0
        %3491 = vmatpush1.bf16.msra.mxu0 0
        %3492 = vmatprep.subr.bf16.mxu0 0
        %3493 = vmatpush1.bf16.msra.mxu0 0
        %3494 = vmatprep.subr.bf16.mxu0 0
        %3495 = vmatpush1.bf16.msra.mxu0 0
        %3496 = vmatprep.subr.bf16.mxu0 0
        %3497 = vmatpush1.bf16.msra.mxu0 0
        %3498 = vmatprep.subr.bf16.mxu0 0
        %3499 = vmatpush1.bf16.msra.mxu0 0
        %3500 = vmatprep.subr.bf16.mxu0 0
        %3501 = vmatpush1.bf16.msra.mxu0 0
        %3502 = vmatprep.subr.bf16.mxu0 0
        %3503 = vmatpush1.bf16.msra.mxu0 0
        %3504 = vmatprep.subr.bf16.mxu0 0
        %3505 = vmatpush1.bf16.msra.mxu0 0
        %3506 = vmatprep.mubr.bf16.mxu0 0
        %3507 = vmatmul.mubr.bf16.gmra.mrb[0].mxu0 %v331
        %v3508 = vpop.f32.mrb[0].mxu0
        %v3509 = vadd.f32 0.0, %v3508
        %v3510 = vpop.f32.mrb[0].mxu0
        %v3511 = vpop.f32.mrb[0].mxu0
        %v3512 = vpop.f32.mrb[0].mxu0
        %3513 = vdwg.mxu0
        %s3514 = scalar_lea.vmem %s305, 216
        %v3515 = vld [vmem:[%s3514] sm:$0xff]
        %3517 = vset.pattern.permute.xlu0 0
        %3518 = vperm.xlu0 %3517, %v3515
        %v3519 = vpop.permute.xlu0 %3518
        %v3521 = vmul.f32 %v3519, %v3509
        %v3522 = vadd.f32 %v3408, %v3521
        %s3523 = scalar_lea.vmem %s270, 1792 [#allocation3]
        %v3524 = vld [vmem:[%s3523] sm:$0xf]
        %v3525 = vld [vmem:[%s3523 + $0x4] sm:$0xf]
        %v3526 = vld [vmem:[%s3523 + $0x8] sm:$0xf]
        %v3527 = vld [vmem:[%s3523 + $0xc] sm:$0xf]
        %v3528 = vld [vmem:[%s3523 + $0x10] sm:$0xf]
        %v3529 = vld [vmem:[%s3523 + $0x14] sm:$0xf]
        %v3530 = vld [vmem:[%s3523 + $0x18] sm:$0xf]
        %v3531 = vld [vmem:[%s3523 + $0x1c] sm:$0xf]
        %v3532 = vld [vmem:[%s3523 + $0x20] sm:$0xf]
        %v3533 = vld [vmem:[%s3523 + $0x24] sm:$0xf]
        %v3534 = vld [vmem:[%s3523 + $0x28] sm:$0xf]
        %v3535 = vld [vmem:[%s3523 + $0x2c] sm:$0xf]
        %v3536 = vld [vmem:[%s3523 + $0x30] sm:$0xf]
        %v3537 = vld [vmem:[%s3523 + $0x34] sm:$0xf]
        %v3538 = vld [vmem:[%s3523 + $0x38] sm:$0xf]
        %v3539 = vld [vmem:[%s3523 + $0x3c] sm:$0xf]
        %v3556 = vunpack.c.l.b16 %v3524
        %v3557 = vunpack.c.l.b16 %v3525
        %v3558 = vunpack.c.l.b16 %v3526
        %v3559 = vunpack.c.l.b16 %v3527
        %v3560 = vunpack.c.l.b16 %v3528
        %v3561 = vunpack.c.l.b16 %v3529
        %v3562 = vunpack.c.l.b16 %v3530
        %v3563 = vunpack.c.l.b16 %v3531
        %v3564 = vunpack.c.l.b16 %v3532
        %v3565 = vunpack.c.l.b16 %v3533
        %v3566 = vunpack.c.l.b16 %v3534
        %v3567 = vunpack.c.l.b16 %v3535
        %v3568 = vunpack.c.l.b16 %v3536
        %v3569 = vunpack.c.l.b16 %v3537
        %v3570 = vunpack.c.l.b16 %v3538
        %v3571 = vunpack.c.l.b16 %v3539
        %v3572 = vpack.c.b16 %v3557, %v3556
        %v3573 = vpack.c.b16 %v3559, %v3558
        %v3574 = vpack.c.b16 %v3561, %v3560
        %v3575 = vpack.c.b16 %v3563, %v3562
        %v3576 = vpack.c.b16 %v3565, %v3564
        %v3577 = vpack.c.b16 %v3567, %v3566
        %v3578 = vpack.c.b16 %v3569, %v3568
        %v3579 = vpack.c.b16 %v3571, %v3570
        %3588 = vmatprep.subr.bf16.mxu0 0
        %3589 = vmatpush1.bf16.msra.mxu0 %v3572
        %3590 = vmatprep.subr.bf16.mxu0 0
        %3591 = vmatpush1.bf16.msra.mxu0 %v3573
        %3592 = vmatprep.subr.bf16.mxu0 0
        %3593 = vmatpush1.bf16.msra.mxu0 %v3574
        %3594 = vmatprep.subr.bf16.mxu0 0
        %3595 = vmatpush1.bf16.msra.mxu0 %v3575
        %3596 = vmatprep.subr.bf16.mxu0 0
        %3597 = vmatpush1.bf16.msra.mxu0 %v3576
        %3598 = vmatprep.subr.bf16.mxu0 0
        %3599 = vmatpush1.bf16.msra.mxu0 %v3577
        %3600 = vmatprep.subr.bf16.mxu0 0
        %3601 = vmatpush1.bf16.msra.mxu0 %v3578
        %3602 = vmatprep.subr.bf16.mxu0 0
        %3603 = vmatpush1.bf16.msra.mxu0 %v3579
        %3604 = vmatprep.subr.bf16.mxu0 0
        %3605 = vmatpush1.bf16.msra.mxu0 0
        %3606 = vmatprep.subr.bf16.mxu0 0
        %3607 = vmatpush1.bf16.msra.mxu0 0
        %3608 = vmatprep.subr.bf16.mxu0 0
        %3609 = vmatpush1.bf16.msra.mxu0 0
        %3610 = vmatprep.subr.bf16.mxu0 0
        %3611 = vmatpush1.bf16.msra.mxu0 0
        %3612 = vmatprep.subr.bf16.mxu0 0
        %3613 = vmatpush1.bf16.msra.mxu0 0
        %3614 = vmatprep.subr.bf16.mxu0 0
        %3615 = vmatpush1.bf16.msra.mxu0 0
        %3616 = vmatprep.subr.bf16.mxu0 0
        %3617 = vmatpush1.bf16.msra.mxu0 0
        %3618 = vmatprep.subr.bf16.mxu0 0
        %3619 = vmatpush1.bf16.msra.mxu0 0
        %3620 = vmatprep.mubr.bf16.mxu0 0
        %3621 = vmatmul.mubr.bf16.gmra.mrb[0].mxu0 %v331
        %v3622 = vpop.f32.mrb[0].mxu0
        %v3623 = vadd.f32 0.0, %v3622
        %v3624 = vpop.f32.mrb[0].mxu0
        %v3625 = vpop.f32.mrb[0].mxu0
        %v3626 = vpop.f32.mrb[0].mxu0
        %3627 = vdwg.mxu0
        %s3628 = scalar_lea.vmem %s305, 224
        %v3629 = vld [vmem:[%s3628] sm:$0xff]
        %3631 = vset.pattern.permute.xlu0 0
        %3632 = vperm.xlu0 %3631, %v3629
        %v3633 = vpop.permute.xlu0 %3632
        %v3635 = vmul.f32 %v3633, %v3623
        %v3636 = vadd.f32 %v3522, %v3635
        %s3637 = scalar_lea.vmem %s270, 1856 [#allocation3]
        %v3638 = vld [vmem:[%s3637] sm:$0xf]
        %v3639 = vld [vmem:[%s3637 + $0x4] sm:$0xf]
        %v3640 = vld [vmem:[%s3637 + $0x8] sm:$0xf]
        %v3641 = vld [vmem:[%s3637 + $0xc] sm:$0xf]
        %v3642 = vld [vmem:[%s3637 + $0x10] sm:$0xf]
        %v3643 = vld [vmem:[%s3637 + $0x14] sm:$0xf]
        %v3644 = vld [vmem:[%s3637 + $0x18] sm:$0xf]
        %v3645 = vld [vmem:[%s3637 + $0x1c] sm:$0xf]
        %v3646 = vld [vmem:[%s3637 + $0x20] sm:$0xf]
        %v3647 = vld [vmem:[%s3637 + $0x24] sm:$0xf]
        %v3648 = vld [vmem:[%s3637 + $0x28] sm:$0xf]
        %v3649 = vld [vmem:[%s3637 + $0x2c] sm:$0xf]
        %v3650 = vld [vmem:[%s3637 + $0x30] sm:$0xf]
        %v3651 = vld [vmem:[%s3637 + $0x34] sm:$0xf]
        %v3652 = vld [vmem:[%s3637 + $0x38] sm:$0xf]
        %v3653 = vld [vmem:[%s3637 + $0x3c] sm:$0xf]
        %v3670 = vunpack.c.l.b16 %v3638
        %v3671 = vunpack.c.l.b16 %v3639
        %v3672 = vunpack.c.l.b16 %v3640
        %v3673 = vunpack.c.l.b16 %v3641
        %v3674 = vunpack.c.l.b16 %v3642
        %v3675 = vunpack.c.l.b16 %v3643
        %v3676 = vunpack.c.l.b16 %v3644
        %v3677 = vunpack.c.l.b16 %v3645
        %v3678 = vunpack.c.l.b16 %v3646
        %v3679 = vunpack.c.l.b16 %v3647
        %v3680 = vunpack.c.l.b16 %v3648
        %v3681 = vunpack.c.l.b16 %v3649
        %v3682 = vunpack.c.l.b16 %v3650
        %v3683 = vunpack.c.l.b16 %v3651
        %v3684 = vunpack.c.l.b16 %v3652
        %v3685 = vunpack.c.l.b16 %v3653
        %v3686 = vpack.c.b16 %v3671, %v3670
        %v3687 = vpack.c.b16 %v3673, %v3672
        %v3688 = vpack.c.b16 %v3675, %v3674
        %v3689 = vpack.c.b16 %v3677, %v3676
        %v3690 = vpack.c.b16 %v3679, %v3678
        %v3691 = vpack.c.b16 %v3681, %v3680
        %v3692 = vpack.c.b16 %v3683, %v3682
        %v3693 = vpack.c.b16 %v3685, %v3684
        %3702 = vmatprep.subr.bf16.mxu0 0
        %3703 = vmatpush1.bf16.msra.mxu0 %v3686
        %3704 = vmatprep.subr.bf16.mxu0 0
        %3705 = vmatpush1.bf16.msra.mxu0 %v3687
        %3706 = vmatprep.subr.bf16.mxu0 0
        %3707 = vmatpush1.bf16.msra.mxu0 %v3688
        %3708 = vmatprep.subr.bf16.mxu0 0
        %3709 = vmatpush1.bf16.msra.mxu0 %v3689
        %3710 = vmatprep.subr.bf16.mxu0 0
        %3711 = vmatpush1.bf16.msra.mxu0 %v3690
        %3712 = vmatprep.subr.bf16.mxu0 0
        %3713 = vmatpush1.bf16.msra.mxu0 %v3691
        %3714 = vmatprep.subr.bf16.mxu0 0
        %3715 = vmatpush1.bf16.msra.mxu0 %v3692
        %3716 = vmatprep.subr.bf16.mxu0 0
        %3717 = vmatpush1.bf16.msra.mxu0 %v3693
        %3718 = vmatprep.subr.bf16.mxu0 0
        %3719 = vmatpush1.bf16.msra.mxu0 0
        %3720 = vmatprep.subr.bf16.mxu0 0
        %3721 = vmatpush1.bf16.msra.mxu0 0
        %3722 = vmatprep.subr.bf16.mxu0 0
        %3723 = vmatpush1.bf16.msra.mxu0 0
        %3724 = vmatprep.subr.bf16.mxu0 0
        %3725 = vmatpush1.bf16.msra.mxu0 0
        %3726 = vmatprep.subr.bf16.mxu0 0
        %3727 = vmatpush1.bf16.msra.mxu0 0
        %3728 = vmatprep.subr.bf16.mxu0 0
        %3729 = vmatpush1.bf16.msra.mxu0 0
        %3730 = vmatprep.subr.bf16.mxu0 0
        %3731 = vmatpush1.bf16.msra.mxu0 0
        %3732 = vmatprep.subr.bf16.mxu0 0
        %3733 = vmatpush1.bf16.msra.mxu0 0
        %3734 = vmatprep.mubr.bf16.mxu0 0
        %3735 = vmatmul.mubr.bf16.gmra.mrb[0].mxu0 %v331
        %v3736 = vpop.f32.mrb[0].mxu0
        %v3737 = vadd.f32 0.0, %v3736
        %v3738 = vpop.f32.mrb[0].mxu0
        %v3739 = vpop.f32.mrb[0].mxu0
        %v3740 = vpop.f32.mrb[0].mxu0
        %3741 = vdwg.mxu0
        %s3742 = scalar_lea.vmem %s305, 232
        %v3743 = vld [vmem:[%s3742] sm:$0xff]
        %3745 = vset.pattern.permute.xlu0 0
        %3746 = vperm.xlu0 %3745, %v3743
        %v3747 = vpop.permute.xlu0 %3746
        %v3749 = vmul.f32 %v3747, %v3737
        %v3750 = vadd.f32 %v3636, %v3749
        %s3751 = scalar_lea.vmem %s270, 1920 [#allocation3]
        %v3752 = vld [vmem:[%s3751] sm:$0xf]
        %v3753 = vld [vmem:[%s3751 + $0x4] sm:$0xf]
        %v3754 = vld [vmem:[%s3751 + $0x8] sm:$0xf]
        %v3755 = vld [vmem:[%s3751 + $0xc] sm:$0xf]
        %v3756 = vld [vmem:[%s3751 + $0x10] sm:$0xf]
        %v3757 = vld [vmem:[%s3751 + $0x14] sm:$0xf]
        %v3758 = vld [vmem:[%s3751 + $0x18] sm:$0xf]
        %v3759 = vld [vmem:[%s3751 + $0x1c] sm:$0xf]
        %v3760 = vld [vmem:[%s3751 + $0x20] sm:$0xf]
        %v3761 = vld [vmem:[%s3751 + $0x24] sm:$0xf]
        %v3762 = vld [vmem:[%s3751 + $0x28] sm:$0xf]
        %v3763 = vld [vmem:[%s3751 + $0x2c] sm:$0xf]
        %v3764 = vld [vmem:[%s3751 + $0x30] sm:$0xf]
        %v3765 = vld [vmem:[%s3751 + $0x34] sm:$0xf]
        %v3766 = vld [vmem:[%s3751 + $0x38] sm:$0xf]
        %v3767 = vld [vmem:[%s3751 + $0x3c] sm:$0xf]
        %v3784 = vunpack.c.l.b16 %v3752
        %v3785 = vunpack.c.l.b16 %v3753
        %v3786 = vunpack.c.l.b16 %v3754
        %v3787 = vunpack.c.l.b16 %v3755
        %v3788 = vunpack.c.l.b16 %v3756
        %v3789 = vunpack.c.l.b16 %v3757
        %v3790 = vunpack.c.l.b16 %v3758
        %v3791 = vunpack.c.l.b16 %v3759
        %v3792 = vunpack.c.l.b16 %v3760
        %v3793 = vunpack.c.l.b16 %v3761
        %v3794 = vunpack.c.l.b16 %v3762
        %v3795 = vunpack.c.l.b16 %v3763
        %v3796 = vunpack.c.l.b16 %v3764
        %v3797 = vunpack.c.l.b16 %v3765
        %v3798 = vunpack.c.l.b16 %v3766
        %v3799 = vunpack.c.l.b16 %v3767
        %v3800 = vpack.c.b16 %v3785, %v3784
        %v3801 = vpack.c.b16 %v3787, %v3786
        %v3802 = vpack.c.b16 %v3789, %v3788
        %v3803 = vpack.c.b16 %v3791, %v3790
        %v3804 = vpack.c.b16 %v3793, %v3792
        %v3805 = vpack.c.b16 %v3795, %v3794
        %v3806 = vpack.c.b16 %v3797, %v3796
        %v3807 = vpack.c.b16 %v3799, %v3798
        %3816 = vmatprep.subr.bf16.mxu0 0
        %3817 = vmatpush1.bf16.msra.mxu0 %v3800
        %3818 = vmatprep.subr.bf16.mxu0 0
        %3819 = vmatpush1.bf16.msra.mxu0 %v3801
        %3820 = vmatprep.subr.bf16.mxu0 0
        %3821 = vmatpush1.bf16.msra.mxu0 %v3802
        %3822 = vmatprep.subr.bf16.mxu0 0
        %3823 = vmatpush1.bf16.msra.mxu0 %v3803
        %3824 = vmatprep.subr.bf16.mxu0 0
        %3825 = vmatpush1.bf16.msra.mxu0 %v3804
        %3826 = vmatprep.subr.bf16.mxu0 0
        %3827 = vmatpush1.bf16.msra.mxu0 %v3805
        %3828 = vmatprep.subr.bf16.mxu0 0
        %3829 = vmatpush1.bf16.msra.mxu0 %v3806
        %3830 = vmatprep.subr.bf16.mxu0 0
        %3831 = vmatpush1.bf16.msra.mxu0 %v3807
        %3832 = vmatprep.subr.bf16.mxu0 0
        %3833 = vmatpush1.bf16.msra.mxu0 0
        %3834 = vmatprep.subr.bf16.mxu0 0
        %3835 = vmatpush1.bf16.msra.mxu0 0
        %3836 = vmatprep.subr.bf16.mxu0 0
        %3837 = vmatpush1.bf16.msra.mxu0 0
        %3838 = vmatprep.subr.bf16.mxu0 0
        %3839 = vmatpush1.bf16.msra.mxu0 0
        %3840 = vmatprep.subr.bf16.mxu0 0
        %3841 = vmatpush1.bf16.msra.mxu0 0
        %3842 = vmatprep.subr.bf16.mxu0 0
        %3843 = vmatpush1.bf16.msra.mxu0 0
        %3844 = vmatprep.subr.bf16.mxu0 0
        %3845 = vmatpush1.bf16.msra.mxu0 0
        %3846 = vmatprep.subr.bf16.mxu0 0
        %3847 = vmatpush1.bf16.msra.mxu0 0
        %3848 = vmatprep.mubr.bf16.mxu0 0
        %3849 = vmatmul.mubr.bf16.gmra.mrb[0].mxu0 %v331
        %v3850 = vpop.f32.mrb[0].mxu0
        %v3851 = vadd.f32 0.0, %v3850
        %v3852 = vpop.f32.mrb[0].mxu0
        %v3853 = vpop.f32.mrb[0].mxu0
        %v3854 = vpop.f32.mrb[0].mxu0
        %3855 = vdwg.mxu0
        %s3856 = scalar_lea.vmem %s305, 240
        %v3857 = vld [vmem:[%s3856] sm:$0xff]
        %3859 = vset.pattern.permute.xlu0 0
        %3860 = vperm.xlu0 %3859, %v3857
        %v3861 = vpop.permute.xlu0 %3860
        %v3863 = vmul.f32 %v3861, %v3851
        %v3864 = vadd.f32 %v3750, %v3863
        %s3865 = scalar_lea.vmem %s270, 1984 [#allocation3]
        %v3866 = vld [vmem:[%s3865] sm:$0xf]
        %v3867 = vld [vmem:[%s3865 + $0x4] sm:$0xf]
        %v3868 = vld [vmem:[%s3865 + $0x8] sm:$0xf]
        %v3869 = vld [vmem:[%s3865 + $0xc] sm:$0xf]
        %v3870 = vld [vmem:[%s3865 + $0x10] sm:$0xf]
        %v3871 = vld [vmem:[%s3865 + $0x14] sm:$0xf]
        %v3872 = vld [vmem:[%s3865 + $0x18] sm:$0xf]
        %v3873 = vld [vmem:[%s3865 + $0x1c] sm:$0xf]
        %v3874 = vld [vmem:[%s3865 + $0x20] sm:$0xf]
        %v3875 = vld [vmem:[%s3865 + $0x24] sm:$0xf]
        %v3876 = vld [vmem:[%s3865 + $0x28] sm:$0xf]
        %v3877 = vld [vmem:[%s3865 + $0x2c] sm:$0xf]
        %v3878 = vld [vmem:[%s3865 + $0x30] sm:$0xf]
        %v3879 = vld [vmem:[%s3865 + $0x34] sm:$0xf]
        %v3880 = vld [vmem:[%s3865 + $0x38] sm:$0xf]
        %v3881 = vld [vmem:[%s3865 + $0x3c] sm:$0xf]
        %v3898 = vunpack.c.l.b16 %v3866
        %v3899 = vunpack.c.l.b16 %v3867
        %v3900 = vunpack.c.l.b16 %v3868
        %v3901 = vunpack.c.l.b16 %v3869
        %v3902 = vunpack.c.l.b16 %v3870
        %v3903 = vunpack.c.l.b16 %v3871
        %v3904 = vunpack.c.l.b16 %v3872
        %v3905 = vunpack.c.l.b16 %v3873
        %v3906 = vunpack.c.l.b16 %v3874
        %v3907 = vunpack.c.l.b16 %v3875
        %v3908 = vunpack.c.l.b16 %v3876
        %v3909 = vunpack.c.l.b16 %v3877
        %v3910 = vunpack.c.l.b16 %v3878
        %v3911 = vunpack.c.l.b16 %v3879
        %v3912 = vunpack.c.l.b16 %v3880
        %v3913 = vunpack.c.l.b16 %v3881
        %v3914 = vpack.c.b16 %v3899, %v3898
        %v3915 = vpack.c.b16 %v3901, %v3900
        %v3916 = vpack.c.b16 %v3903, %v3902
        %v3917 = vpack.c.b16 %v3905, %v3904
        %v3918 = vpack.c.b16 %v3907, %v3906
        %v3919 = vpack.c.b16 %v3909, %v3908
        %v3920 = vpack.c.b16 %v3911, %v3910
        %v3921 = vpack.c.b16 %v3913, %v3912
        %3930 = vmatprep.subr.bf16.mxu0 0
        %3931 = vmatpush1.bf16.msra.mxu0 %v3914
        %3932 = vmatprep.subr.bf16.mxu0 0
        %3933 = vmatpush1.bf16.msra.mxu0 %v3915
        %3934 = vmatprep.subr.bf16.mxu0 0
        %3935 = vmatpush1.bf16.msra.mxu0 %v3916
        %3936 = vmatprep.subr.bf16.mxu0 0
        %3937 = vmatpush1.bf16.msra.mxu0 %v3917
        %3938 = vmatprep.subr.bf16.mxu0 0
        %3939 = vmatpush1.bf16.msra.mxu0 %v3918
        %3940 = vmatprep.subr.bf16.mxu0 0
        %3941 = vmatpush1.bf16.msra.mxu0 %v3919
        %3942 = vmatprep.subr.bf16.mxu0 0
        %3943 = vmatpush1.bf16.msra.mxu0 %v3920
        %3944 = vmatprep.subr.bf16.mxu0 0
        %3945 = vmatpush1.bf16.msra.mxu0 %v3921
        %3946 = vmatprep.subr.bf16.mxu0 0
        %3947 = vmatpush1.bf16.msra.mxu0 0
        %3948 = vmatprep.subr.bf16.mxu0 0
        %3949 = vmatpush1.bf16.msra.mxu0 0
        %3950 = vmatprep.subr.bf16.mxu0 0
        %3951 = vmatpush1.bf16.msra.mxu0 0
        %3952 = vmatprep.subr.bf16.mxu0 0
        %3953 = vmatpush1.bf16.msra.mxu0 0
        %3954 = vmatprep.subr.bf16.mxu0 0
        %3955 = vmatpush1.bf16.msra.mxu0 0
        %3956 = vmatprep.subr.bf16.mxu0 0
        %3957 = vmatpush1.bf16.msra.mxu0 0
        %3958 = vmatprep.subr.bf16.mxu0 0
        %3959 = vmatpush1.bf16.msra.mxu0 0
        %3960 = vmatprep.subr.bf16.mxu0 0
        %3961 = vmatpush1.bf16.msra.mxu0 0
        %3962 = vmatprep.mubr.bf16.mxu0 0
        %3963 = vmatmul.mubr.bf16.gmra.mrb[0].mxu0 %v331
        %v3964 = vpop.f32.mrb[0].mxu0
        %v3965 = vadd.f32 0.0, %v3964
        %v3966 = vpop.f32.mrb[0].mxu0
        %v3967 = vpop.f32.mrb[0].mxu0
        %v3968 = vpop.f32.mrb[0].mxu0
        %3969 = vdwg.mxu0
        %s3970 = scalar_lea.vmem %s305, 248
        %v3971 = vld [vmem:[%s3970] sm:$0xff]
        %3973 = vset.pattern.permute.xlu0 0
        %3974 = vperm.xlu0 %3973, %v3971
        %v3975 = vpop.permute.xlu0 %3974
        %v3977 = vmul.f32 %v3975, %v3965
        %v3978 = vadd.f32 %v3864, %v3977
        %3979 = vst [vmem:[#allocation2] sm:$0xff] %v3978
        %p3980 = scmp.eq.s32.totalorder %s21, 3
        // Predicated region
        $region57: #{tuckertnt_forward.2} parent=47 // pred_check
          %p3981 = pneg %p3980
        $region58: #{tuckertnt_forward.2} parent=47 // pred_check_branch
          %3983 = sbr.rel (%p3981) target = $region60
        $region59: #{tuckertnt_forward.2} parent=47 // pred_region
          %v3984 = vld [vmem:[#allocation2] sm:$0xff]
          %v3985 = vld [vmem:[%s3] sm:$0x1]
          %v3987 = vlaneseq
          %v3988 = vshrl.u32 %v3987, 7
          %v3989 = vsub.s32 0, %v3988
          %v3990 = vrot.slane %v3985, %v3989
          %v3992 = vmul.f32 %v3984, %v3990
          %v3993 = vld [vmem:[%s4] sm:$0x1]
          %v3995 = vlaneseq
          %v3996 = vshrl.u32 %v3995, 7
          %v3997 = vsub.s32 0, %v3996
          %v3998 = vrot.slane %v3993, %v3997
          %v4000 = vadd.f32 %v3992, %v3998
          %v4001 = vpack.c.bf16 %v4000, %v4000
          %4002 = vst [vmem:[%s7] sm:$0xf] %v4001
        $region60: #{tuckertnt_forward.2} parent=47 // pred_fallthru
          _
        // Predicated region
        $region61: #{tuckertnt_forward.2} parent=47 // pred_check
          %p4003 = pneg %p191
        $region62: #{tuckertnt_forward.2} parent=47 // pred_check_branch
          %4005 = sbr.rel (%p4003) target = $region64
        $region63: #{tuckertnt_forward.2} parent=47 // pred_region
          _
        $region64: #{tuckertnt_forward.2} parent=47 // pred_fallthru
          _
        // Predicated region
        $region65: #{tuckertnt_forward.2} parent=47 // pred_check
          %p4006 = pneg %p191
        $region66: #{tuckertnt_forward.2} parent=47 // pred_check_branch
          %4008 = sbr.rel (%p4006) target = $region68
        $region67: #{tuckertnt_forward.2} parent=47 // pred_region
          _
        $region68: #{tuckertnt_forward.2} parent=47 // pred_fallthru
          _
      $region48: #{tuckertnt_forward.2} parent=5 // pred_fallthru
        _
      %p4009 = scmp.le.s32.totalorder 2, %s16
      // Predicated region
      $region69: #{tuckertnt_forward.2} parent=5 // pred_check
        %p4010 = pneg %p4009
      $region70: #{tuckertnt_forward.2} parent=5 // pred_check_branch
        %4012 = sbr.rel (%p4010) target = $region72
      $region71: #{tuckertnt_forward.2} parent=5 // pred_region
        %s4013 = ssub.s32 %s16, 2
      $region72: #{tuckertnt_forward.2} parent=5 // pred_fallthru
        _
    $region6: #{tuckertnt_forward.2} parent=1 // loop_footer
      %s20 = sadd.s32 1, %s16
    $region7: #{tuckertnt_forward.2} parent=1 // loop_footer_branch
      %15 = sbr.rel target = $region3
    $region8: #{tuckertnt_forward.2} parent=1 // loop_exit
      _
    %4014 = vsyncpa [#allocation4], 1
    %s4015 = scalar_lea.sflag [#allocation4], 1
    %4016 = vsyncpa %s4015, 1

</llo_original>
